<compile_context>
chip_gen: v7x
topology: tpu7x:2x2x1
jax: 0.10.0
libtpu: 0.0.40
codegen_flags: <defaults>
</compile_context>

<pallas_src>
import jax
import jax.numpy as jnp
from jax.experimental import pallas as pl
from jax.experimental.pallas import tpu as pltpu


# ----------------------------------------------------------------------------
# Glue: dense bilinear sampling matrix, built in (B, K, HW, P_pad) orientation.
# Exactly reproduces torchvision deform_conv2d's bilinear rule
# (zero outside (-1,H)x(-1,W), per-corner bounds check).
# ----------------------------------------------------------------------------
def build_sampling_matrix(offset, kh, kw, H, W, Hout, Wout, P_pad):
    B = offset.shape[0]
    K = kh * kw
    P = Hout * Wout
    HW = H * W

    off = offset.reshape(B, K, 2, Hout, Wout)
    dy = off[:, :, 0]                                   # (B,K,Hout,Wout) vertical
    dx = off[:, :, 1]                                   # (B,K,Hout,Wout) horizontal

    ki = (jnp.arange(K) // kw).astype(jnp.float32)
    kj = (jnp.arange(K) % kw).astype(jnp.float32)
    hs = jnp.arange(Hout, dtype=jnp.float32)
    ws = jnp.arange(Wout, dtype=jnp.float32)

    y = ki[None, :, None, None] + hs[None, None, :, None] + dy   # (B,K,Hout,Wout)
    x = kj[None, :, None, None] + ws[None, None, None, :] + dx

    y = y.reshape(B, K, P)
    x = x.reshape(B, K, P)
    pad = P_pad - P
    # Padded output pixels get far out-of-range coords -> all corner weights zero.
    y = jnp.pad(y, ((0, 0), (0, 0), (0, pad)), constant_values=-2.0 * H)
    x = jnp.pad(x, ((0, 0), (0, 0), (0, pad)), constant_values=-2.0 * W)

    in_range = (y > -1.0) & (y < H) & (x > -1.0) & (x < W)
    y0 = jnp.floor(y)
    x0 = jnp.floor(x)
    ly = y - y0
    lx = x - x0
    hy = 1.0 - ly
    hx = 1.0 - lx

    corners = [
        (y0,       x0,       hy * hx),
        (y0,       x0 + 1.0, hy * lx),
        (y0 + 1.0, x0,       ly * hx),
        (y0 + 1.0, x0 + 1.0, ly * lx),
    ]

    q = jnp.arange(HW, dtype=jnp.int32)[None, None, :, None]     # (1,1,HW,1)
    S = jnp.zeros((B, K, HW, P_pad), jnp.float32)
    for yc, xc, wc in corners:
        valid = (yc >= 0) & (yc <= H - 1) & (xc >= 0) & (xc <= W - 1)
        w_eff = jnp.where(valid & in_range, wc, 0.0)              # (B,K,P_pad)
        yi = jnp.clip(yc, 0, H - 1).astype(jnp.int32)
        xi = jnp.clip(xc, 0, W - 1).astype(jnp.int32)
        flat = yi * W + xi                                        # (B,K,P_pad)
        hit = (q == flat[:, :, None, :])                          # (B,K,HW,P_pad)
        S = S + jnp.where(hit, w_eff[:, :, None, :], 0.0)
    return S.astype(jnp.bfloat16)


# ----------------------------------------------------------------------------
# Pallas kernel: per (batch, P-tile) grid step
#   sm  = S_block * mask          (K, HW, TP)   VPU
#   out = wx @ sm.reshape(K*HW,TP)  (Cout, TP)  single deep MXU contraction, fp32 acc
# ----------------------------------------------------------------------------
def deform_conv_kernel(wx_ref, s_ref, m_ref, o_ref):
    K, HW, TP = s_ref.shape
    sm = s_ref[...] * m_ref[...][:, None, :]          # bf16 mask modulation (VPU)
    sm = sm.reshape(K * HW, TP)                       # tile-aligned collapse of (K,HW)
    o_ref[...] = jnp.dot(wx_ref[...], sm,
                         preferred_element_type=jnp.float32).astype(o_ref.dtype)


def deformable_conv_block_forward(x, weight, offset, mask, kh, kw, tp=128):
    """Equivalent of deformable_conv_block.forward (weights/offset/mask passed in)."""
    B, Cin, H, W = x.shape
    Cout = weight.shape[0]
    K = kh * kw
    Hout, Wout = H - kh + 1, W - kw + 1
    P = Hout * Wout
    HW = H * W
    P_pad = pl.cdiv(P, tp) * tp          # lane-dense output width (multiple of 128)
    n_pt = P_pad // tp

    # Hoisted weight contraction over Cin (exact; mask commutes with it).
    w_r = jnp.transpose(weight.reshape(Cout, Cin, K), (2, 0, 1))          # (K,Cout,Cin)
    x_flat = x.reshape(B, Cin, HW).astype(jnp.float32)
    wx = jnp.einsum('koc,bcq->bokq', w_r.astype(jnp.float32), x_flat)     # (B,Cout,K,HW)
    wx = wx.reshape(B, Cout, K * HW).astype(jnp.bfloat16)

    s = build_sampling_matrix(offset, kh, kw, H, W, Hout, Wout, P_pad)    # (B,K,HW,P_pad) bf16

    mask_p = jnp.pad(mask.reshape(B, K, P), ((0, 0), (0, 0), (0, P_pad - P)))
    mask_p = mask_p.astype(jnp.bfloat16)                                  # (B,K,P_pad)

    out_flat = pl.pallas_call(
        deform_conv_kernel,
        out_shape=jax.ShapeDtypeStruct((B, Cout, P_pad), jnp.float32),
        grid_spec=pltpu.PrefetchScalarGridSpec(
            num_scalar_prefetch=0,
            grid=(B, n_pt),
            in_specs=[
                pl.BlockSpec((None, Cout, K * HW), lambda b, pt: (b, 0, 0)),   # wx (resident per b)
                pl.BlockSpec((None, K, HW, tp),    lambda b, pt: (b, 0, 0, pt)),
                pl.BlockSpec((None, K, tp),        lambda b, pt: (b, 0, pt)),
            ],
            out_specs=pl.BlockSpec((None, Cout, tp), lambda b, pt: (b, 0, pt)),
        ),
        compiler_params=pltpu.CompilerParams(
            dimension_semantics=("parallel", "parallel"),
            vmem_limit_bytes=32 * 1024 * 1024,
        ),
    )(wx, s, mask_p)

    out = out_flat[:, :, :P].reshape(B, Cout, Hout, Wout).astype(x.dtype)
    # F.pad(x, (1,1,1,1), 'constant', 0)  -- glue
    return jnp.pad(out, ((0, 0), (0, 0), (1, 1), (1, 1)))


# ----------------------------------------------------------------------------
# Pure-JAX reference (gather-based bilinear deform_conv2d) for validation.
# ----------------------------------------------------------------------------
def deform_conv_ref(x, weight, offset, mask, kh, kw):
    B, Cin, H, W = x.shape
    Cout = weight.shape[0]
    K = kh * kw
    Hout, Wout = H - kh + 1, W - kw + 1

    off = offset.reshape(B, K, 2, Hout, Wout)
    dy, dx = off[:, :, 0], off[:, :, 1]
    ki = (jnp.arange(K) // kw).astype(jnp.float32)
    kj = (jnp.arange(K) % kw).astype(jnp.float32)
    ys = ki[None, :, None, None] + jnp.arange(Hout, dtype=jnp.float32)[None, None, :, None] + dy
    xs = kj[None, :, None, None] + jnp.arange(Wout, dtype=jnp.float32)[None, None, None, :] + dx

    def bilinear(img, y, x_):
        in_range = (y > -1) & (y < H) & (x_ > -1) & (x_ < W)
        y0 = jnp.floor(y)
        x0 = jnp.floor(x_)
        ly, lx = y - y0, x_ - x0
        vals = jnp.zeros((Cin,) + y.shape, jnp.float32)
        for yc, xc, wc in [(y0, x0, (1 - ly) * (1 - lx)), (y0, x0 + 1, (1 - ly) * lx),
                           (y0 + 1, x0, ly * (1 - lx)), (y0 + 1, x0 + 1, ly * lx)]:
            valid = (yc >= 0) & (yc <= H - 1) & (xc >= 0) & (xc <= W - 1)
            yi = jnp.clip(yc, 0, H - 1).astype(jnp.int32)
            xi = jnp.clip(xc, 0, W - 1).astype(jnp.int32)
            v = img[:, yi, xi]
            vals = vals + jnp.where(valid & in_range, wc, 0.0)[None] * v
        return vals

    sampled = jax.vmap(bilinear)(x, ys, xs)   # (B, Cin, K, Hout, Wout)
    out = jnp.einsum('oik,bikhw,bkhw->bohw',
                     weight.reshape(Cout, Cin, K), sampled, mask)
    return jnp.pad(out, ((0, 0), (0, 0), (1, 1), (1, 1)))


if __name__ == "__main__":
    # Small shapes consistent with the module's forward signature.
    batch_size, channel_in, channel_out = 2, 4, 8
    kh = kw = 3
    H = W = 16
    size_1 = size_2 = H - kh + 1   # deform_conv2d output size with padding=0, stride=1

    key = jax.random.PRNGKey(0)
    k_x, k_w, k_off, k_m = jax.random.split(key, 4)

    x = jax.random.uniform(k_x, (batch_size, channel_in, H, W), jnp.float32)
    # The module builds these with torch.rand inside forward; init deterministically here.
    weight = jax.random.uniform(k_w, (channel_out, channel_in, kh, kw), jnp.float32)
    offset = jax.random.uniform(k_off, (batch_size, 2 * kh * kw, size_1, size_2), jnp.float32)
    mask = jax.random.uniform(k_m, (batch_size, kh * kw, size_1, size_2), jnp.float32)

    out = jax.jit(deformable_conv_block_forward, static_argnums=(4, 5))(
        x, weight, offset, mask, kh, kw)
    out = jax.block_until_ready(out)

    ref = deform_conv_ref(x, weight, offset, mask, kh, kw)
    assert out.shape == (batch_size, channel_out, size_1 + 2, size_2 + 2)
    # bf16 MXU operands with fp32 accumulation -> ~1% tolerance.
    assert jnp.allclose(out, ref, atol=2e-2, rtol=2e-2), float(jnp.max(jnp.abs(out - ref)))

    print("KERNEL_OK")
</pallas_src>

<mosaic_0001>
module attributes {stable_mosaic.version = 11 : i64} {
  func.func @deform_conv_kernel(%arg0: i32, %arg1: i32, %arg2: memref<1x8x2304xbf16, #tpu.memory_space<vmem>>, %arg3: memref<1x9x256x128xbf16, #tpu.memory_space<vmem>>, %arg4: memref<1x9x128xbf16, #tpu.memory_space<vmem>>, %arg5: memref<1x8x128xf32, #tpu.memory_space<vmem>>) attributes {dimension_semantics = [#tpu.dimension_semantics<parallel>, #tpu.dimension_semantics<parallel>], iteration_bounds = array<i64: 2, 2>, scalar_prefetch = 0 : i64, scratch_operands = 0 : i64, tpu.core_type = #tpu.core_type<tc>, window_params = [{transform_indices = @transform_0, window_bounds = array<i64: 1, 8, 2304>}, {transform_indices = @transform_1, window_bounds = array<i64: 1, 9, 256, 128>}, {transform_indices = @transform_2, window_bounds = array<i64: 1, 9, 128>}, {transform_indices = @transform_3, window_bounds = array<i64: 1, 8, 128>}]} {
    %c0 = arith.constant 0 : index
    %c0_0 = arith.constant 0 : index
    %c0_1 = arith.constant 0 : index
    %c0_2 = arith.constant 0 : index
    %0 = vector.load %arg3[%c0, %c0_0, %c0_1, %c0_2] : memref<1x9x256x128xbf16, #tpu.memory_space<vmem>>, vector<1x9x256x128xbf16>
    %1 = vector.shape_cast %0 : vector<1x9x256x128xbf16> to vector<9x256x128xbf16>
    %c0_3 = arith.constant 0 : index
    %c0_4 = arith.constant 0 : index
    %c0_5 = arith.constant 0 : index
    %2 = vector.load %arg4[%c0_3, %c0_4, %c0_5] : memref<1x9x128xbf16, #tpu.memory_space<vmem>>, vector<1x9x128xbf16>
    %3 = vector.shape_cast %2 : vector<1x9x128xbf16> to vector<9x128xbf16>
    %4 = vector.shape_cast %3 : vector<9x128xbf16> to vector<9x1x128xbf16>
    %5 = vector.broadcast %4 : vector<9x1x128xbf16> to vector<9x256x128xbf16>
    %6 = arith.mulf %1, %5 : vector<9x256x128xbf16>
    %7 = vector.shape_cast %6 : vector<9x256x128xbf16> to vector<2304x128xbf16>
    %c0_6 = arith.constant 0 : index
    %c0_7 = arith.constant 0 : index
    %c0_8 = arith.constant 0 : index
    %8 = vector.load %arg2[%c0_6, %c0_7, %c0_8] : memref<1x8x2304xbf16, #tpu.memory_space<vmem>>, vector<1x8x2304xbf16>
    %9 = vector.shape_cast %8 : vector<1x8x2304xbf16> to vector<8x2304xbf16>
    %cst = arith.constant dense<0.000000e+00> : vector<8x128xf32>
    %10 = tpu.matmul %9, %7, %cst {dimension_numbers = #tpu.dot_dimension_numbers<[1], [0], [0], [1], [0, 0, 1, 1], [], []>} : vector<8x2304xbf16>, vector<2304x128xbf16>, vector<8x128xf32> -> vector<8x128xf32>
    %c0_9 = arith.constant 0 : index
    %c0_10 = arith.constant 0 : index
    %c0_11 = arith.constant 0 : index
    %11 = vector.load %arg5[%c0_9, %c0_10, %c0_11] : memref<1x8x128xf32, #tpu.memory_space<vmem>>, vector<1x8x128xf32>
    %12 = vector.shape_cast %11 : vector<1x8x128xf32> to vector<8x128xf32>
    %13 = vector.shape_cast %10 : vector<8x128xf32> to vector<1x8x128xf32>
    tpu.vector_store %arg5[%c0_9, %c0_10, %c0_11], %13 {strides = array<i32>} : memref<1x8x128xf32, #tpu.memory_space<vmem>>, vector<1x8x128xf32>,
    return
  }
  func.func @transform_0(%arg0: i32, %arg1: i32) -> (i32, i32, i32) {
    %c0_i32 = arith.constant 0 : i32
    %c0_i32_0 = arith.constant 0 : i32
    %c0_i32_1 = arith.constant 0 : i32
    return %arg0, %c0_i32, %c0_i32_0 : i32, i32, i32
  }
  func.func @transform_1(%arg0: i32, %arg1: i32) -> (i32, i32, i32, i32) {
    %c0_i32 = arith.constant 0 : i32
    %c0_i32_0 = arith.constant 0 : i32
    %c0_i32_1 = arith.constant 0 : i32
    return %arg0, %c0_i32, %c0_i32_0, %arg1 : i32, i32, i32, i32
  }
  func.func @transform_2(%arg0: i32, %arg1: i32) -> (i32, i32, i32) {
    %c0_i32 = arith.constant 0 : i32
    %c0_i32_0 = arith.constant 0 : i32
    return %arg0, %c0_i32, %arg1 : i32, i32, i32
  }
  func.func @transform_3(%arg0: i32, %arg1: i32) -> (i32, i32, i32) {
    %c0_i32 = arith.constant 0 : i32
    %c0_i32_0 = arith.constant 0 : i32
    return %arg0, %c0_i32, %arg1 : i32, i32, i32
  }
}

</mosaic_0001>

<llo_original>
// kernel: deformable_conv_block_forward.1
$region0: #{deformable_conv_block_forward.1}
  #allocation0 [shape = 'u32[]', space=smem, size = 0x4, offset = 0x4, fixed_abs, tag = 'smem constant byte address 0x4 - core index']
  #allocation1 [shape = 'u32[144,128]{1,0:T(1,128)}', space=vmem, size = 0x12000, scoped, tag = 'internal scratch']
  %s0 = inlined_call_operand.vmem [shape: bf16[2,8,2304], index: 0, kind: input, shape index: {}]
  %s1 = inlined_call_operand.vmem [shape: bf16[2,9,256,256], index: 1, kind: input, shape index: {}]
  %s2 = inlined_call_operand.vmem [shape: bf16[2,9,256], index: 2, kind: input, shape index: {}]
  %s3 = inlined_call_operand.vmem [shape: f32[2,8,256], index: 3, kind: output, shape index: {}]
  %s4 = sld [smem:[#allocation0]]
  $region127: #{deformable_conv_block_forward.1} parent=0
    _
  %s6 = ssub.s32 1, %s4
  %s7 = scalar_select 0, %s6, %s4
  $region1: #{deformable_conv_block_forward.1} parent=0
    #allocation2 [shape = 'u8[1179648]{0}', space=vmem, size = 0x120000, scoped, tag = 'input window, operand 1']
    #allocation3 [shape = 'u8[8192]{0}', space=vmem, size = 0x2000, scoped, tag = 'input window, operand 2']
    loop: start=0, step=1, limit=6
    $region2: #{deformable_conv_block_forward.1} parent=1 // loop_pre_header
      _
    $region3: #{deformable_conv_block_forward.1} parent=1 // loop_header
      %s9 = sphi 0, %s13
      %p10 = scmp.ge.s32.totalorder %s9, 6
      %s16 = sphi 0, %s28
      %s17 = sphi 0, %s24
      %s18 = sphi 0, %s16
      %s19 = sphi 0, %s17
      %s20 = sphi 0, %s18
      %s21 = sphi 0, %s19
      %s31 = sphi 0, %s33
      %s34 = sphi 0, %s31
      %s35 = sphi 0, %s34
      %s51 = sphi 0, %s35
      %s59 = sphi 0, %s61
      %s62 = sphi 0, %s59
      %s63 = sphi 0, %s62
      %s79 = sphi 0, %s63
      %s87 = sphi 0, %s89
      %s90 = sphi 0, %s87
      %s91 = sphi 0, %s90
      %s107 = sphi 0, %s91
      %s115 = sphi 0, %s117
      %s118 = sphi 0, %s115
      %s119 = sphi 0, %s118
      %s135 = sphi 0, %s119
    $region4: #{deformable_conv_block_forward.1} parent=1 // loop_header_branch
      %12 = sbr.rel (%p10) target = $region8
    $region5: #{deformable_conv_block_forward.1} parent=1 // loop_body
      %s14 = ssub.s32 %s9, 1
      %s15 = ssub.s32 %s9, 2
      %s22 = sadd.s32 1, %s17
      %p23 = scmp.ge.s32.totalorder %s22, 2
      %s24 = scalar_select %p23, 0, %s22
      %s25 = sadd.s32 1, %s16
      %s26 = scalar_select %p23, %s25, %s16
      %p27 = scmp.ge.s32.totalorder %s26, 2
      %s28 = scalar_select %p27, 0, %s26
      %s29 = ssub.s32 %s16, %s28
      %p30 = scmp.eq.s32.totalorder %s29, 0
      %s32 = sadd.s32 %s31, 1
      %s33 = scalar_select %p30, %s31, %s32
      %p36 = pneg %p30
      %p37 = scmp.eq.s32.totalorder %s9, 3
      %p38 = por %p36, %p37
      %p39 = scmp.ne.s32.totalorder %s31, %s34
      %p40 = scmp.eq.s32.totalorder %s9, 0
      %p41 = por %p39, %p40
      %p42 = scmp.ne.s32.totalorder %s31, %s34
      %p43 = scmp.eq.s32.totalorder %s14, 3
      %p44 = por %p42, %p43
      %p45 = scmp.ne.s32.totalorder %s34, %s35
      %p46 = scmp.eq.s32.totalorder %s14, 0
      %p47 = por %p45, %p46
      %p48 = scmp.ne.s32.totalorder %s34, %s35
      %p49 = scmp.eq.s32.totalorder %s15, 3
      %p50 = por %p48, %p49
      %p52 = scmp.ne.s32.totalorder %s35, %s51
      %p53 = scmp.eq.s32.totalorder %s15, 0
      %p54 = por %p52, %p53
      %s55 = ssub.s32 %s16, %s28
      %s56 = ssub.s32 %s17, %s24
      %s57 = sor.u32 %s55, %s56
      %p58 = scmp.eq.s32.totalorder %s57, 0
      %s60 = sadd.s32 %s59, 1
      %s61 = scalar_select %p58, %s59, %s60
      %p64 = pneg %p58
      %p65 = scmp.eq.s32.totalorder %s9, 3
      %p66 = por %p64, %p65
      %p67 = scmp.ne.s32.totalorder %s59, %s62
      %p68 = scmp.eq.s32.totalorder %s9, 0
      %p69 = por %p67, %p68
      %p70 = scmp.ne.s32.totalorder %s59, %s62
      %p71 = scmp.eq.s32.totalorder %s14, 3
      %p72 = por %p70, %p71
      %p73 = scmp.ne.s32.totalorder %s62, %s63
      %p74 = scmp.eq.s32.totalorder %s14, 0
      %p75 = por %p73, %p74
      %p76 = scmp.ne.s32.totalorder %s62, %s63
      %p77 = scmp.eq.s32.totalorder %s15, 3
      %p78 = por %p76, %p77
      %p80 = scmp.ne.s32.totalorder %s63, %s79
      %p81 = scmp.eq.s32.totalorder %s15, 0
      %p82 = por %p80, %p81
      %s83 = ssub.s32 %s16, %s28
      %s84 = ssub.s32 %s17, %s24
      %s85 = sor.u32 %s83, %s84
      %p86 = scmp.eq.s32.totalorder %s85, 0
      %s88 = sadd.s32 %s87, 1
      %s89 = scalar_select %p86, %s87, %s88
      %p92 = pneg %p86
      %p93 = scmp.eq.s32.totalorder %s9, 3
      %p94 = por %p92, %p93
      %p95 = scmp.ne.s32.totalorder %s87, %s90
      %p96 = scmp.eq.s32.totalorder %s9, 0
      %p97 = por %p95, %p96
      %p98 = scmp.ne.s32.totalorder %s87, %s90
      %p99 = scmp.eq.s32.totalorder %s14, 3
      %p100 = por %p98, %p99
      %p101 = scmp.ne.s32.totalorder %s90, %s91
      %p102 = scmp.eq.s32.totalorder %s14, 0
      %p103 = por %p101, %p102
      %p104 = scmp.ne.s32.totalorder %s90, %s91
      %p105 = scmp.eq.s32.totalorder %s15, 3
      %p106 = por %p104, %p105
      %p108 = scmp.ne.s32.totalorder %s91, %s107
      %p109 = scmp.eq.s32.totalorder %s15, 0
      %p110 = por %p108, %p109
      %s111 = ssub.s32 %s16, %s28
      %s112 = ssub.s32 %s17, %s24
      %s113 = sor.u32 %s111, %s112
      %p114 = scmp.eq.s32.totalorder %s113, 0
      %s116 = sadd.s32 %s115, 1
      %s117 = scalar_select %p114, %s115, %s116
      %p120 = pneg %p114
      %p121 = scmp.eq.s32.totalorder %s9, 3
      %p122 = por %p120, %p121
      %p123 = scmp.ne.s32.totalorder %s115, %s118
      %p124 = scmp.eq.s32.totalorder %s9, 0
      %p125 = por %p123, %p124
      %p126 = scmp.ne.s32.totalorder %s115, %s118
      %p127 = scmp.eq.s32.totalorder %s14, 3
      %p128 = por %p126, %p127
      %p129 = scmp.ne.s32.totalorder %s118, %s119
      %p130 = scmp.eq.s32.totalorder %s14, 0
      %p131 = por %p129, %p130
      %p132 = scmp.ne.s32.totalorder %s118, %s119
      %p133 = scmp.eq.s32.totalorder %s15, 3
      %p134 = por %p132, %p133
      %p136 = scmp.ne.s32.totalorder %s119, %s135
      %p137 = scmp.eq.s32.totalorder %s15, 0
      %p138 = por %p136, %p137
      %p139 = scmp.le.s32.totalorder 1, %s9
      %p140 = scmp.lt.s32.totalorder %s9, 5
      %p141 = pnand %p139, %p140
      %p142 = pneg %p141
      // Predicated region
      $region9: #{deformable_conv_block_forward.1} parent=5 // pred_check
        _
      $region10: #{deformable_conv_block_forward.1} parent=5 // pred_check_branch
        %144 = sbr.rel (%p141) target = $region12
      $region11: #{deformable_conv_block_forward.1} parent=5 // pred_region
        %s145 = ssub.s32 %s9, 1
      $region12: #{deformable_conv_block_forward.1} parent=5 // pred_fallthru
        _
      %p146 = scmp.lt.s32.totalorder %s9, 4
      // Predicated region
      $region13: #{deformable_conv_block_forward.1} parent=5 // pred_check
        %p147 = pneg %p146
      $region14: #{deformable_conv_block_forward.1} parent=5 // pred_check_branch
        %149 = sbr.rel (%p147) target = $region16
      $region15: #{deformable_conv_block_forward.1} parent=5 // pred_region
        // Predicated region
        $region17: #{deformable_conv_block_forward.1} parent=15 // pred_check
          %p150 = pneg %p41
        $region18: #{deformable_conv_block_forward.1} parent=15 // pred_check_branch
          %152 = sbr.rel (%p150) target = $region20
        $region19: #{deformable_conv_block_forward.1} parent=15 // pred_region
          %p153 = scmp.lt.s32.totalorder %s16, 1
          %s154 = scalar_select %p153, %s16, 1
          %s155 = smul.addr %s154, 18
          %s156 = smul.addr %s155, 4
          %s157 = scalar_lea.vmem %s0, %s156
        $region20: #{deformable_conv_block_forward.1} parent=15 // pred_fallthru
          _
        // Predicated region
        $region21: #{deformable_conv_block_forward.1} parent=15 // pred_check
          %p158 = pneg %p69
        $region22: #{deformable_conv_block_forward.1} parent=15 // pred_check_branch
          %160 = sbr.rel (%p158) target = $region24
        $region23: #{deformable_conv_block_forward.1} parent=15 // pred_region
          %s161 = sand.u32 %s59, 1
          %s162 = sand.u32 %s59, 1
          %s163 = smul.addr %s162, 1152
          %s164 = scalar_lea.vmem [#allocation2], %s163
          %s165 = smul.addr %s16, 576
          %s166 = sadd.s32 %s17, %s165
          %s167 = smul.addr %s166, 4
          %s168 = scalar_lea.vmem %s1, %s167
          // Predicated region
          $region25: #{deformable_conv_block_forward.1} parent=23 // pred_check
            _
          $region26: #{deformable_conv_block_forward.1} parent=23 // pred_check_branch
            %170 = sbr.rel (0) target = $region28
          $region27: #{deformable_conv_block_forward.1} parent=23 // pred_region
            // Predicated region
            $region29: #{deformable_conv_block_forward.1} parent=27 // pred_check
              _
            $region30: #{deformable_conv_block_forward.1} parent=27 // pred_check_branch
              %172 = sbr.rel target = $region32
            $region31: #{deformable_conv_block_forward.1} parent=27 // pred_region
              // Predicated region
              $region44: #{deformable_conv_block_forward.1} parent=31 // pred_check
                _
              $region45: #{deformable_conv_block_forward.1} parent=31 // pred_check_branch
                %761 = sbr.rel (0) target = $region47
              $region46: #{deformable_conv_block_forward.1} parent=31 // pred_region
                loop: start=0, step=1, limit=1
                $region48: #{deformable_conv_block_forward.1} parent=46 // loop_pre_header
                  _
                $region49: #{deformable_conv_block_forward.1} parent=46 // loop_header
                  %s763 = sphi 0, %s767
                  %p764 = scmp.ge.s32.totalorder %s763, 1
                  %s768 = sphi %s168, %s168
                  %s769 = sphi %s164, %s164
                $region50: #{deformable_conv_block_forward.1} parent=46 // loop_header_branch
                  %766 = sbr.rel (%p764) target = $region54
                $region51: #{deformable_conv_block_forward.1} parent=46 // loop_body
                  _
                $region52: #{deformable_conv_block_forward.1} parent=46 // loop_footer
                  %s767 = sadd.s32 1, %s763
                $region53: #{deformable_conv_block_forward.1} parent=46 // loop_footer_branch
                  %762 = sbr.rel target = $region49
                $region54: #{deformable_conv_block_forward.1} parent=46 // loop_exit
                  _
                loop: start=0, step=1, limit=1
                $region55: #{deformable_conv_block_forward.1} parent=46 // loop_pre_header
                  _
                $region56: #{deformable_conv_block_forward.1} parent=46 // loop_header
                  %s772 = sphi 0, %s776
                  %p773 = scmp.ge.s32.totalorder %s772, 1
                  %s777 = sphi %s168, %s168
                  %s778 = sphi %s164, %s164
                $region57: #{deformable_conv_block_forward.1} parent=46 // loop_header_branch
                  %775 = sbr.rel (%p773) target = $region61
                $region58: #{deformable_conv_block_forward.1} parent=46 // loop_body
                  %v779 = vld [vmem:[%s777] sm:$0xf]
                  %780 = vst [vmem:[%s778] sm:$0xf] %v779
                  %v781 = vld [vmem:[%s777 + $0x8] sm:$0xf]
                  %782 = vst [vmem:[%s778 + $0x4] sm:$0xf] %v781
                  %v783 = vld [vmem:[%s777 + $0x10] sm:$0xf]
                  %784 = vst [vmem:[%s778 + $0x8] sm:$0xf] %v783
                  %v785 = vld [vmem:[%s777 + $0x18] sm:$0xf]
                  %786 = vst [vmem:[%s778 + $0xc] sm:$0xf] %v785
                  %v787 = vld [vmem:[%s777 + $0x20] sm:$0xf]
                  %788 = vst [vmem:[%s778 + $0x10] sm:$0xf] %v787
                  %v789 = vld [vmem:[%s777 + $0x28] sm:$0xf]
                  %790 = vst [vmem:[%s778 + $0x14] sm:$0xf] %v789
                  %v791 = vld [vmem:[%s777 + $0x30] sm:$0xf]
                  %792 = vst [vmem:[%s778 + $0x18] sm:$0xf] %v791
                  %v793 = vld [vmem:[%s777 + $0x38] sm:$0xf]
                  %794 = vst [vmem:[%s778 + $0x1c] sm:$0xf] %v793
                  %v795 = vld [vmem:[%s777 + $0x40] sm:$0xf]
                  %796 = vst [vmem:[%s778 + $0x20] sm:$0xf] %v795
                  %v797 = vld [vmem:[%s777 + $0x48] sm:$0xf]
                  %798 = vst [vmem:[%s778 + $0x24] sm:$0xf] %v797
                  %v799 = vld [vmem:[%s777 + $0x50] sm:$0xf]
                  %800 = vst [vmem:[%s778 + $0x28] sm:$0xf] %v799
                  %v801 = vld [vmem:[%s777 + $0x58] sm:$0xf]
                  %802 = vst [vmem:[%s778 + $0x2c] sm:$0xf] %v801
                  %v803 = vld [vmem:[%s777 + $0x60] sm:$0xf]
                  %804 = vst [vmem:[%s778 + $0x30] sm:$0xf] %v803
                  %v805 = vld [vmem:[%s777 + $0x68] sm:$0xf]
                  %806 = vst [vmem:[%s778 + $0x34] sm:$0xf] %v805
                  %v807 = vld [vmem:[%s777 + $0x70] sm:$0xf]
                  %808 = vst [vmem:[%s778 + $0x38] sm:$0xf] %v807
                  %v809 = vld [vmem:[%s777 + $0x78] sm:$0xf]
                  %810 = vst [vmem:[%s778 + $0x3c] sm:$0xf] %v809
                  %v811 = vld [vmem:[%s777 + $0x80] sm:$0xf]
                  %812 = vst [vmem:[%s778 + $0x40] sm:$0xf] %v811
                  %v813 = vld [vmem:[%s777 + $0x88] sm:$0xf]
                  %814 = vst [vmem:[%s778 + $0x44] sm:$0xf] %v813
                  %v815 = vld [vmem:[%s777 + $0x90] sm:$0xf]
                  %816 = vst [vmem:[%s778 + $0x48] sm:$0xf] %v815
                  %v817 = vld [vmem:[%s777 + $0x98] sm:$0xf]
                  %818 = vst [vmem:[%s778 + $0x4c] sm:$0xf] %v817
                  %v819 = vld [vmem:[%s777 + $0xa0] sm:$0xf]
                  %820 = vst [vmem:[%s778 + $0x50] sm:$0xf] %v819
                  %v821 = vld [vmem:[%s777 + $0xa8] sm:$0xf]
                  %822 = vst [vmem:[%s778 + $0x54] sm:$0xf] %v821
                  %v823 = vld [vmem:[%s777 + $0xb0] sm:$0xf]
                  %824 = vst [vmem:[%s778 + $0x58] sm:$0xf] %v823
                  %v825 = vld [vmem:[%s777 + $0xb8] sm:$0xf]
                  %826 = vst [vmem:[%s778 + $0x5c] sm:$0xf] %v825
                  %v827 = vld [vmem:[%s777 + $0xc0] sm:$0xf]
                  %828 = vst [vmem:[%s778 + $0x60] sm:$0xf] %v827
                  %v829 = vld [vmem:[%s777 + $0xc8] sm:$0xf]
                  %830 = vst [vmem:[%s778 + $0x64] sm:$0xf] %v829
                  %v831 = vld [vmem:[%s777 + $0xd0] sm:$0xf]
                  %832 = vst [vmem:[%s778 + $0x68] sm:$0xf] %v831
                  %v833 = vld [vmem:[%s777 + $0xd8] sm:$0xf]
                  %834 = vst [vmem:[%s778 + $0x6c] sm:$0xf] %v833
                  %v835 = vld [vmem:[%s777 + $0xe0] sm:$0xf]
                  %836 = vst [vmem:[%s778 + $0x70] sm:$0xf] %v835
                  %v837 = vld [vmem:[%s777 + $0xe8] sm:$0xf]
                  %838 = vst [vmem:[%s778 + $0x74] sm:$0xf] %v837
                  %v839 = vld [vmem:[%s777 + $0xf0] sm:$0xf]
                  %840 = vst [vmem:[%s778 + $0x78] sm:$0xf] %v839
                  %v841 = vld [vmem:[%s777 + $0xf8] sm:$0xf]
                  %842 = vst [vmem:[%s778 + $0x7c] sm:$0xf] %v841
                  %v843 = vld [vmem:[%s777 + $0x100] sm:$0xf]
                  %844 = vst [vmem:[%s778 + $0x80] sm:$0xf] %v843
                  %v845 = vld [vmem:[%s777 + $0x108] sm:$0xf]
                  %846 = vst [vmem:[%s778 + $0x84] sm:$0xf] %v845
                  %v847 = vld [vmem:[%s777 + $0x110] sm:$0xf]
                  %848 = vst [vmem:[%s778 + $0x88] sm:$0xf] %v847
                  %v849 = vld [vmem:[%s777 + $0x118] sm:$0xf]
                  %850 = vst [vmem:[%s778 + $0x8c] sm:$0xf] %v849
                  %v851 = vld [vmem:[%s777 + $0x120] sm:$0xf]
                  %852 = vst [vmem:[%s778 + $0x90] sm:$0xf] %v851
                  %v853 = vld [vmem:[%s777 + $0x128] sm:$0xf]
                  %854 = vst [vmem:[%s778 + $0x94] sm:$0xf] %v853
                  %v855 = vld [vmem:[%s777 + $0x130] sm:$0xf]
                  %856 = vst [vmem:[%s778 + $0x98] sm:$0xf] %v855
                  %v857 = vld [vmem:[%s777 + $0x138] sm:$0xf]
                  %858 = vst [vmem:[%s778 + $0x9c] sm:$0xf] %v857
                  %v859 = vld [vmem:[%s777 + $0x140] sm:$0xf]
                  %860 = vst [vmem:[%s778 + $0xa0] sm:$0xf] %v859
                  %v861 = vld [vmem:[%s777 + $0x148] sm:$0xf]
                  %862 = vst [vmem:[%s778 + $0xa4] sm:$0xf] %v861
                  %v863 = vld [vmem:[%s777 + $0x150] sm:$0xf]
                  %864 = vst [vmem:[%s778 + $0xa8] sm:$0xf] %v863
                  %v865 = vld [vmem:[%s777 + $0x158] sm:$0xf]
                  %866 = vst [vmem:[%s778 + $0xac] sm:$0xf] %v865
                  %v867 = vld [vmem:[%s777 + $0x160] sm:$0xf]
                  %868 = vst [vmem:[%s778 + $0xb0] sm:$0xf] %v867
                  %v869 = vld [vmem:[%s777 + $0x168] sm:$0xf]
                  %870 = vst [vmem:[%s778 + $0xb4] sm:$0xf] %v869
                  %v871 = vld [vmem:[%s777 + $0x170] sm:$0xf]
                  %872 = vst [vmem:[%s778 + $0xb8] sm:$0xf] %v871
                  %v873 = vld [vmem:[%s777 + $0x178] sm:$0xf]
                  %874 = vst [vmem:[%s778 + $0xbc] sm:$0xf] %v873
                  %v875 = vld [vmem:[%s777 + $0x180] sm:$0xf]
                  %876 = vst [vmem:[%s778 + $0xc0] sm:$0xf] %v875
                  %v877 = vld [vmem:[%s777 + $0x188] sm:$0xf]
                  %878 = vst [vmem:[%s778 + $0xc4] sm:$0xf] %v877
                  %v879 = vld [vmem:[%s777 + $0x190] sm:$0xf]
                  %880 = vst [vmem:[%s778 + $0xc8] sm:$0xf] %v879
                  %v881 = vld [vmem:[%s777 + $0x198] sm:$0xf]
                  %882 = vst [vmem:[%s778 + $0xcc] sm:$0xf] %v881
                  %v883 = vld [vmem:[%s777 + $0x1a0] sm:$0xf]
                  %884 = vst [vmem:[%s778 + $0xd0] sm:$0xf] %v883
                  %v885 = vld [vmem:[%s777 + $0x1a8] sm:$0xf]
                  %886 = vst [vmem:[%s778 + $0xd4] sm:$0xf] %v885
                  %v887 = vld [vmem:[%s777 + $0x1b0] sm:$0xf]
                  %888 = vst [vmem:[%s778 + $0xd8] sm:$0xf] %v887
                  %v889 = vld [vmem:[%s777 + $0x1b8] sm:$0xf]
                  %890 = vst [vmem:[%s778 + $0xdc] sm:$0xf] %v889
                  %v891 = vld [vmem:[%s777 + $0x1c0] sm:$0xf]
                  %892 = vst [vmem:[%s778 + $0xe0] sm:$0xf] %v891
                  %v893 = vld [vmem:[%s777 + $0x1c8] sm:$0xf]
                  %894 = vst [vmem:[%s778 + $0xe4] sm:$0xf] %v893
                  %v895 = vld [vmem:[%s777 + $0x1d0] sm:$0xf]
                  %896 = vst [vmem:[%s778 + $0xe8] sm:$0xf] %v895
                  %v897 = vld [vmem:[%s777 + $0x1d8] sm:$0xf]
                  %898 = vst [vmem:[%s778 + $0xec] sm:$0xf] %v897
                  %v899 = vld [vmem:[%s777 + $0x1e0] sm:$0xf]
                  %900 = vst [vmem:[%s778 + $0xf0] sm:$0xf] %v899
                  %v901 = vld [vmem:[%s777 + $0x1e8] sm:$0xf]
                  %902 = vst [vmem:[%s778 + $0xf4] sm:$0xf] %v901
                  %v903 = vld [vmem:[%s777 + $0x1f0] sm:$0xf]
                  %904 = vst [vmem:[%s778 + $0xf8] sm:$0xf] %v903
                  %v905 = vld [vmem:[%s777 + $0x1f8] sm:$0xf]
                  %906 = vst [vmem:[%s778 + $0xfc] sm:$0xf] %v905
                  %v907 = vld [vmem:[%s777 + $0x200] sm:$0xf]
                  %908 = vst [vmem:[%s778 + $0x100] sm:$0xf] %v907
                  %v909 = vld [vmem:[%s777 + $0x208] sm:$0xf]
                  %910 = vst [vmem:[%s778 + $0x104] sm:$0xf] %v909
                  %v911 = vld [vmem:[%s777 + $0x210] sm:$0xf]
                  %912 = vst [vmem:[%s778 + $0x108] sm:$0xf] %v911
                  %v913 = vld [vmem:[%s777 + $0x218] sm:$0xf]
                  %914 = vst [vmem:[%s778 + $0x10c] sm:$0xf] %v913
                  %v915 = vld [vmem:[%s777 + $0x220] sm:$0xf]
                  %916 = vst [vmem:[%s778 + $0x110] sm:$0xf] %v915
                  %v917 = vld [vmem:[%s777 + $0x228] sm:$0xf]
                  %918 = vst [vmem:[%s778 + $0x114] sm:$0xf] %v917
                  %v919 = vld [vmem:[%s777 + $0x230] sm:$0xf]
                  %920 = vst [vmem:[%s778 + $0x118] sm:$0xf] %v919
                  %v921 = vld [vmem:[%s777 + $0x238] sm:$0xf]
                  %922 = vst [vmem:[%s778 + $0x11c] sm:$0xf] %v921
                  %v923 = vld [vmem:[%s777 + $0x240] sm:$0xf]
                  %924 = vst [vmem:[%s778 + $0x120] sm:$0xf] %v923
                  %v925 = vld [vmem:[%s777 + $0x248] sm:$0xf]
                  %926 = vst [vmem:[%s778 + $0x124] sm:$0xf] %v925
                  %v927 = vld [vmem:[%s777 + $0x250] sm:$0xf]
                  %928 = vst [vmem:[%s778 + $0x128] sm:$0xf] %v927
                  %v929 = vld [vmem:[%s777 + $0x258] sm:$0xf]
                  %930 = vst [vmem:[%s778 + $0x12c] sm:$0xf] %v929
                  %v931 = vld [vmem:[%s777 + $0x260] sm:$0xf]
                  %932 = vst [vmem:[%s778 + $0x130] sm:$0xf] %v931
                  %v933 = vld [vmem:[%s777 + $0x268] sm:$0xf]
                  %934 = vst [vmem:[%s778 + $0x134] sm:$0xf] %v933
                  %v935 = vld [vmem:[%s777 + $0x270] sm:$0xf]
                  %936 = vst [vmem:[%s778 + $0x138] sm:$0xf] %v935
                  %v937 = vld [vmem:[%s777 + $0x278] sm:$0xf]
                  %938 = vst [vmem:[%s778 + $0x13c] sm:$0xf] %v937
                  %v939 = vld [vmem:[%s777 + $0x280] sm:$0xf]
                  %940 = vst [vmem:[%s778 + $0x140] sm:$0xf] %v939
                  %v941 = vld [vmem:[%s777 + $0x288] sm:$0xf]
                  %942 = vst [vmem:[%s778 + $0x144] sm:$0xf] %v941
                  %v943 = vld [vmem:[%s777 + $0x290] sm:$0xf]
                  %944 = vst [vmem:[%s778 + $0x148] sm:$0xf] %v943
                  %v945 = vld [vmem:[%s777 + $0x298] sm:$0xf]
                  %946 = vst [vmem:[%s778 + $0x14c] sm:$0xf] %v945
                  %v947 = vld [vmem:[%s777 + $0x2a0] sm:$0xf]
                  %948 = vst [vmem:[%s778 + $0x150] sm:$0xf] %v947
                  %v949 = vld [vmem:[%s777 + $0x2a8] sm:$0xf]
                  %950 = vst [vmem:[%s778 + $0x154] sm:$0xf] %v949
                  %v951 = vld [vmem:[%s777 + $0x2b0] sm:$0xf]
                  %952 = vst [vmem:[%s778 + $0x158] sm:$0xf] %v951
                  %v953 = vld [vmem:[%s777 + $0x2b8] sm:$0xf]
                  %954 = vst [vmem:[%s778 + $0x15c] sm:$0xf] %v953
                  %v955 = vld [vmem:[%s777 + $0x2c0] sm:$0xf]
                  %956 = vst [vmem:[%s778 + $0x160] sm:$0xf] %v955
                  %v957 = vld [vmem:[%s777 + $0x2c8] sm:$0xf]
                  %958 = vst [vmem:[%s778 + $0x164] sm:$0xf] %v957
                  %v959 = vld [vmem:[%s777 + $0x2d0] sm:$0xf]
                  %960 = vst [vmem:[%s778 + $0x168] sm:$0xf] %v959
                  %v961 = vld [vmem:[%s777 + $0x2d8] sm:$0xf]
                  %962 = vst [vmem:[%s778 + $0x16c] sm:$0xf] %v961
                  %v963 = vld [vmem:[%s777 + $0x2e0] sm:$0xf]
                  %964 = vst [vmem:[%s778 + $0x170] sm:$0xf] %v963
                  %v965 = vld [vmem:[%s777 + $0x2e8] sm:$0xf]
                  %966 = vst [vmem:[%s778 + $0x174] sm:$0xf] %v965
                  %v967 = vld [vmem:[%s777 + $0x2f0] sm:$0xf]
                  %968 = vst [vmem:[%s778 + $0x178] sm:$0xf] %v967
                  %v969 = vld [vmem:[%s777 + $0x2f8] sm:$0xf]
                  %970 = vst [vmem:[%s778 + $0x17c] sm:$0xf] %v969
                  %v971 = vld [vmem:[%s777 + $0x300] sm:$0xf]
                  %972 = vst [vmem:[%s778 + $0x180] sm:$0xf] %v971
                  %v973 = vld [vmem:[%s777 + $0x308] sm:$0xf]
                  %974 = vst [vmem:[%s778 + $0x184] sm:$0xf] %v973
                  %v975 = vld [vmem:[%s777 + $0x310] sm:$0xf]
                  %976 = vst [vmem:[%s778 + $0x188] sm:$0xf] %v975
                  %v977 = vld [vmem:[%s777 + $0x318] sm:$0xf]
                  %978 = vst [vmem:[%s778 + $0x18c] sm:$0xf] %v977
                  %v979 = vld [vmem:[%s777 + $0x320] sm:$0xf]
                  %980 = vst [vmem:[%s778 + $0x190] sm:$0xf] %v979
                  %v981 = vld [vmem:[%s777 + $0x328] sm:$0xf]
                  %982 = vst [vmem:[%s778 + $0x194] sm:$0xf] %v981
                  %v983 = vld [vmem:[%s777 + $0x330] sm:$0xf]
                  %984 = vst [vmem:[%s778 + $0x198] sm:$0xf] %v983
                  %v985 = vld [vmem:[%s777 + $0x338] sm:$0xf]
                  %986 = vst [vmem:[%s778 + $0x19c] sm:$0xf] %v985
                  %v987 = vld [vmem:[%s777 + $0x340] sm:$0xf]
                  %988 = vst [vmem:[%s778 + $0x1a0] sm:$0xf] %v987
                  %v989 = vld [vmem:[%s777 + $0x348] sm:$0xf]
                  %990 = vst [vmem:[%s778 + $0x1a4] sm:$0xf] %v989
                  %v991 = vld [vmem:[%s777 + $0x350] sm:$0xf]
                  %992 = vst [vmem:[%s778 + $0x1a8] sm:$0xf] %v991
                  %v993 = vld [vmem:[%s777 + $0x358] sm:$0xf]
                  %994 = vst [vmem:[%s778 + $0x1ac] sm:$0xf] %v993
                  %v995 = vld [vmem:[%s777 + $0x360] sm:$0xf]
                  %996 = vst [vmem:[%s778 + $0x1b0] sm:$0xf] %v995
                  %v997 = vld [vmem:[%s777 + $0x368] sm:$0xf]
                  %998 = vst [vmem:[%s778 + $0x1b4] sm:$0xf] %v997
                  %v999 = vld [vmem:[%s777 + $0x370] sm:$0xf]
                  %1000 = vst [vmem:[%s778 + $0x1b8] sm:$0xf] %v999
                  %v1001 = vld [vmem:[%s777 + $0x378] sm:$0xf]
                  %1002 = vst [vmem:[%s778 + $0x1bc] sm:$0xf] %v1001
                  %v1003 = vld [vmem:[%s777 + $0x380] sm:$0xf]
                  %1004 = vst [vmem:[%s778 + $0x1c0] sm:$0xf] %v1003
                  %v1005 = vld [vmem:[%s777 + $0x388] sm:$0xf]
                  %1006 = vst [vmem:[%s778 + $0x1c4] sm:$0xf] %v1005
                  %v1007 = vld [vmem:[%s777 + $0x390] sm:$0xf]
                  %1008 = vst [vmem:[%s778 + $0x1c8] sm:$0xf] %v1007
                  %v1009 = vld [vmem:[%s777 + $0x398] sm:$0xf]
                  %1010 = vst [vmem:[%s778 + $0x1cc] sm:$0xf] %v1009
                  %v1011 = vld [vmem:[%s777 + $0x3a0] sm:$0xf]
                  %1012 = vst [vmem:[%s778 + $0x1d0] sm:$0xf] %v1011
                  %v1013 = vld [vmem:[%s777 + $0x3a8] sm:$0xf]
                  %1014 = vst [vmem:[%s778 + $0x1d4] sm:$0xf] %v1013
                  %v1015 = vld [vmem:[%s777 + $0x3b0] sm:$0xf]
                  %1016 = vst [vmem:[%s778 + $0x1d8] sm:$0xf] %v1015
                  %v1017 = vld [vmem:[%s777 + $0x3b8] sm:$0xf]
                  %1018 = vst [vmem:[%s778 + $0x1dc] sm:$0xf] %v1017
                  %v1019 = vld [vmem:[%s777 + $0x3c0] sm:$0xf]
                  %1020 = vst [vmem:[%s778 + $0x1e0] sm:$0xf] %v1019
                  %v1021 = vld [vmem:[%s777 + $0x3c8] sm:$0xf]
                  %1022 = vst [vmem:[%s778 + $0x1e4] sm:$0xf] %v1021
                  %v1023 = vld [vmem:[%s777 + $0x3d0] sm:$0xf]
                  %1024 = vst [vmem:[%s778 + $0x1e8] sm:$0xf] %v1023
                  %v1025 = vld [vmem:[%s777 + $0x3d8] sm:$0xf]
                  %1026 = vst [vmem:[%s778 + $0x1ec] sm:$0xf] %v1025
                  %v1027 = vld [vmem:[%s777 + $0x3e0] sm:$0xf]
                  %1028 = vst [vmem:[%s778 + $0x1f0] sm:$0xf] %v1027
                  %v1029 = vld [vmem:[%s777 + $0x3e8] sm:$0xf]
                  %1030 = vst [vmem:[%s778 + $0x1f4] sm:$0xf] %v1029
                  %v1031 = vld [vmem:[%s777 + $0x3f0] sm:$0xf]
                  %1032 = vst [vmem:[%s778 + $0x1f8] sm:$0xf] %v1031
                  %v1033 = vld [vmem:[%s777 + $0x3f8] sm:$0xf]
                  %1034 = vst [vmem:[%s778 + $0x1fc] sm:$0xf] %v1033
                  %v1035 = vld [vmem:[%s777 + $0x400] sm:$0xf]
                  %1036 = vst [vmem:[%s778 + $0x200] sm:$0xf] %v1035
                  %v1037 = vld [vmem:[%s777 + $0x408] sm:$0xf]
                  %1038 = vst [vmem:[%s778 + $0x204] sm:$0xf] %v1037
                  %v1039 = vld [vmem:[%s777 + $0x410] sm:$0xf]
                  %1040 = vst [vmem:[%s778 + $0x208] sm:$0xf] %v1039
                  %v1041 = vld [vmem:[%s777 + $0x418] sm:$0xf]
                  %1042 = vst [vmem:[%s778 + $0x20c] sm:$0xf] %v1041
                  %v1043 = vld [vmem:[%s777 + $0x420] sm:$0xf]
                  %1044 = vst [vmem:[%s778 + $0x210] sm:$0xf] %v1043
                  %v1045 = vld [vmem:[%s777 + $0x428] sm:$0xf]
                  %1046 = vst [vmem:[%s778 + $0x214] sm:$0xf] %v1045
                  %v1047 = vld [vmem:[%s777 + $0x430] sm:$0xf]
                  %1048 = vst [vmem:[%s778 + $0x218] sm:$0xf] %v1047
                  %v1049 = vld [vmem:[%s777 + $0x438] sm:$0xf]
                  %1050 = vst [vmem:[%s778 + $0x21c] sm:$0xf] %v1049
                  %v1051 = vld [vmem:[%s777 + $0x440] sm:$0xf]
                  %1052 = vst [vmem:[%s778 + $0x220] sm:$0xf] %v1051
                  %v1053 = vld [vmem:[%s777 + $0x448] sm:$0xf]
                  %1054 = vst [vmem:[%s778 + $0x224] sm:$0xf] %v1053
                  %v1055 = vld [vmem:[%s777 + $0x450] sm:$0xf]
                  %1056 = vst [vmem:[%s778 + $0x228] sm:$0xf] %v1055
                  %v1057 = vld [vmem:[%s777 + $0x458] sm:$0xf]
                  %1058 = vst [vmem:[%s778 + $0x22c] sm:$0xf] %v1057
                  %v1059 = vld [vmem:[%s777 + $0x460] sm:$0xf]
                  %1060 = vst [vmem:[%s778 + $0x230] sm:$0xf] %v1059
                  %v1061 = vld [vmem:[%s777 + $0x468] sm:$0xf]
                  %1062 = vst [vmem:[%s778 + $0x234] sm:$0xf] %v1061
                  %v1063 = vld [vmem:[%s777 + $0x470] sm:$0xf]
                  %1064 = vst [vmem:[%s778 + $0x238] sm:$0xf] %v1063
                  %v1065 = vld [vmem:[%s777 + $0x478] sm:$0xf]
                  %1066 = vst [vmem:[%s778 + $0x23c] sm:$0xf] %v1065
                  %v1067 = vld [vmem:[%s777 + $0x480] sm:$0xf]
                  %1068 = vst [vmem:[%s778 + $0x240] sm:$0xf] %v1067
                  %v1069 = vld [vmem:[%s777 + $0x488] sm:$0xf]
                  %1070 = vst [vmem:[%s778 + $0x244] sm:$0xf] %v1069
                  %v1071 = vld [vmem:[%s777 + $0x490] sm:$0xf]
                  %1072 = vst [vmem:[%s778 + $0x248] sm:$0xf] %v1071
                  %v1073 = vld [vmem:[%s777 + $0x498] sm:$0xf]
                  %1074 = vst [vmem:[%s778 + $0x24c] sm:$0xf] %v1073
                  %v1075 = vld [vmem:[%s777 + $0x4a0] sm:$0xf]
                  %1076 = vst [vmem:[%s778 + $0x250] sm:$0xf] %v1075
                  %v1077 = vld [vmem:[%s777 + $0x4a8] sm:$0xf]
                  %1078 = vst [vmem:[%s778 + $0x254] sm:$0xf] %v1077
                  %v1079 = vld [vmem:[%s777 + $0x4b0] sm:$0xf]
                  %1080 = vst [vmem:[%s778 + $0x258] sm:$0xf] %v1079
                  %v1081 = vld [vmem:[%s777 + $0x4b8] sm:$0xf]
                  %1082 = vst [vmem:[%s778 + $0x25c] sm:$0xf] %v1081
                  %v1083 = vld [vmem:[%s777 + $0x4c0] sm:$0xf]
                  %1084 = vst [vmem:[%s778 + $0x260] sm:$0xf] %v1083
                  %v1085 = vld [vmem:[%s777 + $0x4c8] sm:$0xf]
                  %1086 = vst [vmem:[%s778 + $0x264] sm:$0xf] %v1085
                  %v1087 = vld [vmem:[%s777 + $0x4d0] sm:$0xf]
                  %1088 = vst [vmem:[%s778 + $0x268] sm:$0xf] %v1087
                  %v1089 = vld [vmem:[%s777 + $0x4d8] sm:$0xf]
                  %1090 = vst [vmem:[%s778 + $0x26c] sm:$0xf] %v1089
                  %v1091 = vld [vmem:[%s777 + $0x4e0] sm:$0xf]
                  %1092 = vst [vmem:[%s778 + $0x270] sm:$0xf] %v1091
                  %v1093 = vld [vmem:[%s777 + $0x4e8] sm:$0xf]
                  %1094 = vst [vmem:[%s778 + $0x274] sm:$0xf] %v1093
                  %v1095 = vld [vmem:[%s777 + $0x4f0] sm:$0xf]
                  %1096 = vst [vmem:[%s778 + $0x278] sm:$0xf] %v1095
                  %v1097 = vld [vmem:[%s777 + $0x4f8] sm:$0xf]
                  %1098 = vst [vmem:[%s778 + $0x27c] sm:$0xf] %v1097
                  %v1099 = vld [vmem:[%s777 + $0x500] sm:$0xf]
                  %1100 = vst [vmem:[%s778 + $0x280] sm:$0xf] %v1099
                  %v1101 = vld [vmem:[%s777 + $0x508] sm:$0xf]
                  %1102 = vst [vmem:[%s778 + $0x284] sm:$0xf] %v1101
                  %v1103 = vld [vmem:[%s777 + $0x510] sm:$0xf]
                  %1104 = vst [vmem:[%s778 + $0x288] sm:$0xf] %v1103
                  %v1105 = vld [vmem:[%s777 + $0x518] sm:$0xf]
                  %1106 = vst [vmem:[%s778 + $0x28c] sm:$0xf] %v1105
                  %v1107 = vld [vmem:[%s777 + $0x520] sm:$0xf]
                  %1108 = vst [vmem:[%s778 + $0x290] sm:$0xf] %v1107
                  %v1109 = vld [vmem:[%s777 + $0x528] sm:$0xf]
                  %1110 = vst [vmem:[%s778 + $0x294] sm:$0xf] %v1109
                  %v1111 = vld [vmem:[%s777 + $0x530] sm:$0xf]
                  %1112 = vst [vmem:[%s778 + $0x298] sm:$0xf] %v1111
                  %v1113 = vld [vmem:[%s777 + $0x538] sm:$0xf]
                  %1114 = vst [vmem:[%s778 + $0x29c] sm:$0xf] %v1113
                  %v1115 = vld [vmem:[%s777 + $0x540] sm:$0xf]
                  %1116 = vst [vmem:[%s778 + $0x2a0] sm:$0xf] %v1115
                  %v1117 = vld [vmem:[%s777 + $0x548] sm:$0xf]
                  %1118 = vst [vmem:[%s778 + $0x2a4] sm:$0xf] %v1117
                  %v1119 = vld [vmem:[%s777 + $0x550] sm:$0xf]
                  %1120 = vst [vmem:[%s778 + $0x2a8] sm:$0xf] %v1119
                  %v1121 = vld [vmem:[%s777 + $0x558] sm:$0xf]
                  %1122 = vst [vmem:[%s778 + $0x2ac] sm:$0xf] %v1121
                  %v1123 = vld [vmem:[%s777 + $0x560] sm:$0xf]
                  %1124 = vst [vmem:[%s778 + $0x2b0] sm:$0xf] %v1123
                  %v1125 = vld [vmem:[%s777 + $0x568] sm:$0xf]
                  %1126 = vst [vmem:[%s778 + $0x2b4] sm:$0xf] %v1125
                  %v1127 = vld [vmem:[%s777 + $0x570] sm:$0xf]
                  %1128 = vst [vmem:[%s778 + $0x2b8] sm:$0xf] %v1127
                  %v1129 = vld [vmem:[%s777 + $0x578] sm:$0xf]
                  %1130 = vst [vmem:[%s778 + $0x2bc] sm:$0xf] %v1129
                  %v1131 = vld [vmem:[%s777 + $0x580] sm:$0xf]
                  %1132 = vst [vmem:[%s778 + $0x2c0] sm:$0xf] %v1131
                  %v1133 = vld [vmem:[%s777 + $0x588] sm:$0xf]
                  %1134 = vst [vmem:[%s778 + $0x2c4] sm:$0xf] %v1133
                  %v1135 = vld [vmem:[%s777 + $0x590] sm:$0xf]
                  %1136 = vst [vmem:[%s778 + $0x2c8] sm:$0xf] %v1135
                  %v1137 = vld [vmem:[%s777 + $0x598] sm:$0xf]
                  %1138 = vst [vmem:[%s778 + $0x2cc] sm:$0xf] %v1137
                  %v1139 = vld [vmem:[%s777 + $0x5a0] sm:$0xf]
                  %1140 = vst [vmem:[%s778 + $0x2d0] sm:$0xf] %v1139
                  %v1141 = vld [vmem:[%s777 + $0x5a8] sm:$0xf]
                  %1142 = vst [vmem:[%s778 + $0x2d4] sm:$0xf] %v1141
                  %v1143 = vld [vmem:[%s777 + $0x5b0] sm:$0xf]
                  %1144 = vst [vmem:[%s778 + $0x2d8] sm:$0xf] %v1143
                  %v1145 = vld [vmem:[%s777 + $0x5b8] sm:$0xf]
                  %1146 = vst [vmem:[%s778 + $0x2dc] sm:$0xf] %v1145
                  %v1147 = vld [vmem:[%s777 + $0x5c0] sm:$0xf]
                  %1148 = vst [vmem:[%s778 + $0x2e0] sm:$0xf] %v1147
                  %v1149 = vld [vmem:[%s777 + $0x5c8] sm:$0xf]
                  %1150 = vst [vmem:[%s778 + $0x2e4] sm:$0xf] %v1149
                  %v1151 = vld [vmem:[%s777 + $0x5d0] sm:$0xf]
                  %1152 = vst [vmem:[%s778 + $0x2e8] sm:$0xf] %v1151
                  %v1153 = vld [vmem:[%s777 + $0x5d8] sm:$0xf]
                  %1154 = vst [vmem:[%s778 + $0x2ec] sm:$0xf] %v1153
                  %v1155 = vld [vmem:[%s777 + $0x5e0] sm:$0xf]
                  %1156 = vst [vmem:[%s778 + $0x2f0] sm:$0xf] %v1155
                  %v1157 = vld [vmem:[%s777 + $0x5e8] sm:$0xf]
                  %1158 = vst [vmem:[%s778 + $0x2f4] sm:$0xf] %v1157
                  %v1159 = vld [vmem:[%s777 + $0x5f0] sm:$0xf]
                  %1160 = vst [vmem:[%s778 + $0x2f8] sm:$0xf] %v1159
                  %v1161 = vld [vmem:[%s777 + $0x5f8] sm:$0xf]
                  %1162 = vst [vmem:[%s778 + $0x2fc] sm:$0xf] %v1161
                  %v1163 = vld [vmem:[%s777 + $0x600] sm:$0xf]
                  %1164 = vst [vmem:[%s778 + $0x300] sm:$0xf] %v1163
                  %v1165 = vld [vmem:[%s777 + $0x608] sm:$0xf]
                  %1166 = vst [vmem:[%s778 + $0x304] sm:$0xf] %v1165
                  %v1167 = vld [vmem:[%s777 + $0x610] sm:$0xf]
                  %1168 = vst [vmem:[%s778 + $0x308] sm:$0xf] %v1167
                  %v1169 = vld [vmem:[%s777 + $0x618] sm:$0xf]
                  %1170 = vst [vmem:[%s778 + $0x30c] sm:$0xf] %v1169
                  %v1171 = vld [vmem:[%s777 + $0x620] sm:$0xf]
                  %1172 = vst [vmem:[%s778 + $0x310] sm:$0xf] %v1171
                  %v1173 = vld [vmem:[%s777 + $0x628] sm:$0xf]
                  %1174 = vst [vmem:[%s778 + $0x314] sm:$0xf] %v1173
                  %v1175 = vld [vmem:[%s777 + $0x630] sm:$0xf]
                  %1176 = vst [vmem:[%s778 + $0x318] sm:$0xf] %v1175
                  %v1177 = vld [vmem:[%s777 + $0x638] sm:$0xf]
                  %1178 = vst [vmem:[%s778 + $0x31c] sm:$0xf] %v1177
                  %v1179 = vld [vmem:[%s777 + $0x640] sm:$0xf]
                  %1180 = vst [vmem:[%s778 + $0x320] sm:$0xf] %v1179
                  %v1181 = vld [vmem:[%s777 + $0x648] sm:$0xf]
                  %1182 = vst [vmem:[%s778 + $0x324] sm:$0xf] %v1181
                  %v1183 = vld [vmem:[%s777 + $0x650] sm:$0xf]
                  %1184 = vst [vmem:[%s778 + $0x328] sm:$0xf] %v1183
                  %v1185 = vld [vmem:[%s777 + $0x658] sm:$0xf]
                  %1186 = vst [vmem:[%s778 + $0x32c] sm:$0xf] %v1185
                  %v1187 = vld [vmem:[%s777 + $0x660] sm:$0xf]
                  %1188 = vst [vmem:[%s778 + $0x330] sm:$0xf] %v1187
                  %v1189 = vld [vmem:[%s777 + $0x668] sm:$0xf]
                  %1190 = vst [vmem:[%s778 + $0x334] sm:$0xf] %v1189
                  %v1191 = vld [vmem:[%s777 + $0x670] sm:$0xf]
                  %1192 = vst [vmem:[%s778 + $0x338] sm:$0xf] %v1191
                  %v1193 = vld [vmem:[%s777 + $0x678] sm:$0xf]
                  %1194 = vst [vmem:[%s778 + $0x33c] sm:$0xf] %v1193
                  %v1195 = vld [vmem:[%s777 + $0x680] sm:$0xf]
                  %1196 = vst [vmem:[%s778 + $0x340] sm:$0xf] %v1195
                  %v1197 = vld [vmem:[%s777 + $0x688] sm:$0xf]
                  %1198 = vst [vmem:[%s778 + $0x344] sm:$0xf] %v1197
                  %v1199 = vld [vmem:[%s777 + $0x690] sm:$0xf]
                  %1200 = vst [vmem:[%s778 + $0x348] sm:$0xf] %v1199
                  %v1201 = vld [vmem:[%s777 + $0x698] sm:$0xf]
                  %1202 = vst [vmem:[%s778 + $0x34c] sm:$0xf] %v1201
                  %v1203 = vld [vmem:[%s777 + $0x6a0] sm:$0xf]
                  %1204 = vst [vmem:[%s778 + $0x350] sm:$0xf] %v1203
                  %v1205 = vld [vmem:[%s777 + $0x6a8] sm:$0xf]
                  %1206 = vst [vmem:[%s778 + $0x354] sm:$0xf] %v1205
                  %v1207 = vld [vmem:[%s777 + $0x6b0] sm:$0xf]
                  %1208 = vst [vmem:[%s778 + $0x358] sm:$0xf] %v1207
                  %v1209 = vld [vmem:[%s777 + $0x6b8] sm:$0xf]
                  %1210 = vst [vmem:[%s778 + $0x35c] sm:$0xf] %v1209
                  %v1211 = vld [vmem:[%s777 + $0x6c0] sm:$0xf]
                  %1212 = vst [vmem:[%s778 + $0x360] sm:$0xf] %v1211
                  %v1213 = vld [vmem:[%s777 + $0x6c8] sm:$0xf]
                  %1214 = vst [vmem:[%s778 + $0x364] sm:$0xf] %v1213
                  %v1215 = vld [vmem:[%s777 + $0x6d0] sm:$0xf]
                  %1216 = vst [vmem:[%s778 + $0x368] sm:$0xf] %v1215
                  %v1217 = vld [vmem:[%s777 + $0x6d8] sm:$0xf]
                  %1218 = vst [vmem:[%s778 + $0x36c] sm:$0xf] %v1217
                  %v1219 = vld [vmem:[%s777 + $0x6e0] sm:$0xf]
                  %1220 = vst [vmem:[%s778 + $0x370] sm:$0xf] %v1219
                  %v1221 = vld [vmem:[%s777 + $0x6e8] sm:$0xf]
                  %1222 = vst [vmem:[%s778 + $0x374] sm:$0xf] %v1221
                  %v1223 = vld [vmem:[%s777 + $0x6f0] sm:$0xf]
                  %1224 = vst [vmem:[%s778 + $0x378] sm:$0xf] %v1223
                  %v1225 = vld [vmem:[%s777 + $0x6f8] sm:$0xf]
                  %1226 = vst [vmem:[%s778 + $0x37c] sm:$0xf] %v1225
                  %v1227 = vld [vmem:[%s777 + $0x700] sm:$0xf]
                  %1228 = vst [vmem:[%s778 + $0x380] sm:$0xf] %v1227
                  %v1229 = vld [vmem:[%s777 + $0x708] sm:$0xf]
                  %1230 = vst [vmem:[%s778 + $0x384] sm:$0xf] %v1229
                  %v1231 = vld [vmem:[%s777 + $0x710] sm:$0xf]
                  %1232 = vst [vmem:[%s778 + $0x388] sm:$0xf] %v1231
                  %v1233 = vld [vmem:[%s777 + $0x718] sm:$0xf]
                  %1234 = vst [vmem:[%s778 + $0x38c] sm:$0xf] %v1233
                  %v1235 = vld [vmem:[%s777 + $0x720] sm:$0xf]
                  %1236 = vst [vmem:[%s778 + $0x390] sm:$0xf] %v1235
                  %v1237 = vld [vmem:[%s777 + $0x728] sm:$0xf]
                  %1238 = vst [vmem:[%s778 + $0x394] sm:$0xf] %v1237
                  %v1239 = vld [vmem:[%s777 + $0x730] sm:$0xf]
                  %1240 = vst [vmem:[%s778 + $0x398] sm:$0xf] %v1239
                  %v1241 = vld [vmem:[%s777 + $0x738] sm:$0xf]
                  %1242 = vst [vmem:[%s778 + $0x39c] sm:$0xf] %v1241
                  %v1243 = vld [vmem:[%s777 + $0x740] sm:$0xf]
                  %1244 = vst [vmem:[%s778 + $0x3a0] sm:$0xf] %v1243
                  %v1245 = vld [vmem:[%s777 + $0x748] sm:$0xf]
                  %1246 = vst [vmem:[%s778 + $0x3a4] sm:$0xf] %v1245
                  %v1247 = vld [vmem:[%s777 + $0x750] sm:$0xf]
                  %1248 = vst [vmem:[%s778 + $0x3a8] sm:$0xf] %v1247
                  %v1249 = vld [vmem:[%s777 + $0x758] sm:$0xf]
                  %1250 = vst [vmem:[%s778 + $0x3ac] sm:$0xf] %v1249
                  %v1251 = vld [vmem:[%s777 + $0x760] sm:$0xf]
                  %1252 = vst [vmem:[%s778 + $0x3b0] sm:$0xf] %v1251
                  %v1253 = vld [vmem:[%s777 + $0x768] sm:$0xf]
                  %1254 = vst [vmem:[%s778 + $0x3b4] sm:$0xf] %v1253
                  %v1255 = vld [vmem:[%s777 + $0x770] sm:$0xf]
                  %1256 = vst [vmem:[%s778 + $0x3b8] sm:$0xf] %v1255
                  %v1257 = vld [vmem:[%s777 + $0x778] sm:$0xf]
                  %1258 = vst [vmem:[%s778 + $0x3bc] sm:$0xf] %v1257
                  %v1259 = vld [vmem:[%s777 + $0x780] sm:$0xf]
                  %1260 = vst [vmem:[%s778 + $0x3c0] sm:$0xf] %v1259
                  %v1261 = vld [vmem:[%s777 + $0x788] sm:$0xf]
                  %1262 = vst [vmem:[%s778 + $0x3c4] sm:$0xf] %v1261
                  %v1263 = vld [vmem:[%s777 + $0x790] sm:$0xf]
                  %1264 = vst [vmem:[%s778 + $0x3c8] sm:$0xf] %v1263
                  %v1265 = vld [vmem:[%s777 + $0x798] sm:$0xf]
                  %1266 = vst [vmem:[%s778 + $0x3cc] sm:$0xf] %v1265
                  %v1267 = vld [vmem:[%s777 + $0x7a0] sm:$0xf]
                  %1268 = vst [vmem:[%s778 + $0x3d0] sm:$0xf] %v1267
                  %v1269 = vld [vmem:[%s777 + $0x7a8] sm:$0xf]
                  %1270 = vst [vmem:[%s778 + $0x3d4] sm:$0xf] %v1269
                  %v1271 = vld [vmem:[%s777 + $0x7b0] sm:$0xf]
                  %1272 = vst [vmem:[%s778 + $0x3d8] sm:$0xf] %v1271
                  %v1273 = vld [vmem:[%s777 + $0x7b8] sm:$0xf]
                  %1274 = vst [vmem:[%s778 + $0x3dc] sm:$0xf] %v1273
                  %v1275 = vld [vmem:[%s777 + $0x7c0] sm:$0xf]
                  %1276 = vst [vmem:[%s778 + $0x3e0] sm:$0xf] %v1275
                  %v1277 = vld [vmem:[%s777 + $0x7c8] sm:$0xf]
                  %1278 = vst [vmem:[%s778 + $0x3e4] sm:$0xf] %v1277
                  %v1279 = vld [vmem:[%s777 + $0x7d0] sm:$0xf]
                  %1280 = vst [vmem:[%s778 + $0x3e8] sm:$0xf] %v1279
                  %v1281 = vld [vmem:[%s777 + $0x7d8] sm:$0xf]
                  %1282 = vst [vmem:[%s778 + $0x3ec] sm:$0xf] %v1281
                  %v1283 = vld [vmem:[%s777 + $0x7e0] sm:$0xf]
                  %1284 = vst [vmem:[%s778 + $0x3f0] sm:$0xf] %v1283
                  %v1285 = vld [vmem:[%s777 + $0x7e8] sm:$0xf]
                  %1286 = vst [vmem:[%s778 + $0x3f4] sm:$0xf] %v1285
                  %v1287 = vld [vmem:[%s777 + $0x7f0] sm:$0xf]
                  %1288 = vst [vmem:[%s778 + $0x3f8] sm:$0xf] %v1287
                  %v1289 = vld [vmem:[%s777 + $0x7f8] sm:$0xf]
                  %1290 = vst [vmem:[%s778 + $0x3fc] sm:$0xf] %v1289
                  %v1291 = vld [vmem:[%s777 + $0x800] sm:$0xf]
                  %1292 = vst [vmem:[%s778 + $0x400] sm:$0xf] %v1291
                  %v1293 = vld [vmem:[%s777 + $0x808] sm:$0xf]
                  %1294 = vst [vmem:[%s778 + $0x404] sm:$0xf] %v1293
                  %v1295 = vld [vmem:[%s777 + $0x810] sm:$0xf]
                  %1296 = vst [vmem:[%s778 + $0x408] sm:$0xf] %v1295
                  %v1297 = vld [vmem:[%s777 + $0x818] sm:$0xf]
                  %1298 = vst [vmem:[%s778 + $0x40c] sm:$0xf] %v1297
                  %v1299 = vld [vmem:[%s777 + $0x820] sm:$0xf]
                  %1300 = vst [vmem:[%s778 + $0x410] sm:$0xf] %v1299
                  %v1301 = vld [vmem:[%s777 + $0x828] sm:$0xf]
                  %1302 = vst [vmem:[%s778 + $0x414] sm:$0xf] %v1301
                  %v1303 = vld [vmem:[%s777 + $0x830] sm:$0xf]
                  %1304 = vst [vmem:[%s778 + $0x418] sm:$0xf] %v1303
                  %v1305 = vld [vmem:[%s777 + $0x838] sm:$0xf]
                  %1306 = vst [vmem:[%s778 + $0x41c] sm:$0xf] %v1305
                  %v1307 = vld [vmem:[%s777 + $0x840] sm:$0xf]
                  %1308 = vst [vmem:[%s778 + $0x420] sm:$0xf] %v1307
                  %v1309 = vld [vmem:[%s777 + $0x848] sm:$0xf]
                  %1310 = vst [vmem:[%s778 + $0x424] sm:$0xf] %v1309
                  %v1311 = vld [vmem:[%s777 + $0x850] sm:$0xf]
                  %1312 = vst [vmem:[%s778 + $0x428] sm:$0xf] %v1311
                  %v1313 = vld [vmem:[%s777 + $0x858] sm:$0xf]
                  %1314 = vst [vmem:[%s778 + $0x42c] sm:$0xf] %v1313
                  %v1315 = vld [vmem:[%s777 + $0x860] sm:$0xf]
                  %1316 = vst [vmem:[%s778 + $0x430] sm:$0xf] %v1315
                  %v1317 = vld [vmem:[%s777 + $0x868] sm:$0xf]
                  %1318 = vst [vmem:[%s778 + $0x434] sm:$0xf] %v1317
                  %v1319 = vld [vmem:[%s777 + $0x870] sm:$0xf]
                  %1320 = vst [vmem:[%s778 + $0x438] sm:$0xf] %v1319
                  %v1321 = vld [vmem:[%s777 + $0x878] sm:$0xf]
                  %1322 = vst [vmem:[%s778 + $0x43c] sm:$0xf] %v1321
                  %v1323 = vld [vmem:[%s777 + $0x880] sm:$0xf]
                  %1324 = vst [vmem:[%s778 + $0x440] sm:$0xf] %v1323
                  %v1325 = vld [vmem:[%s777 + $0x888] sm:$0xf]
                  %1326 = vst [vmem:[%s778 + $0x444] sm:$0xf] %v1325
                  %v1327 = vld [vmem:[%s777 + $0x890] sm:$0xf]
                  %1328 = vst [vmem:[%s778 + $0x448] sm:$0xf] %v1327
                  %v1329 = vld [vmem:[%s777 + $0x898] sm:$0xf]
                  %1330 = vst [vmem:[%s778 + $0x44c] sm:$0xf] %v1329
                  %v1331 = vld [vmem:[%s777 + $0x8a0] sm:$0xf]
                  %1332 = vst [vmem:[%s778 + $0x450] sm:$0xf] %v1331
                  %v1333 = vld [vmem:[%s777 + $0x8a8] sm:$0xf]
                  %1334 = vst [vmem:[%s778 + $0x454] sm:$0xf] %v1333
                  %v1335 = vld [vmem:[%s777 + $0x8b0] sm:$0xf]
                  %1336 = vst [vmem:[%s778 + $0x458] sm:$0xf] %v1335
                  %v1337 = vld [vmem:[%s777 + $0x8b8] sm:$0xf]
                  %1338 = vst [vmem:[%s778 + $0x45c] sm:$0xf] %v1337
                  %v1339 = vld [vmem:[%s777 + $0x8c0] sm:$0xf]
                  %1340 = vst [vmem:[%s778 + $0x460] sm:$0xf] %v1339
                  %v1341 = vld [vmem:[%s777 + $0x8c8] sm:$0xf]
                  %1342 = vst [vmem:[%s778 + $0x464] sm:$0xf] %v1341
                  %v1343 = vld [vmem:[%s777 + $0x8d0] sm:$0xf]
                  %1344 = vst [vmem:[%s778 + $0x468] sm:$0xf] %v1343
                  %v1345 = vld [vmem:[%s777 + $0x8d8] sm:$0xf]
                  %1346 = vst [vmem:[%s778 + $0x46c] sm:$0xf] %v1345
                  %v1347 = vld [vmem:[%s777 + $0x8e0] sm:$0xf]
                  %1348 = vst [vmem:[%s778 + $0x470] sm:$0xf] %v1347
                  %v1349 = vld [vmem:[%s777 + $0x8e8] sm:$0xf]
                  %1350 = vst [vmem:[%s778 + $0x474] sm:$0xf] %v1349
                  %v1351 = vld [vmem:[%s777 + $0x8f0] sm:$0xf]
                  %1352 = vst [vmem:[%s778 + $0x478] sm:$0xf] %v1351
                  %v1353 = vld [vmem:[%s777 + $0x8f8] sm:$0xf]
                  %1354 = vst [vmem:[%s778 + $0x47c] sm:$0xf] %v1353
                $region59: #{deformable_conv_block_forward.1} parent=46 // loop_footer
                  %s776 = sadd.s32 1, %s772
                $region60: #{deformable_conv_block_forward.1} parent=46 // loop_footer_branch
                  %771 = sbr.rel target = $region56
                $region61: #{deformable_conv_block_forward.1} parent=46 // loop_exit
                  _
              $region47: #{deformable_conv_block_forward.1} parent=31 // pred_fallthru
                _
            $region32: #{deformable_conv_block_forward.1} parent=27 // pred_fallthru
              _
            // Predicated region
            $region33: #{deformable_conv_block_forward.1} parent=27 // pred_check
              _
            $region34: #{deformable_conv_block_forward.1} parent=27 // pred_check_branch
              %174 = sbr.rel (0) target = $region36
            $region35: #{deformable_conv_block_forward.1} parent=27 // pred_region
              loop: start=0, step=1, limit=1
              $region37: #{deformable_conv_block_forward.1} parent=35 // loop_pre_header
                _
              $region38: #{deformable_conv_block_forward.1} parent=35 // loop_header
                %s177 = sphi 0, %s181
                %p178 = scmp.ge.s32.totalorder %s177, 1
                %s182 = sphi %s168, %s168
                %s183 = sphi %s164, %s164
              $region39: #{deformable_conv_block_forward.1} parent=35 // loop_header_branch
                %180 = sbr.rel (%p178) target = $region43
              $region40: #{deformable_conv_block_forward.1} parent=35 // loop_body
                %v184 = vld [vmem:[%s182] sm:$0xf]
                %185 = vst [vmem:[%s183] sm:$0xf] %v184
                %v186 = vld [vmem:[%s182 + $0x8] sm:$0xf]
                %187 = vst [vmem:[%s183 + $0x4] sm:$0xf] %v186
                %v188 = vld [vmem:[%s182 + $0x10] sm:$0xf]
                %189 = vst [vmem:[%s183 + $0x8] sm:$0xf] %v188
                %v190 = vld [vmem:[%s182 + $0x18] sm:$0xf]
                %191 = vst [vmem:[%s183 + $0xc] sm:$0xf] %v190
                %v192 = vld [vmem:[%s182 + $0x20] sm:$0xf]
                %193 = vst [vmem:[%s183 + $0x10] sm:$0xf] %v192
                %v194 = vld [vmem:[%s182 + $0x28] sm:$0xf]
                %195 = vst [vmem:[%s183 + $0x14] sm:$0xf] %v194
                %v196 = vld [vmem:[%s182 + $0x30] sm:$0xf]
                %197 = vst [vmem:[%s183 + $0x18] sm:$0xf] %v196
                %v198 = vld [vmem:[%s182 + $0x38] sm:$0xf]
                %199 = vst [vmem:[%s183 + $0x1c] sm:$0xf] %v198
                %v200 = vld [vmem:[%s182 + $0x40] sm:$0xf]
                %201 = vst [vmem:[%s183 + $0x20] sm:$0xf] %v200
                %v202 = vld [vmem:[%s182 + $0x48] sm:$0xf]
                %203 = vst [vmem:[%s183 + $0x24] sm:$0xf] %v202
                %v204 = vld [vmem:[%s182 + $0x50] sm:$0xf]
                %205 = vst [vmem:[%s183 + $0x28] sm:$0xf] %v204
                %v206 = vld [vmem:[%s182 + $0x58] sm:$0xf]
                %207 = vst [vmem:[%s183 + $0x2c] sm:$0xf] %v206
                %v208 = vld [vmem:[%s182 + $0x60] sm:$0xf]
                %209 = vst [vmem:[%s183 + $0x30] sm:$0xf] %v208
                %v210 = vld [vmem:[%s182 + $0x68] sm:$0xf]
                %211 = vst [vmem:[%s183 + $0x34] sm:$0xf] %v210
                %v212 = vld [vmem:[%s182 + $0x70] sm:$0xf]
                %213 = vst [vmem:[%s183 + $0x38] sm:$0xf] %v212
                %v214 = vld [vmem:[%s182 + $0x78] sm:$0xf]
                %215 = vst [vmem:[%s183 + $0x3c] sm:$0xf] %v214
                %v216 = vld [vmem:[%s182 + $0x80] sm:$0xf]
                %217 = vst [vmem:[%s183 + $0x40] sm:$0xf] %v216
                %v218 = vld [vmem:[%s182 + $0x88] sm:$0xf]
                %219 = vst [vmem:[%s183 + $0x44] sm:$0xf] %v218
                %v220 = vld [vmem:[%s182 + $0x90] sm:$0xf]
                %221 = vst [vmem:[%s183 + $0x48] sm:$0xf] %v220
                %v222 = vld [vmem:[%s182 + $0x98] sm:$0xf]
                %223 = vst [vmem:[%s183 + $0x4c] sm:$0xf] %v222
                %v224 = vld [vmem:[%s182 + $0xa0] sm:$0xf]
                %225 = vst [vmem:[%s183 + $0x50] sm:$0xf] %v224
                %v226 = vld [vmem:[%s182 + $0xa8] sm:$0xf]
                %227 = vst [vmem:[%s183 + $0x54] sm:$0xf] %v226
                %v228 = vld [vmem:[%s182 + $0xb0] sm:$0xf]
                %229 = vst [vmem:[%s183 + $0x58] sm:$0xf] %v228
                %v230 = vld [vmem:[%s182 + $0xb8] sm:$0xf]
                %231 = vst [vmem:[%s183 + $0x5c] sm:$0xf] %v230
                %v232 = vld [vmem:[%s182 + $0xc0] sm:$0xf]
                %233 = vst [vmem:[%s183 + $0x60] sm:$0xf] %v232
                %v234 = vld [vmem:[%s182 + $0xc8] sm:$0xf]
                %235 = vst [vmem:[%s183 + $0x64] sm:$0xf] %v234
                %v236 = vld [vmem:[%s182 + $0xd0] sm:$0xf]
                %237 = vst [vmem:[%s183 + $0x68] sm:$0xf] %v236
                %v238 = vld [vmem:[%s182 + $0xd8] sm:$0xf]
                %239 = vst [vmem:[%s183 + $0x6c] sm:$0xf] %v238
                %v240 = vld [vmem:[%s182 + $0xe0] sm:$0xf]
                %241 = vst [vmem:[%s183 + $0x70] sm:$0xf] %v240
                %v242 = vld [vmem:[%s182 + $0xe8] sm:$0xf]
                %243 = vst [vmem:[%s183 + $0x74] sm:$0xf] %v242
                %v244 = vld [vmem:[%s182 + $0xf0] sm:$0xf]
                %245 = vst [vmem:[%s183 + $0x78] sm:$0xf] %v244
                %v246 = vld [vmem:[%s182 + $0xf8] sm:$0xf]
                %247 = vst [vmem:[%s183 + $0x7c] sm:$0xf] %v246
                %v248 = vld [vmem:[%s182 + $0x100] sm:$0xf]
                %249 = vst [vmem:[%s183 + $0x80] sm:$0xf] %v248
                %v250 = vld [vmem:[%s182 + $0x108] sm:$0xf]
                %251 = vst [vmem:[%s183 + $0x84] sm:$0xf] %v250
                %v252 = vld [vmem:[%s182 + $0x110] sm:$0xf]
                %253 = vst [vmem:[%s183 + $0x88] sm:$0xf] %v252
                %v254 = vld [vmem:[%s182 + $0x118] sm:$0xf]
                %255 = vst [vmem:[%s183 + $0x8c] sm:$0xf] %v254
                %v256 = vld [vmem:[%s182 + $0x120] sm:$0xf]
                %257 = vst [vmem:[%s183 + $0x90] sm:$0xf] %v256
                %v258 = vld [vmem:[%s182 + $0x128] sm:$0xf]
                %259 = vst [vmem:[%s183 + $0x94] sm:$0xf] %v258
                %v260 = vld [vmem:[%s182 + $0x130] sm:$0xf]
                %261 = vst [vmem:[%s183 + $0x98] sm:$0xf] %v260
                %v262 = vld [vmem:[%s182 + $0x138] sm:$0xf]
                %263 = vst [vmem:[%s183 + $0x9c] sm:$0xf] %v262
                %v264 = vld [vmem:[%s182 + $0x140] sm:$0xf]
                %265 = vst [vmem:[%s183 + $0xa0] sm:$0xf] %v264
                %v266 = vld [vmem:[%s182 + $0x148] sm:$0xf]
                %267 = vst [vmem:[%s183 + $0xa4] sm:$0xf] %v266
                %v268 = vld [vmem:[%s182 + $0x150] sm:$0xf]
                %269 = vst [vmem:[%s183 + $0xa8] sm:$0xf] %v268
                %v270 = vld [vmem:[%s182 + $0x158] sm:$0xf]
                %271 = vst [vmem:[%s183 + $0xac] sm:$0xf] %v270
                %v272 = vld [vmem:[%s182 + $0x160] sm:$0xf]
                %273 = vst [vmem:[%s183 + $0xb0] sm:$0xf] %v272
                %v274 = vld [vmem:[%s182 + $0x168] sm:$0xf]
                %275 = vst [vmem:[%s183 + $0xb4] sm:$0xf] %v274
                %v276 = vld [vmem:[%s182 + $0x170] sm:$0xf]
                %277 = vst [vmem:[%s183 + $0xb8] sm:$0xf] %v276
                %v278 = vld [vmem:[%s182 + $0x178] sm:$0xf]
                %279 = vst [vmem:[%s183 + $0xbc] sm:$0xf] %v278
                %v280 = vld [vmem:[%s182 + $0x180] sm:$0xf]
                %281 = vst [vmem:[%s183 + $0xc0] sm:$0xf] %v280
                %v282 = vld [vmem:[%s182 + $0x188] sm:$0xf]
                %283 = vst [vmem:[%s183 + $0xc4] sm:$0xf] %v282
                %v284 = vld [vmem:[%s182 + $0x190] sm:$0xf]
                %285 = vst [vmem:[%s183 + $0xc8] sm:$0xf] %v284
                %v286 = vld [vmem:[%s182 + $0x198] sm:$0xf]
                %287 = vst [vmem:[%s183 + $0xcc] sm:$0xf] %v286
                %v288 = vld [vmem:[%s182 + $0x1a0] sm:$0xf]
                %289 = vst [vmem:[%s183 + $0xd0] sm:$0xf] %v288
                %v290 = vld [vmem:[%s182 + $0x1a8] sm:$0xf]
                %291 = vst [vmem:[%s183 + $0xd4] sm:$0xf] %v290
                %v292 = vld [vmem:[%s182 + $0x1b0] sm:$0xf]
                %293 = vst [vmem:[%s183 + $0xd8] sm:$0xf] %v292
                %v294 = vld [vmem:[%s182 + $0x1b8] sm:$0xf]
                %295 = vst [vmem:[%s183 + $0xdc] sm:$0xf] %v294
                %v296 = vld [vmem:[%s182 + $0x1c0] sm:$0xf]
                %297 = vst [vmem:[%s183 + $0xe0] sm:$0xf] %v296
                %v298 = vld [vmem:[%s182 + $0x1c8] sm:$0xf]
                %299 = vst [vmem:[%s183 + $0xe4] sm:$0xf] %v298
                %v300 = vld [vmem:[%s182 + $0x1d0] sm:$0xf]
                %301 = vst [vmem:[%s183 + $0xe8] sm:$0xf] %v300
                %v302 = vld [vmem:[%s182 + $0x1d8] sm:$0xf]
                %303 = vst [vmem:[%s183 + $0xec] sm:$0xf] %v302
                %v304 = vld [vmem:[%s182 + $0x1e0] sm:$0xf]
                %305 = vst [vmem:[%s183 + $0xf0] sm:$0xf] %v304
                %v306 = vld [vmem:[%s182 + $0x1e8] sm:$0xf]
                %307 = vst [vmem:[%s183 + $0xf4] sm:$0xf] %v306
                %v308 = vld [vmem:[%s182 + $0x1f0] sm:$0xf]
                %309 = vst [vmem:[%s183 + $0xf8] sm:$0xf] %v308
                %v310 = vld [vmem:[%s182 + $0x1f8] sm:$0xf]
                %311 = vst [vmem:[%s183 + $0xfc] sm:$0xf] %v310
                %v312 = vld [vmem:[%s182 + $0x200] sm:$0xf]
                %313 = vst [vmem:[%s183 + $0x100] sm:$0xf] %v312
                %v314 = vld [vmem:[%s182 + $0x208] sm:$0xf]
                %315 = vst [vmem:[%s183 + $0x104] sm:$0xf] %v314
                %v316 = vld [vmem:[%s182 + $0x210] sm:$0xf]
                %317 = vst [vmem:[%s183 + $0x108] sm:$0xf] %v316
                %v318 = vld [vmem:[%s182 + $0x218] sm:$0xf]
                %319 = vst [vmem:[%s183 + $0x10c] sm:$0xf] %v318
                %v320 = vld [vmem:[%s182 + $0x220] sm:$0xf]
                %321 = vst [vmem:[%s183 + $0x110] sm:$0xf] %v320
                %v322 = vld [vmem:[%s182 + $0x228] sm:$0xf]
                %323 = vst [vmem:[%s183 + $0x114] sm:$0xf] %v322
                %v324 = vld [vmem:[%s182 + $0x230] sm:$0xf]
                %325 = vst [vmem:[%s183 + $0x118] sm:$0xf] %v324
                %v326 = vld [vmem:[%s182 + $0x238] sm:$0xf]
                %327 = vst [vmem:[%s183 + $0x11c] sm:$0xf] %v326
                %v328 = vld [vmem:[%s182 + $0x240] sm:$0xf]
                %329 = vst [vmem:[%s183 + $0x120] sm:$0xf] %v328
                %v330 = vld [vmem:[%s182 + $0x248] sm:$0xf]
                %331 = vst [vmem:[%s183 + $0x124] sm:$0xf] %v330
                %v332 = vld [vmem:[%s182 + $0x250] sm:$0xf]
                %333 = vst [vmem:[%s183 + $0x128] sm:$0xf] %v332
                %v334 = vld [vmem:[%s182 + $0x258] sm:$0xf]
                %335 = vst [vmem:[%s183 + $0x12c] sm:$0xf] %v334
                %v336 = vld [vmem:[%s182 + $0x260] sm:$0xf]
                %337 = vst [vmem:[%s183 + $0x130] sm:$0xf] %v336
                %v338 = vld [vmem:[%s182 + $0x268] sm:$0xf]
                %339 = vst [vmem:[%s183 + $0x134] sm:$0xf] %v338
                %v340 = vld [vmem:[%s182 + $0x270] sm:$0xf]
                %341 = vst [vmem:[%s183 + $0x138] sm:$0xf] %v340
                %v342 = vld [vmem:[%s182 + $0x278] sm:$0xf]
                %343 = vst [vmem:[%s183 + $0x13c] sm:$0xf] %v342
                %v344 = vld [vmem:[%s182 + $0x280] sm:$0xf]
                %345 = vst [vmem:[%s183 + $0x140] sm:$0xf] %v344
                %v346 = vld [vmem:[%s182 + $0x288] sm:$0xf]
                %347 = vst [vmem:[%s183 + $0x144] sm:$0xf] %v346
                %v348 = vld [vmem:[%s182 + $0x290] sm:$0xf]
                %349 = vst [vmem:[%s183 + $0x148] sm:$0xf] %v348
                %v350 = vld [vmem:[%s182 + $0x298] sm:$0xf]
                %351 = vst [vmem:[%s183 + $0x14c] sm:$0xf] %v350
                %v352 = vld [vmem:[%s182 + $0x2a0] sm:$0xf]
                %353 = vst [vmem:[%s183 + $0x150] sm:$0xf] %v352
                %v354 = vld [vmem:[%s182 + $0x2a8] sm:$0xf]
                %355 = vst [vmem:[%s183 + $0x154] sm:$0xf] %v354
                %v356 = vld [vmem:[%s182 + $0x2b0] sm:$0xf]
                %357 = vst [vmem:[%s183 + $0x158] sm:$0xf] %v356
                %v358 = vld [vmem:[%s182 + $0x2b8] sm:$0xf]
                %359 = vst [vmem:[%s183 + $0x15c] sm:$0xf] %v358
                %v360 = vld [vmem:[%s182 + $0x2c0] sm:$0xf]
                %361 = vst [vmem:[%s183 + $0x160] sm:$0xf] %v360
                %v362 = vld [vmem:[%s182 + $0x2c8] sm:$0xf]
                %363 = vst [vmem:[%s183 + $0x164] sm:$0xf] %v362
                %v364 = vld [vmem:[%s182 + $0x2d0] sm:$0xf]
                %365 = vst [vmem:[%s183 + $0x168] sm:$0xf] %v364
                %v366 = vld [vmem:[%s182 + $0x2d8] sm:$0xf]
                %367 = vst [vmem:[%s183 + $0x16c] sm:$0xf] %v366
                %v368 = vld [vmem:[%s182 + $0x2e0] sm:$0xf]
                %369 = vst [vmem:[%s183 + $0x170] sm:$0xf] %v368
                %v370 = vld [vmem:[%s182 + $0x2e8] sm:$0xf]
                %371 = vst [vmem:[%s183 + $0x174] sm:$0xf] %v370
                %v372 = vld [vmem:[%s182 + $0x2f0] sm:$0xf]
                %373 = vst [vmem:[%s183 + $0x178] sm:$0xf] %v372
                %v374 = vld [vmem:[%s182 + $0x2f8] sm:$0xf]
                %375 = vst [vmem:[%s183 + $0x17c] sm:$0xf] %v374
                %v376 = vld [vmem:[%s182 + $0x300] sm:$0xf]
                %377 = vst [vmem:[%s183 + $0x180] sm:$0xf] %v376
                %v378 = vld [vmem:[%s182 + $0x308] sm:$0xf]
                %379 = vst [vmem:[%s183 + $0x184] sm:$0xf] %v378
                %v380 = vld [vmem:[%s182 + $0x310] sm:$0xf]
                %381 = vst [vmem:[%s183 + $0x188] sm:$0xf] %v380
                %v382 = vld [vmem:[%s182 + $0x318] sm:$0xf]
                %383 = vst [vmem:[%s183 + $0x18c] sm:$0xf] %v382
                %v384 = vld [vmem:[%s182 + $0x320] sm:$0xf]
                %385 = vst [vmem:[%s183 + $0x190] sm:$0xf] %v384
                %v386 = vld [vmem:[%s182 + $0x328] sm:$0xf]
                %387 = vst [vmem:[%s183 + $0x194] sm:$0xf] %v386
                %v388 = vld [vmem:[%s182 + $0x330] sm:$0xf]
                %389 = vst [vmem:[%s183 + $0x198] sm:$0xf] %v388
                %v390 = vld [vmem:[%s182 + $0x338] sm:$0xf]
                %391 = vst [vmem:[%s183 + $0x19c] sm:$0xf] %v390
                %v392 = vld [vmem:[%s182 + $0x340] sm:$0xf]
                %393 = vst [vmem:[%s183 + $0x1a0] sm:$0xf] %v392
                %v394 = vld [vmem:[%s182 + $0x348] sm:$0xf]
                %395 = vst [vmem:[%s183 + $0x1a4] sm:$0xf] %v394
                %v396 = vld [vmem:[%s182 + $0x350] sm:$0xf]
                %397 = vst [vmem:[%s183 + $0x1a8] sm:$0xf] %v396
                %v398 = vld [vmem:[%s182 + $0x358] sm:$0xf]
                %399 = vst [vmem:[%s183 + $0x1ac] sm:$0xf] %v398
                %v400 = vld [vmem:[%s182 + $0x360] sm:$0xf]
                %401 = vst [vmem:[%s183 + $0x1b0] sm:$0xf] %v400
                %v402 = vld [vmem:[%s182 + $0x368] sm:$0xf]
                %403 = vst [vmem:[%s183 + $0x1b4] sm:$0xf] %v402
                %v404 = vld [vmem:[%s182 + $0x370] sm:$0xf]
                %405 = vst [vmem:[%s183 + $0x1b8] sm:$0xf] %v404
                %v406 = vld [vmem:[%s182 + $0x378] sm:$0xf]
                %407 = vst [vmem:[%s183 + $0x1bc] sm:$0xf] %v406
                %v408 = vld [vmem:[%s182 + $0x380] sm:$0xf]
                %409 = vst [vmem:[%s183 + $0x1c0] sm:$0xf] %v408
                %v410 = vld [vmem:[%s182 + $0x388] sm:$0xf]
                %411 = vst [vmem:[%s183 + $0x1c4] sm:$0xf] %v410
                %v412 = vld [vmem:[%s182 + $0x390] sm:$0xf]
                %413 = vst [vmem:[%s183 + $0x1c8] sm:$0xf] %v412
                %v414 = vld [vmem:[%s182 + $0x398] sm:$0xf]
                %415 = vst [vmem:[%s183 + $0x1cc] sm:$0xf] %v414
                %v416 = vld [vmem:[%s182 + $0x3a0] sm:$0xf]
                %417 = vst [vmem:[%s183 + $0x1d0] sm:$0xf] %v416
                %v418 = vld [vmem:[%s182 + $0x3a8] sm:$0xf]
                %419 = vst [vmem:[%s183 + $0x1d4] sm:$0xf] %v418
                %v420 = vld [vmem:[%s182 + $0x3b0] sm:$0xf]
                %421 = vst [vmem:[%s183 + $0x1d8] sm:$0xf] %v420
                %v422 = vld [vmem:[%s182 + $0x3b8] sm:$0xf]
                %423 = vst [vmem:[%s183 + $0x1dc] sm:$0xf] %v422
                %v424 = vld [vmem:[%s182 + $0x3c0] sm:$0xf]
                %425 = vst [vmem:[%s183 + $0x1e0] sm:$0xf] %v424
                %v426 = vld [vmem:[%s182 + $0x3c8] sm:$0xf]
                %427 = vst [vmem:[%s183 + $0x1e4] sm:$0xf] %v426
                %v428 = vld [vmem:[%s182 + $0x3d0] sm:$0xf]
                %429 = vst [vmem:[%s183 + $0x1e8] sm:$0xf] %v428
                %v430 = vld [vmem:[%s182 + $0x3d8] sm:$0xf]
                %431 = vst [vmem:[%s183 + $0x1ec] sm:$0xf] %v430
                %v432 = vld [vmem:[%s182 + $0x3e0] sm:$0xf]
                %433 = vst [vmem:[%s183 + $0x1f0] sm:$0xf] %v432
                %v434 = vld [vmem:[%s182 + $0x3e8] sm:$0xf]
                %435 = vst [vmem:[%s183 + $0x1f4] sm:$0xf] %v434
                %v436 = vld [vmem:[%s182 + $0x3f0] sm:$0xf]
                %437 = vst [vmem:[%s183 + $0x1f8] sm:$0xf] %v436
                %v438 = vld [vmem:[%s182 + $0x3f8] sm:$0xf]
                %439 = vst [vmem:[%s183 + $0x1fc] sm:$0xf] %v438
                %v440 = vld [vmem:[%s182 + $0x400] sm:$0xf]
                %441 = vst [vmem:[%s183 + $0x200] sm:$0xf] %v440
                %v442 = vld [vmem:[%s182 + $0x408] sm:$0xf]
                %443 = vst [vmem:[%s183 + $0x204] sm:$0xf] %v442
                %v444 = vld [vmem:[%s182 + $0x410] sm:$0xf]
                %445 = vst [vmem:[%s183 + $0x208] sm:$0xf] %v444
                %v446 = vld [vmem:[%s182 + $0x418] sm:$0xf]
                %447 = vst [vmem:[%s183 + $0x20c] sm:$0xf] %v446
                %v448 = vld [vmem:[%s182 + $0x420] sm:$0xf]
                %449 = vst [vmem:[%s183 + $0x210] sm:$0xf] %v448
                %v450 = vld [vmem:[%s182 + $0x428] sm:$0xf]
                %451 = vst [vmem:[%s183 + $0x214] sm:$0xf] %v450
                %v452 = vld [vmem:[%s182 + $0x430] sm:$0xf]
                %453 = vst [vmem:[%s183 + $0x218] sm:$0xf] %v452
                %v454 = vld [vmem:[%s182 + $0x438] sm:$0xf]
                %455 = vst [vmem:[%s183 + $0x21c] sm:$0xf] %v454
                %v456 = vld [vmem:[%s182 + $0x440] sm:$0xf]
                %457 = vst [vmem:[%s183 + $0x220] sm:$0xf] %v456
                %v458 = vld [vmem:[%s182 + $0x448] sm:$0xf]
                %459 = vst [vmem:[%s183 + $0x224] sm:$0xf] %v458
                %v460 = vld [vmem:[%s182 + $0x450] sm:$0xf]
                %461 = vst [vmem:[%s183 + $0x228] sm:$0xf] %v460
                %v462 = vld [vmem:[%s182 + $0x458] sm:$0xf]
                %463 = vst [vmem:[%s183 + $0x22c] sm:$0xf] %v462
                %v464 = vld [vmem:[%s182 + $0x460] sm:$0xf]
                %465 = vst [vmem:[%s183 + $0x230] sm:$0xf] %v464
                %v466 = vld [vmem:[%s182 + $0x468] sm:$0xf]
                %467 = vst [vmem:[%s183 + $0x234] sm:$0xf] %v466
                %v468 = vld [vmem:[%s182 + $0x470] sm:$0xf]
                %469 = vst [vmem:[%s183 + $0x238] sm:$0xf] %v468
                %v470 = vld [vmem:[%s182 + $0x478] sm:$0xf]
                %471 = vst [vmem:[%s183 + $0x23c] sm:$0xf] %v470
                %v472 = vld [vmem:[%s182 + $0x480] sm:$0xf]
                %473 = vst [vmem:[%s183 + $0x240] sm:$0xf] %v472
                %v474 = vld [vmem:[%s182 + $0x488] sm:$0xf]
                %475 = vst [vmem:[%s183 + $0x244] sm:$0xf] %v474
                %v476 = vld [vmem:[%s182 + $0x490] sm:$0xf]
                %477 = vst [vmem:[%s183 + $0x248] sm:$0xf] %v476
                %v478 = vld [vmem:[%s182 + $0x498] sm:$0xf]
                %479 = vst [vmem:[%s183 + $0x24c] sm:$0xf] %v478
                %v480 = vld [vmem:[%s182 + $0x4a0] sm:$0xf]
                %481 = vst [vmem:[%s183 + $0x250] sm:$0xf] %v480
                %v482 = vld [vmem:[%s182 + $0x4a8] sm:$0xf]
                %483 = vst [vmem:[%s183 + $0x254] sm:$0xf] %v482
                %v484 = vld [vmem:[%s182 + $0x4b0] sm:$0xf]
                %485 = vst [vmem:[%s183 + $0x258] sm:$0xf] %v484
                %v486 = vld [vmem:[%s182 + $0x4b8] sm:$0xf]
                %487 = vst [vmem:[%s183 + $0x25c] sm:$0xf] %v486
                %v488 = vld [vmem:[%s182 + $0x4c0] sm:$0xf]
                %489 = vst [vmem:[%s183 + $0x260] sm:$0xf] %v488
                %v490 = vld [vmem:[%s182 + $0x4c8] sm:$0xf]
                %491 = vst [vmem:[%s183 + $0x264] sm:$0xf] %v490
                %v492 = vld [vmem:[%s182 + $0x4d0] sm:$0xf]
                %493 = vst [vmem:[%s183 + $0x268] sm:$0xf] %v492
                %v494 = vld [vmem:[%s182 + $0x4d8] sm:$0xf]
                %495 = vst [vmem:[%s183 + $0x26c] sm:$0xf] %v494
                %v496 = vld [vmem:[%s182 + $0x4e0] sm:$0xf]
                %497 = vst [vmem:[%s183 + $0x270] sm:$0xf] %v496
                %v498 = vld [vmem:[%s182 + $0x4e8] sm:$0xf]
                %499 = vst [vmem:[%s183 + $0x274] sm:$0xf] %v498
                %v500 = vld [vmem:[%s182 + $0x4f0] sm:$0xf]
                %501 = vst [vmem:[%s183 + $0x278] sm:$0xf] %v500
                %v502 = vld [vmem:[%s182 + $0x4f8] sm:$0xf]
                %503 = vst [vmem:[%s183 + $0x27c] sm:$0xf] %v502
                %v504 = vld [vmem:[%s182 + $0x500] sm:$0xf]
                %505 = vst [vmem:[%s183 + $0x280] sm:$0xf] %v504
                %v506 = vld [vmem:[%s182 + $0x508] sm:$0xf]
                %507 = vst [vmem:[%s183 + $0x284] sm:$0xf] %v506
                %v508 = vld [vmem:[%s182 + $0x510] sm:$0xf]
                %509 = vst [vmem:[%s183 + $0x288] sm:$0xf] %v508
                %v510 = vld [vmem:[%s182 + $0x518] sm:$0xf]
                %511 = vst [vmem:[%s183 + $0x28c] sm:$0xf] %v510
                %v512 = vld [vmem:[%s182 + $0x520] sm:$0xf]
                %513 = vst [vmem:[%s183 + $0x290] sm:$0xf] %v512
                %v514 = vld [vmem:[%s182 + $0x528] sm:$0xf]
                %515 = vst [vmem:[%s183 + $0x294] sm:$0xf] %v514
                %v516 = vld [vmem:[%s182 + $0x530] sm:$0xf]
                %517 = vst [vmem:[%s183 + $0x298] sm:$0xf] %v516
                %v518 = vld [vmem:[%s182 + $0x538] sm:$0xf]
                %519 = vst [vmem:[%s183 + $0x29c] sm:$0xf] %v518
                %v520 = vld [vmem:[%s182 + $0x540] sm:$0xf]
                %521 = vst [vmem:[%s183 + $0x2a0] sm:$0xf] %v520
                %v522 = vld [vmem:[%s182 + $0x548] sm:$0xf]
                %523 = vst [vmem:[%s183 + $0x2a4] sm:$0xf] %v522
                %v524 = vld [vmem:[%s182 + $0x550] sm:$0xf]
                %525 = vst [vmem:[%s183 + $0x2a8] sm:$0xf] %v524
                %v526 = vld [vmem:[%s182 + $0x558] sm:$0xf]
                %527 = vst [vmem:[%s183 + $0x2ac] sm:$0xf] %v526
                %v528 = vld [vmem:[%s182 + $0x560] sm:$0xf]
                %529 = vst [vmem:[%s183 + $0x2b0] sm:$0xf] %v528
                %v530 = vld [vmem:[%s182 + $0x568] sm:$0xf]
                %531 = vst [vmem:[%s183 + $0x2b4] sm:$0xf] %v530
                %v532 = vld [vmem:[%s182 + $0x570] sm:$0xf]
                %533 = vst [vmem:[%s183 + $0x2b8] sm:$0xf] %v532
                %v534 = vld [vmem:[%s182 + $0x578] sm:$0xf]
                %535 = vst [vmem:[%s183 + $0x2bc] sm:$0xf] %v534
                %v536 = vld [vmem:[%s182 + $0x580] sm:$0xf]
                %537 = vst [vmem:[%s183 + $0x2c0] sm:$0xf] %v536
                %v538 = vld [vmem:[%s182 + $0x588] sm:$0xf]
                %539 = vst [vmem:[%s183 + $0x2c4] sm:$0xf] %v538
                %v540 = vld [vmem:[%s182 + $0x590] sm:$0xf]
                %541 = vst [vmem:[%s183 + $0x2c8] sm:$0xf] %v540
                %v542 = vld [vmem:[%s182 + $0x598] sm:$0xf]
                %543 = vst [vmem:[%s183 + $0x2cc] sm:$0xf] %v542
                %v544 = vld [vmem:[%s182 + $0x5a0] sm:$0xf]
                %545 = vst [vmem:[%s183 + $0x2d0] sm:$0xf] %v544
                %v546 = vld [vmem:[%s182 + $0x5a8] sm:$0xf]
                %547 = vst [vmem:[%s183 + $0x2d4] sm:$0xf] %v546
                %v548 = vld [vmem:[%s182 + $0x5b0] sm:$0xf]
                %549 = vst [vmem:[%s183 + $0x2d8] sm:$0xf] %v548
                %v550 = vld [vmem:[%s182 + $0x5b8] sm:$0xf]
                %551 = vst [vmem:[%s183 + $0x2dc] sm:$0xf] %v550
                %v552 = vld [vmem:[%s182 + $0x5c0] sm:$0xf]
                %553 = vst [vmem:[%s183 + $0x2e0] sm:$0xf] %v552
                %v554 = vld [vmem:[%s182 + $0x5c8] sm:$0xf]
                %555 = vst [vmem:[%s183 + $0x2e4] sm:$0xf] %v554
                %v556 = vld [vmem:[%s182 + $0x5d0] sm:$0xf]
                %557 = vst [vmem:[%s183 + $0x2e8] sm:$0xf] %v556
                %v558 = vld [vmem:[%s182 + $0x5d8] sm:$0xf]
                %559 = vst [vmem:[%s183 + $0x2ec] sm:$0xf] %v558
                %v560 = vld [vmem:[%s182 + $0x5e0] sm:$0xf]
                %561 = vst [vmem:[%s183 + $0x2f0] sm:$0xf] %v560
                %v562 = vld [vmem:[%s182 + $0x5e8] sm:$0xf]
                %563 = vst [vmem:[%s183 + $0x2f4] sm:$0xf] %v562
                %v564 = vld [vmem:[%s182 + $0x5f0] sm:$0xf]
                %565 = vst [vmem:[%s183 + $0x2f8] sm:$0xf] %v564
                %v566 = vld [vmem:[%s182 + $0x5f8] sm:$0xf]
                %567 = vst [vmem:[%s183 + $0x2fc] sm:$0xf] %v566
                %v568 = vld [vmem:[%s182 + $0x600] sm:$0xf]
                %569 = vst [vmem:[%s183 + $0x300] sm:$0xf] %v568
                %v570 = vld [vmem:[%s182 + $0x608] sm:$0xf]
                %571 = vst [vmem:[%s183 + $0x304] sm:$0xf] %v570
                %v572 = vld [vmem:[%s182 + $0x610] sm:$0xf]
                %573 = vst [vmem:[%s183 + $0x308] sm:$0xf] %v572
                %v574 = vld [vmem:[%s182 + $0x618] sm:$0xf]
                %575 = vst [vmem:[%s183 + $0x30c] sm:$0xf] %v574
                %v576 = vld [vmem:[%s182 + $0x620] sm:$0xf]
                %577 = vst [vmem:[%s183 + $0x310] sm:$0xf] %v576
                %v578 = vld [vmem:[%s182 + $0x628] sm:$0xf]
                %579 = vst [vmem:[%s183 + $0x314] sm:$0xf] %v578
                %v580 = vld [vmem:[%s182 + $0x630] sm:$0xf]
                %581 = vst [vmem:[%s183 + $0x318] sm:$0xf] %v580
                %v582 = vld [vmem:[%s182 + $0x638] sm:$0xf]
                %583 = vst [vmem:[%s183 + $0x31c] sm:$0xf] %v582
                %v584 = vld [vmem:[%s182 + $0x640] sm:$0xf]
                %585 = vst [vmem:[%s183 + $0x320] sm:$0xf] %v584
                %v586 = vld [vmem:[%s182 + $0x648] sm:$0xf]
                %587 = vst [vmem:[%s183 + $0x324] sm:$0xf] %v586
                %v588 = vld [vmem:[%s182 + $0x650] sm:$0xf]
                %589 = vst [vmem:[%s183 + $0x328] sm:$0xf] %v588
                %v590 = vld [vmem:[%s182 + $0x658] sm:$0xf]
                %591 = vst [vmem:[%s183 + $0x32c] sm:$0xf] %v590
                %v592 = vld [vmem:[%s182 + $0x660] sm:$0xf]
                %593 = vst [vmem:[%s183 + $0x330] sm:$0xf] %v592
                %v594 = vld [vmem:[%s182 + $0x668] sm:$0xf]
                %595 = vst [vmem:[%s183 + $0x334] sm:$0xf] %v594
                %v596 = vld [vmem:[%s182 + $0x670] sm:$0xf]
                %597 = vst [vmem:[%s183 + $0x338] sm:$0xf] %v596
                %v598 = vld [vmem:[%s182 + $0x678] sm:$0xf]
                %599 = vst [vmem:[%s183 + $0x33c] sm:$0xf] %v598
                %v600 = vld [vmem:[%s182 + $0x680] sm:$0xf]
                %601 = vst [vmem:[%s183 + $0x340] sm:$0xf] %v600
                %v602 = vld [vmem:[%s182 + $0x688] sm:$0xf]
                %603 = vst [vmem:[%s183 + $0x344] sm:$0xf] %v602
                %v604 = vld [vmem:[%s182 + $0x690] sm:$0xf]
                %605 = vst [vmem:[%s183 + $0x348] sm:$0xf] %v604
                %v606 = vld [vmem:[%s182 + $0x698] sm:$0xf]
                %607 = vst [vmem:[%s183 + $0x34c] sm:$0xf] %v606
                %v608 = vld [vmem:[%s182 + $0x6a0] sm:$0xf]
                %609 = vst [vmem:[%s183 + $0x350] sm:$0xf] %v608
                %v610 = vld [vmem:[%s182 + $0x6a8] sm:$0xf]
                %611 = vst [vmem:[%s183 + $0x354] sm:$0xf] %v610
                %v612 = vld [vmem:[%s182 + $0x6b0] sm:$0xf]
                %613 = vst [vmem:[%s183 + $0x358] sm:$0xf] %v612
                %v614 = vld [vmem:[%s182 + $0x6b8] sm:$0xf]
                %615 = vst [vmem:[%s183 + $0x35c] sm:$0xf] %v614
                %v616 = vld [vmem:[%s182 + $0x6c0] sm:$0xf]
                %617 = vst [vmem:[%s183 + $0x360] sm:$0xf] %v616
                %v618 = vld [vmem:[%s182 + $0x6c8] sm:$0xf]
                %619 = vst [vmem:[%s183 + $0x364] sm:$0xf] %v618
                %v620 = vld [vmem:[%s182 + $0x6d0] sm:$0xf]
                %621 = vst [vmem:[%s183 + $0x368] sm:$0xf] %v620
                %v622 = vld [vmem:[%s182 + $0x6d8] sm:$0xf]
                %623 = vst [vmem:[%s183 + $0x36c] sm:$0xf] %v622
                %v624 = vld [vmem:[%s182 + $0x6e0] sm:$0xf]
                %625 = vst [vmem:[%s183 + $0x370] sm:$0xf] %v624
                %v626 = vld [vmem:[%s182 + $0x6e8] sm:$0xf]
                %627 = vst [vmem:[%s183 + $0x374] sm:$0xf] %v626
                %v628 = vld [vmem:[%s182 + $0x6f0] sm:$0xf]
                %629 = vst [vmem:[%s183 + $0x378] sm:$0xf] %v628
                %v630 = vld [vmem:[%s182 + $0x6f8] sm:$0xf]
                %631 = vst [vmem:[%s183 + $0x37c] sm:$0xf] %v630
                %v632 = vld [vmem:[%s182 + $0x700] sm:$0xf]
                %633 = vst [vmem:[%s183 + $0x380] sm:$0xf] %v632
                %v634 = vld [vmem:[%s182 + $0x708] sm:$0xf]
                %635 = vst [vmem:[%s183 + $0x384] sm:$0xf] %v634
                %v636 = vld [vmem:[%s182 + $0x710] sm:$0xf]
                %637 = vst [vmem:[%s183 + $0x388] sm:$0xf] %v636
                %v638 = vld [vmem:[%s182 + $0x718] sm:$0xf]
                %639 = vst [vmem:[%s183 + $0x38c] sm:$0xf] %v638
                %v640 = vld [vmem:[%s182 + $0x720] sm:$0xf]
                %641 = vst [vmem:[%s183 + $0x390] sm:$0xf] %v640
                %v642 = vld [vmem:[%s182 + $0x728] sm:$0xf]
                %643 = vst [vmem:[%s183 + $0x394] sm:$0xf] %v642
                %v644 = vld [vmem:[%s182 + $0x730] sm:$0xf]
                %645 = vst [vmem:[%s183 + $0x398] sm:$0xf] %v644
                %v646 = vld [vmem:[%s182 + $0x738] sm:$0xf]
                %647 = vst [vmem:[%s183 + $0x39c] sm:$0xf] %v646
                %v648 = vld [vmem:[%s182 + $0x740] sm:$0xf]
                %649 = vst [vmem:[%s183 + $0x3a0] sm:$0xf] %v648
                %v650 = vld [vmem:[%s182 + $0x748] sm:$0xf]
                %651 = vst [vmem:[%s183 + $0x3a4] sm:$0xf] %v650
                %v652 = vld [vmem:[%s182 + $0x750] sm:$0xf]
                %653 = vst [vmem:[%s183 + $0x3a8] sm:$0xf] %v652
                %v654 = vld [vmem:[%s182 + $0x758] sm:$0xf]
                %655 = vst [vmem:[%s183 + $0x3ac] sm:$0xf] %v654
                %v656 = vld [vmem:[%s182 + $0x760] sm:$0xf]
                %657 = vst [vmem:[%s183 + $0x3b0] sm:$0xf] %v656
                %v658 = vld [vmem:[%s182 + $0x768] sm:$0xf]
                %659 = vst [vmem:[%s183 + $0x3b4] sm:$0xf] %v658
                %v660 = vld [vmem:[%s182 + $0x770] sm:$0xf]
                %661 = vst [vmem:[%s183 + $0x3b8] sm:$0xf] %v660
                %v662 = vld [vmem:[%s182 + $0x778] sm:$0xf]
                %663 = vst [vmem:[%s183 + $0x3bc] sm:$0xf] %v662
                %v664 = vld [vmem:[%s182 + $0x780] sm:$0xf]
                %665 = vst [vmem:[%s183 + $0x3c0] sm:$0xf] %v664
                %v666 = vld [vmem:[%s182 + $0x788] sm:$0xf]
                %667 = vst [vmem:[%s183 + $0x3c4] sm:$0xf] %v666
                %v668 = vld [vmem:[%s182 + $0x790] sm:$0xf]
                %669 = vst [vmem:[%s183 + $0x3c8] sm:$0xf] %v668
                %v670 = vld [vmem:[%s182 + $0x798] sm:$0xf]
                %671 = vst [vmem:[%s183 + $0x3cc] sm:$0xf] %v670
                %v672 = vld [vmem:[%s182 + $0x7a0] sm:$0xf]
                %673 = vst [vmem:[%s183 + $0x3d0] sm:$0xf] %v672
                %v674 = vld [vmem:[%s182 + $0x7a8] sm:$0xf]
                %675 = vst [vmem:[%s183 + $0x3d4] sm:$0xf] %v674
                %v676 = vld [vmem:[%s182 + $0x7b0] sm:$0xf]
                %677 = vst [vmem:[%s183 + $0x3d8] sm:$0xf] %v676
                %v678 = vld [vmem:[%s182 + $0x7b8] sm:$0xf]
                %679 = vst [vmem:[%s183 + $0x3dc] sm:$0xf] %v678
                %v680 = vld [vmem:[%s182 + $0x7c0] sm:$0xf]
                %681 = vst [vmem:[%s183 + $0x3e0] sm:$0xf] %v680
                %v682 = vld [vmem:[%s182 + $0x7c8] sm:$0xf]
                %683 = vst [vmem:[%s183 + $0x3e4] sm:$0xf] %v682
                %v684 = vld [vmem:[%s182 + $0x7d0] sm:$0xf]
                %685 = vst [vmem:[%s183 + $0x3e8] sm:$0xf] %v684
                %v686 = vld [vmem:[%s182 + $0x7d8] sm:$0xf]
                %687 = vst [vmem:[%s183 + $0x3ec] sm:$0xf] %v686
                %v688 = vld [vmem:[%s182 + $0x7e0] sm:$0xf]
                %689 = vst [vmem:[%s183 + $0x3f0] sm:$0xf] %v688
                %v690 = vld [vmem:[%s182 + $0x7e8] sm:$0xf]
                %691 = vst [vmem:[%s183 + $0x3f4] sm:$0xf] %v690
                %v692 = vld [vmem:[%s182 + $0x7f0] sm:$0xf]
                %693 = vst [vmem:[%s183 + $0x3f8] sm:$0xf] %v692
                %v694 = vld [vmem:[%s182 + $0x7f8] sm:$0xf]
                %695 = vst [vmem:[%s183 + $0x3fc] sm:$0xf] %v694
                %v696 = vld [vmem:[%s182 + $0x800] sm:$0xf]
                %697 = vst [vmem:[%s183 + $0x400] sm:$0xf] %v696
                %v698 = vld [vmem:[%s182 + $0x808] sm:$0xf]
                %699 = vst [vmem:[%s183 + $0x404] sm:$0xf] %v698
                %v700 = vld [vmem:[%s182 + $0x810] sm:$0xf]
                %701 = vst [vmem:[%s183 + $0x408] sm:$0xf] %v700
                %v702 = vld [vmem:[%s182 + $0x818] sm:$0xf]
                %703 = vst [vmem:[%s183 + $0x40c] sm:$0xf] %v702
                %v704 = vld [vmem:[%s182 + $0x820] sm:$0xf]
                %705 = vst [vmem:[%s183 + $0x410] sm:$0xf] %v704
                %v706 = vld [vmem:[%s182 + $0x828] sm:$0xf]
                %707 = vst [vmem:[%s183 + $0x414] sm:$0xf] %v706
                %v708 = vld [vmem:[%s182 + $0x830] sm:$0xf]
                %709 = vst [vmem:[%s183 + $0x418] sm:$0xf] %v708
                %v710 = vld [vmem:[%s182 + $0x838] sm:$0xf]
                %711 = vst [vmem:[%s183 + $0x41c] sm:$0xf] %v710
                %v712 = vld [vmem:[%s182 + $0x840] sm:$0xf]
                %713 = vst [vmem:[%s183 + $0x420] sm:$0xf] %v712
                %v714 = vld [vmem:[%s182 + $0x848] sm:$0xf]
                %715 = vst [vmem:[%s183 + $0x424] sm:$0xf] %v714
                %v716 = vld [vmem:[%s182 + $0x850] sm:$0xf]
                %717 = vst [vmem:[%s183 + $0x428] sm:$0xf] %v716
                %v718 = vld [vmem:[%s182 + $0x858] sm:$0xf]
                %719 = vst [vmem:[%s183 + $0x42c] sm:$0xf] %v718
                %v720 = vld [vmem:[%s182 + $0x860] sm:$0xf]
                %721 = vst [vmem:[%s183 + $0x430] sm:$0xf] %v720
                %v722 = vld [vmem:[%s182 + $0x868] sm:$0xf]
                %723 = vst [vmem:[%s183 + $0x434] sm:$0xf] %v722
                %v724 = vld [vmem:[%s182 + $0x870] sm:$0xf]
                %725 = vst [vmem:[%s183 + $0x438] sm:$0xf] %v724
                %v726 = vld [vmem:[%s182 + $0x878] sm:$0xf]
                %727 = vst [vmem:[%s183 + $0x43c] sm:$0xf] %v726
                %v728 = vld [vmem:[%s182 + $0x880] sm:$0xf]
                %729 = vst [vmem:[%s183 + $0x440] sm:$0xf] %v728
                %v730 = vld [vmem:[%s182 + $0x888] sm:$0xf]
                %731 = vst [vmem:[%s183 + $0x444] sm:$0xf] %v730
                %v732 = vld [vmem:[%s182 + $0x890] sm:$0xf]
                %733 = vst [vmem:[%s183 + $0x448] sm:$0xf] %v732
                %v734 = vld [vmem:[%s182 + $0x898] sm:$0xf]
                %735 = vst [vmem:[%s183 + $0x44c] sm:$0xf] %v734
                %v736 = vld [vmem:[%s182 + $0x8a0] sm:$0xf]
                %737 = vst [vmem:[%s183 + $0x450] sm:$0xf] %v736
                %v738 = vld [vmem:[%s182 + $0x8a8] sm:$0xf]
                %739 = vst [vmem:[%s183 + $0x454] sm:$0xf] %v738
                %v740 = vld [vmem:[%s182 + $0x8b0] sm:$0xf]
                %741 = vst [vmem:[%s183 + $0x458] sm:$0xf] %v740
                %v742 = vld [vmem:[%s182 + $0x8b8] sm:$0xf]
                %743 = vst [vmem:[%s183 + $0x45c] sm:$0xf] %v742
                %v744 = vld [vmem:[%s182 + $0x8c0] sm:$0xf]
                %745 = vst [vmem:[%s183 + $0x460] sm:$0xf] %v744
                %v746 = vld [vmem:[%s182 + $0x8c8] sm:$0xf]
                %747 = vst [vmem:[%s183 + $0x464] sm:$0xf] %v746
                %v748 = vld [vmem:[%s182 + $0x8d0] sm:$0xf]
                %749 = vst [vmem:[%s183 + $0x468] sm:$0xf] %v748
                %v750 = vld [vmem:[%s182 + $0x8d8] sm:$0xf]
                %751 = vst [vmem:[%s183 + $0x46c] sm:$0xf] %v750
                %v752 = vld [vmem:[%s182 + $0x8e0] sm:$0xf]
                %753 = vst [vmem:[%s183 + $0x470] sm:$0xf] %v752
                %v754 = vld [vmem:[%s182 + $0x8e8] sm:$0xf]
                %755 = vst [vmem:[%s183 + $0x474] sm:$0xf] %v754
                %v756 = vld [vmem:[%s182 + $0x8f0] sm:$0xf]
                %757 = vst [vmem:[%s183 + $0x478] sm:$0xf] %v756
                %v758 = vld [vmem:[%s182 + $0x8f8] sm:$0xf]
                %759 = vst [vmem:[%s183 + $0x47c] sm:$0xf] %v758
              $region41: #{deformable_conv_block_forward.1} parent=35 // loop_footer
                %s181 = sadd.s32 1, %s177
              $region42: #{deformable_conv_block_forward.1} parent=35 // loop_footer_branch
                %176 = sbr.rel target = $region38
              $region43: #{deformable_conv_block_forward.1} parent=35 // loop_exit
                _
            $region36: #{deformable_conv_block_forward.1} parent=27 // pred_fallthru
              _
          $region28: #{deformable_conv_block_forward.1} parent=23 // pred_fallthru
            _
          %1355 = vnop
        $region24: #{deformable_conv_block_forward.1} parent=15 // pred_fallthru
          _
        // Predicated region
        $region62: #{deformable_conv_block_forward.1} parent=15 // pred_check
          %p1356 = pneg %p97
        $region63: #{deformable_conv_block_forward.1} parent=15 // pred_check_branch
          %1358 = sbr.rel (%p1356) target = $region65
        $region64: #{deformable_conv_block_forward.1} parent=15 // pred_region
          %s1359 = sand.u32 %s87, 1
          %s1360 = sand.u32 %s87, 1
          %s1361 = smul.addr %s1360, 8
          %s1362 = scalar_lea.vmem [#allocation3], %s1361
          %s1363 = smul.addr %s16, 4
          %s1364 = sadd.s32 %s17, %s1363
          %s1365 = smul.addr %s1364, 4
          %s1366 = scalar_lea.vmem %s2, %s1365
          // Predicated region
          $region66: #{deformable_conv_block_forward.1} parent=64 // pred_check
            _
          $region67: #{deformable_conv_block_forward.1} parent=64 // pred_check_branch
            %1368 = sbr.rel (0) target = $region69
          $region68: #{deformable_conv_block_forward.1} parent=64 // pred_region
            // Predicated region
            $region70: #{deformable_conv_block_forward.1} parent=68 // pred_check
              _
            $region71: #{deformable_conv_block_forward.1} parent=68 // pred_check_branch
              %1370 = sbr.rel target = $region73
            $region72: #{deformable_conv_block_forward.1} parent=68 // pred_region
              // Predicated region
              $region85: #{deformable_conv_block_forward.1} parent=72 // pred_check
                _
              $region86: #{deformable_conv_block_forward.1} parent=72 // pred_check_branch
                %1387 = sbr.rel (0) target = $region88
              $region87: #{deformable_conv_block_forward.1} parent=72 // pred_region
                loop: start=0, step=1, limit=1
                $region89: #{deformable_conv_block_forward.1} parent=87 // loop_pre_header
                  _
                $region90: #{deformable_conv_block_forward.1} parent=87 // loop_header
                  %s1389 = sphi 0, %s1393
                  %p1390 = scmp.ge.s32.totalorder %s1389, 1
                  %s1394 = sphi %s1366, %s1366
                  %s1395 = sphi %s1362, %s1362
                $region91: #{deformable_conv_block_forward.1} parent=87 // loop_header_branch
                  %1392 = sbr.rel (%p1390) target = $region95
                $region92: #{deformable_conv_block_forward.1} parent=87 // loop_body
                  _
                $region93: #{deformable_conv_block_forward.1} parent=87 // loop_footer
                  %s1393 = sadd.s32 1, %s1389
                $region94: #{deformable_conv_block_forward.1} parent=87 // loop_footer_branch
                  %1388 = sbr.rel target = $region90
                $region95: #{deformable_conv_block_forward.1} parent=87 // loop_exit
                  _
                loop: start=0, step=1, limit=1
                $region96: #{deformable_conv_block_forward.1} parent=87 // loop_pre_header
                  _
                $region97: #{deformable_conv_block_forward.1} parent=87 // loop_header
                  %s1398 = sphi 0, %s1402
                  %p1399 = scmp.ge.s32.totalorder %s1398, 1
                  %s1403 = sphi %s1366, %s1366
                  %s1404 = sphi %s1362, %s1362
                $region98: #{deformable_conv_block_forward.1} parent=87 // loop_header_branch
                  %1401 = sbr.rel (%p1399) target = $region102
                $region99: #{deformable_conv_block_forward.1} parent=87 // loop_body
                  %v1405 = vld [vmem:[%s1403] sm:$0xf]
                  %1406 = vst [vmem:[%s1404] sm:$0xf] %v1405
                  %v1407 = vld [vmem:[%s1403 + $0x8] sm:$0xf]
                  %1408 = vst [vmem:[%s1404 + $0x4] sm:$0xf] %v1407
                $region100: #{deformable_conv_block_forward.1} parent=87 // loop_footer
                  %s1402 = sadd.s32 1, %s1398
                $region101: #{deformable_conv_block_forward.1} parent=87 // loop_footer_branch
                  %1397 = sbr.rel target = $region97
                $region102: #{deformable_conv_block_forward.1} parent=87 // loop_exit
                  _
              $region88: #{deformable_conv_block_forward.1} parent=72 // pred_fallthru
                _
            $region73: #{deformable_conv_block_forward.1} parent=68 // pred_fallthru
              _
            // Predicated region
            $region74: #{deformable_conv_block_forward.1} parent=68 // pred_check
              _
            $region75: #{deformable_conv_block_forward.1} parent=68 // pred_check_branch
              %1372 = sbr.rel (0) target = $region77
            $region76: #{deformable_conv_block_forward.1} parent=68 // pred_region
              loop: start=0, step=1, limit=1
              $region78: #{deformable_conv_block_forward.1} parent=76 // loop_pre_header
                _
              $region79: #{deformable_conv_block_forward.1} parent=76 // loop_header
                %s1375 = sphi 0, %s1379
                %p1376 = scmp.ge.s32.totalorder %s1375, 1
                %s1380 = sphi %s1366, %s1366
                %s1381 = sphi %s1362, %s1362
              $region80: #{deformable_conv_block_forward.1} parent=76 // loop_header_branch
                %1378 = sbr.rel (%p1376) target = $region84
              $region81: #{deformable_conv_block_forward.1} parent=76 // loop_body
                %v1382 = vld [vmem:[%s1380] sm:$0xf]
                %1383 = vst [vmem:[%s1381] sm:$0xf] %v1382
                %v1384 = vld [vmem:[%s1380 + $0x8] sm:$0xf]
                %1385 = vst [vmem:[%s1381 + $0x4] sm:$0xf] %v1384
              $region82: #{deformable_conv_block_forward.1} parent=76 // loop_footer
                %s1379 = sadd.s32 1, %s1375
              $region83: #{deformable_conv_block_forward.1} parent=76 // loop_footer_branch
                %1374 = sbr.rel target = $region79
              $region84: #{deformable_conv_block_forward.1} parent=76 // loop_exit
                _
            $region77: #{deformable_conv_block_forward.1} parent=68 // pred_fallthru
              _
          $region69: #{deformable_conv_block_forward.1} parent=64 // pred_fallthru
            _
          %1409 = vnop
        $region65: #{deformable_conv_block_forward.1} parent=15 // pred_fallthru
          _
      $region16: #{deformable_conv_block_forward.1} parent=5 // pred_fallthru
        _
      %p1410 = scmp.le.s32.totalorder 1, %s9
      %p1411 = scmp.lt.s32.totalorder %s9, 5
      %p1412 = pnand %p1410, %p1411
      %p1413 = pneg %p1412
      // Predicated region
      $region103: #{deformable_conv_block_forward.1} parent=5 // pred_check
        _
      $region104: #{deformable_conv_block_forward.1} parent=5 // pred_check_branch
        %1415 = sbr.rel (%p1412) target = $region106
      $region105: #{deformable_conv_block_forward.1} parent=5 // pred_region
        %s1416 = ssub.s32 %s9, 1
        %s1417 = sand.u32 %s62, 1
        %s1418 = sand.u32 %s62, 1
        %s1419 = smul.addr %s1418, 1152
        %s1420 = scalar_lea.vmem [#allocation2], %s1419
        // Predicated region
        $region107: #{deformable_conv_block_forward.1} parent=105 // pred_check
          %p1421 = pneg %p75
        $region108: #{deformable_conv_block_forward.1} parent=105 // pred_check_branch
          %1423 = sbr.rel (%p1421) target = $region110
        $region109: #{deformable_conv_block_forward.1} parent=105 // pred_region
          _
        $region110: #{deformable_conv_block_forward.1} parent=105 // pred_fallthru
          _
        %s1424 = sand.u32 %s90, 1
        %s1425 = sand.u32 %s90, 1
        %s1426 = smul.addr %s1425, 8
        %s1427 = scalar_lea.vmem [#allocation3], %s1426
        // Predicated region
        $region111: #{deformable_conv_block_forward.1} parent=105 // pred_check
          %p1428 = pneg %p103
        $region112: #{deformable_conv_block_forward.1} parent=105 // pred_check_branch
          %1430 = sbr.rel (%p1428) target = $region114
        $region113: #{deformable_conv_block_forward.1} parent=105 // pred_region
          _
        $region114: #{deformable_conv_block_forward.1} parent=105 // pred_fallthru
          _
        %p1431 = scmp.lt.s32.totalorder %s18, 1
        %s1432 = scalar_select %p1431, %s18, 1
        %s1433 = smul.addr %s1432, 18
        %s1434 = smul.addr %s1433, 4
        %s1435 = scalar_lea.vmem %s0, %s1434
        %p1436 = pneg %p47
        %p1437 = pneg %p44
        %s1438 = sand.u32 %s62, 1
        %s1439 = sand.u32 %s62, 1
        %s1440 = smul.addr %s1439, 1152
        %s1441 = scalar_lea.vmem [#allocation2], %s1440
        %p1442 = pneg %p75
        %p1443 = pneg %p72
        %s1444 = sand.u32 %s90, 1
        %s1445 = sand.u32 %s90, 1
        %s1446 = smul.addr %s1445, 8
        %s1447 = scalar_lea.vmem [#allocation3], %s1446
        %p1448 = pneg %p103
        %p1449 = pneg %p100
        %p1450 = pneg %p131
        %p1451 = pneg %p128
        %p1452 = scmp.lt.s32.totalorder %s18, 1
        %s1453 = scalar_select %p1452, %s18, 1
        %p1454 = scmp.lt.s32.totalorder %s19, 1
        %s1455 = scalar_select %p1454, %s19, 1
        %s1456 = smul.addr %s1453, 2
        %s1457 = sadd.s32 %s1455, %s1456
        %s1458 = smul.addr %s1457, 8
        %s1459 = scalar_lea.vmem %s3, %s1458
        %p1460 = scmp.lt.s32.totalorder %s18, 1
        %s1461 = scalar_select %p1460, %s18, 1
        %s1462 = smul.addr %s1461, 18
        %s1463 = smul.addr %s1462, 4
        %s1464 = scalar_lea.vmem %s0, %s1463
        %p1465 = scmp.lt.s32.totalorder %s18, 1
        %s1466 = scalar_select %p1465, %s18, 1
        %p1467 = scmp.lt.s32.totalorder %s19, 1
        %s1468 = scalar_select %p1467, %s19, 1
        %s1469 = smul.addr %s1466, 2
        %s1470 = sadd.s32 %s1468, %s1469
        %s1471 = smul.addr %s1470, 8
        %s1472 = scalar_lea.vmem %s3, %s1471
        %v1474 = vld [vmem:[%s1420] sm:$0xf]
        %v1475 = vld [vmem:[%s1420 + $0x4] sm:$0xf]
        %v1476 = vld [vmem:[%s1420 + $0x8] sm:$0xf]
        %v1477 = vld [vmem:[%s1420 + $0xc] sm:$0xf]
        %v1478 = vld [vmem:[%s1420 + $0x10] sm:$0xf]
        %v1479 = vld [vmem:[%s1420 + $0x14] sm:$0xf]
        %v1480 = vld [vmem:[%s1420 + $0x18] sm:$0xf]
        %v1481 = vld [vmem:[%s1420 + $0x1c] sm:$0xf]
        %v1482 = vld [vmem:[%s1420 + $0x20] sm:$0xf]
        %v1483 = vld [vmem:[%s1420 + $0x24] sm:$0xf]
        %v1484 = vld [vmem:[%s1420 + $0x28] sm:$0xf]
        %v1485 = vld [vmem:[%s1420 + $0x2c] sm:$0xf]
        %v1486 = vld [vmem:[%s1420 + $0x30] sm:$0xf]
        %v1487 = vld [vmem:[%s1420 + $0x34] sm:$0xf]
        %v1488 = vld [vmem:[%s1420 + $0x38] sm:$0xf]
        %v1489 = vld [vmem:[%s1420 + $0x3c] sm:$0xf]
        %v1490 = vld [vmem:[%s1420 + $0x40] sm:$0xf]
        %v1491 = vld [vmem:[%s1420 + $0x44] sm:$0xf]
        %v1492 = vld [vmem:[%s1420 + $0x48] sm:$0xf]
        %v1493 = vld [vmem:[%s1420 + $0x4c] sm:$0xf]
        %v1494 = vld [vmem:[%s1420 + $0x50] sm:$0xf]
        %v1495 = vld [vmem:[%s1420 + $0x54] sm:$0xf]
        %v1496 = vld [vmem:[%s1420 + $0x58] sm:$0xf]
        %v1497 = vld [vmem:[%s1420 + $0x5c] sm:$0xf]
        %v1498 = vld [vmem:[%s1420 + $0x60] sm:$0xf]
        %v1499 = vld [vmem:[%s1420 + $0x64] sm:$0xf]
        %v1500 = vld [vmem:[%s1420 + $0x68] sm:$0xf]
        %v1501 = vld [vmem:[%s1420 + $0x6c] sm:$0xf]
        %v1502 = vld [vmem:[%s1420 + $0x70] sm:$0xf]
        %v1503 = vld [vmem:[%s1420 + $0x74] sm:$0xf]
        %v1504 = vld [vmem:[%s1420 + $0x78] sm:$0xf]
        %v1505 = vld [vmem:[%s1420 + $0x7c] sm:$0xf]
        %v1506 = vld [vmem:[%s1420 + $0x80] sm:$0xf]
        %v1507 = vld [vmem:[%s1420 + $0x84] sm:$0xf]
        %v1508 = vld [vmem:[%s1420 + $0x88] sm:$0xf]
        %v1509 = vld [vmem:[%s1420 + $0x8c] sm:$0xf]
        %v1510 = vld [vmem:[%s1420 + $0x90] sm:$0xf]
        %v1511 = vld [vmem:[%s1420 + $0x94] sm:$0xf]
        %v1512 = vld [vmem:[%s1420 + $0x98] sm:$0xf]
        %v1513 = vld [vmem:[%s1420 + $0x9c] sm:$0xf]
        %v1514 = vld [vmem:[%s1420 + $0xa0] sm:$0xf]
        %v1515 = vld [vmem:[%s1420 + $0xa4] sm:$0xf]
        %v1516 = vld [vmem:[%s1420 + $0xa8] sm:$0xf]
        %v1517 = vld [vmem:[%s1420 + $0xac] sm:$0xf]
        %v1518 = vld [vmem:[%s1420 + $0xb0] sm:$0xf]
        %v1519 = vld [vmem:[%s1420 + $0xb4] sm:$0xf]
        %v1520 = vld [vmem:[%s1420 + $0xb8] sm:$0xf]
        %v1521 = vld [vmem:[%s1420 + $0xbc] sm:$0xf]
        %v1522 = vld [vmem:[%s1420 + $0xc0] sm:$0xf]
        %v1523 = vld [vmem:[%s1420 + $0xc4] sm:$0xf]
        %v1524 = vld [vmem:[%s1420 + $0xc8] sm:$0xf]
        %v1525 = vld [vmem:[%s1420 + $0xcc] sm:$0xf]
        %v1526 = vld [vmem:[%s1420 + $0xd0] sm:$0xf]
        %v1527 = vld [vmem:[%s1420 + $0xd4] sm:$0xf]
        %v1528 = vld [vmem:[%s1420 + $0xd8] sm:$0xf]
        %v1529 = vld [vmem:[%s1420 + $0xdc] sm:$0xf]
        %v1530 = vld [vmem:[%s1420 + $0xe0] sm:$0xf]
        %v1531 = vld [vmem:[%s1420 + $0xe4] sm:$0xf]
        %v1532 = vld [vmem:[%s1420 + $0xe8] sm:$0xf]
        %v1533 = vld [vmem:[%s1420 + $0xec] sm:$0xf]
        %v1534 = vld [vmem:[%s1420 + $0xf0] sm:$0xf]
        %v1535 = vld [vmem:[%s1420 + $0xf4] sm:$0xf]
        %v1536 = vld [vmem:[%s1420 + $0xf8] sm:$0xf]
        %v1537 = vld [vmem:[%s1420 + $0xfc] sm:$0xf]
        %v1538 = vld [vmem:[%s1420 + $0x100] sm:$0xf]
        %v1539 = vld [vmem:[%s1420 + $0x104] sm:$0xf]
        %v1540 = vld [vmem:[%s1420 + $0x108] sm:$0xf]
        %v1541 = vld [vmem:[%s1420 + $0x10c] sm:$0xf]
        %v1542 = vld [vmem:[%s1420 + $0x110] sm:$0xf]
        %v1543 = vld [vmem:[%s1420 + $0x114] sm:$0xf]
        %v1544 = vld [vmem:[%s1420 + $0x118] sm:$0xf]
        %v1545 = vld [vmem:[%s1420 + $0x11c] sm:$0xf]
        %v1546 = vld [vmem:[%s1420 + $0x120] sm:$0xf]
        %v1547 = vld [vmem:[%s1420 + $0x124] sm:$0xf]
        %v1548 = vld [vmem:[%s1420 + $0x128] sm:$0xf]
        %v1549 = vld [vmem:[%s1420 + $0x12c] sm:$0xf]
        %v1550 = vld [vmem:[%s1420 + $0x130] sm:$0xf]
        %v1551 = vld [vmem:[%s1420 + $0x134] sm:$0xf]
        %v1552 = vld [vmem:[%s1420 + $0x138] sm:$0xf]
        %v1553 = vld [vmem:[%s1420 + $0x13c] sm:$0xf]
        %v1554 = vld [vmem:[%s1420 + $0x140] sm:$0xf]
        %v1555 = vld [vmem:[%s1420 + $0x144] sm:$0xf]
        %v1556 = vld [vmem:[%s1420 + $0x148] sm:$0xf]
        %v1557 = vld [vmem:[%s1420 + $0x14c] sm:$0xf]
        %v1558 = vld [vmem:[%s1420 + $0x150] sm:$0xf]
        %v1559 = vld [vmem:[%s1420 + $0x154] sm:$0xf]
        %v1560 = vld [vmem:[%s1420 + $0x158] sm:$0xf]
        %v1561 = vld [vmem:[%s1420 + $0x15c] sm:$0xf]
        %v1562 = vld [vmem:[%s1420 + $0x160] sm:$0xf]
        %v1563 = vld [vmem:[%s1420 + $0x164] sm:$0xf]
        %v1564 = vld [vmem:[%s1420 + $0x168] sm:$0xf]
        %v1565 = vld [vmem:[%s1420 + $0x16c] sm:$0xf]
        %v1566 = vld [vmem:[%s1420 + $0x170] sm:$0xf]
        %v1567 = vld [vmem:[%s1420 + $0x174] sm:$0xf]
        %v1568 = vld [vmem:[%s1420 + $0x178] sm:$0xf]
        %v1569 = vld [vmem:[%s1420 + $0x17c] sm:$0xf]
        %v1570 = vld [vmem:[%s1420 + $0x180] sm:$0xf]
        %v1571 = vld [vmem:[%s1420 + $0x184] sm:$0xf]
        %v1572 = vld [vmem:[%s1420 + $0x188] sm:$0xf]
        %v1573 = vld [vmem:[%s1420 + $0x18c] sm:$0xf]
        %v1574 = vld [vmem:[%s1420 + $0x190] sm:$0xf]
        %v1575 = vld [vmem:[%s1420 + $0x194] sm:$0xf]
        %v1576 = vld [vmem:[%s1420 + $0x198] sm:$0xf]
        %v1577 = vld [vmem:[%s1420 + $0x19c] sm:$0xf]
        %v1578 = vld [vmem:[%s1420 + $0x1a0] sm:$0xf]
        %v1579 = vld [vmem:[%s1420 + $0x1a4] sm:$0xf]
        %v1580 = vld [vmem:[%s1420 + $0x1a8] sm:$0xf]
        %v1581 = vld [vmem:[%s1420 + $0x1ac] sm:$0xf]
        %v1582 = vld [vmem:[%s1420 + $0x1b0] sm:$0xf]
        %v1583 = vld [vmem:[%s1420 + $0x1b4] sm:$0xf]
        %v1584 = vld [vmem:[%s1420 + $0x1b8] sm:$0xf]
        %v1585 = vld [vmem:[%s1420 + $0x1bc] sm:$0xf]
        %v1586 = vld [vmem:[%s1420 + $0x1c0] sm:$0xf]
        %v1587 = vld [vmem:[%s1420 + $0x1c4] sm:$0xf]
        %v1588 = vld [vmem:[%s1420 + $0x1c8] sm:$0xf]
        %v1589 = vld [vmem:[%s1420 + $0x1cc] sm:$0xf]
        %v1590 = vld [vmem:[%s1420 + $0x1d0] sm:$0xf]
        %v1591 = vld [vmem:[%s1420 + $0x1d4] sm:$0xf]
        %v1592 = vld [vmem:[%s1420 + $0x1d8] sm:$0xf]
        %v1593 = vld [vmem:[%s1420 + $0x1dc] sm:$0xf]
        %v1594 = vld [vmem:[%s1420 + $0x1e0] sm:$0xf]
        %v1595 = vld [vmem:[%s1420 + $0x1e4] sm:$0xf]
        %v1596 = vld [vmem:[%s1420 + $0x1e8] sm:$0xf]
        %v1597 = vld [vmem:[%s1420 + $0x1ec] sm:$0xf]
        %v1598 = vld [vmem:[%s1420 + $0x1f0] sm:$0xf]
        %v1599 = vld [vmem:[%s1420 + $0x1f4] sm:$0xf]
        %v1600 = vld [vmem:[%s1420 + $0x1f8] sm:$0xf]
        %v1601 = vld [vmem:[%s1420 + $0x1fc] sm:$0xf]
        %v1602 = vld [vmem:[%s1420 + $0x200] sm:$0xf]
        %v1603 = vld [vmem:[%s1420 + $0x204] sm:$0xf]
        %v1604 = vld [vmem:[%s1420 + $0x208] sm:$0xf]
        %v1605 = vld [vmem:[%s1420 + $0x20c] sm:$0xf]
        %v1606 = vld [vmem:[%s1420 + $0x210] sm:$0xf]
        %v1607 = vld [vmem:[%s1420 + $0x214] sm:$0xf]
        %v1608 = vld [vmem:[%s1420 + $0x218] sm:$0xf]
        %v1609 = vld [vmem:[%s1420 + $0x21c] sm:$0xf]
        %v1610 = vld [vmem:[%s1420 + $0x220] sm:$0xf]
        %v1611 = vld [vmem:[%s1420 + $0x224] sm:$0xf]
        %v1612 = vld [vmem:[%s1420 + $0x228] sm:$0xf]
        %v1613 = vld [vmem:[%s1420 + $0x22c] sm:$0xf]
        %v1614 = vld [vmem:[%s1420 + $0x230] sm:$0xf]
        %v1615 = vld [vmem:[%s1420 + $0x234] sm:$0xf]
        %v1616 = vld [vmem:[%s1420 + $0x238] sm:$0xf]
        %v1617 = vld [vmem:[%s1420 + $0x23c] sm:$0xf]
        %v1618 = vld [vmem:[%s1420 + $0x240] sm:$0xf]
        %v1619 = vld [vmem:[%s1420 + $0x244] sm:$0xf]
        %v1620 = vld [vmem:[%s1420 + $0x248] sm:$0xf]
        %v1621 = vld [vmem:[%s1420 + $0x24c] sm:$0xf]
        %v1622 = vld [vmem:[%s1420 + $0x250] sm:$0xf]
        %v1623 = vld [vmem:[%s1420 + $0x254] sm:$0xf]
        %v1624 = vld [vmem:[%s1420 + $0x258] sm:$0xf]
        %v1625 = vld [vmem:[%s1420 + $0x25c] sm:$0xf]
        %v1626 = vld [vmem:[%s1420 + $0x260] sm:$0xf]
        %v1627 = vld [vmem:[%s1420 + $0x264] sm:$0xf]
        %v1628 = vld [vmem:[%s1420 + $0x268] sm:$0xf]
        %v1629 = vld [vmem:[%s1420 + $0x26c] sm:$0xf]
        %v1630 = vld [vmem:[%s1420 + $0x270] sm:$0xf]
        %v1631 = vld [vmem:[%s1420 + $0x274] sm:$0xf]
        %v1632 = vld [vmem:[%s1420 + $0x278] sm:$0xf]
        %v1633 = vld [vmem:[%s1420 + $0x27c] sm:$0xf]
        %v1634 = vld [vmem:[%s1420 + $0x280] sm:$0xf]
        %v1635 = vld [vmem:[%s1420 + $0x284] sm:$0xf]
        %v1636 = vld [vmem:[%s1420 + $0x288] sm:$0xf]
        %v1637 = vld [vmem:[%s1420 + $0x28c] sm:$0xf]
        %v1638 = vld [vmem:[%s1420 + $0x290] sm:$0xf]
        %v1639 = vld [vmem:[%s1420 + $0x294] sm:$0xf]
        %v1640 = vld [vmem:[%s1420 + $0x298] sm:$0xf]
        %v1641 = vld [vmem:[%s1420 + $0x29c] sm:$0xf]
        %v1642 = vld [vmem:[%s1420 + $0x2a0] sm:$0xf]
        %v1643 = vld [vmem:[%s1420 + $0x2a4] sm:$0xf]
        %v1644 = vld [vmem:[%s1420 + $0x2a8] sm:$0xf]
        %v1645 = vld [vmem:[%s1420 + $0x2ac] sm:$0xf]
        %v1646 = vld [vmem:[%s1420 + $0x2b0] sm:$0xf]
        %v1647 = vld [vmem:[%s1420 + $0x2b4] sm:$0xf]
        %v1648 = vld [vmem:[%s1420 + $0x2b8] sm:$0xf]
        %v1649 = vld [vmem:[%s1420 + $0x2bc] sm:$0xf]
        %v1650 = vld [vmem:[%s1420 + $0x2c0] sm:$0xf]
        %v1651 = vld [vmem:[%s1420 + $0x2c4] sm:$0xf]
        %v1652 = vld [vmem:[%s1420 + $0x2c8] sm:$0xf]
        %v1653 = vld [vmem:[%s1420 + $0x2cc] sm:$0xf]
        %v1654 = vld [vmem:[%s1420 + $0x2d0] sm:$0xf]
        %v1655 = vld [vmem:[%s1420 + $0x2d4] sm:$0xf]
        %v1656 = vld [vmem:[%s1420 + $0x2d8] sm:$0xf]
        %v1657 = vld [vmem:[%s1420 + $0x2dc] sm:$0xf]
        %v1658 = vld [vmem:[%s1420 + $0x2e0] sm:$0xf]
        %v1659 = vld [vmem:[%s1420 + $0x2e4] sm:$0xf]
        %v1660 = vld [vmem:[%s1420 + $0x2e8] sm:$0xf]
        %v1661 = vld [vmem:[%s1420 + $0x2ec] sm:$0xf]
        %v1662 = vld [vmem:[%s1420 + $0x2f0] sm:$0xf]
        %v1663 = vld [vmem:[%s1420 + $0x2f4] sm:$0xf]
        %v1664 = vld [vmem:[%s1420 + $0x2f8] sm:$0xf]
        %v1665 = vld [vmem:[%s1420 + $0x2fc] sm:$0xf]
        %v1666 = vld [vmem:[%s1420 + $0x300] sm:$0xf]
        %v1667 = vld [vmem:[%s1420 + $0x304] sm:$0xf]
        %v1668 = vld [vmem:[%s1420 + $0x308] sm:$0xf]
        %v1669 = vld [vmem:[%s1420 + $0x30c] sm:$0xf]
        %v1670 = vld [vmem:[%s1420 + $0x310] sm:$0xf]
        %v1671 = vld [vmem:[%s1420 + $0x314] sm:$0xf]
        %v1672 = vld [vmem:[%s1420 + $0x318] sm:$0xf]
        %v1673 = vld [vmem:[%s1420 + $0x31c] sm:$0xf]
        %v1674 = vld [vmem:[%s1420 + $0x320] sm:$0xf]
        %v1675 = vld [vmem:[%s1420 + $0x324] sm:$0xf]
        %v1676 = vld [vmem:[%s1420 + $0x328] sm:$0xf]
        %v1677 = vld [vmem:[%s1420 + $0x32c] sm:$0xf]
        %v1678 = vld [vmem:[%s1420 + $0x330] sm:$0xf]
        %v1679 = vld [vmem:[%s1420 + $0x334] sm:$0xf]
        %v1680 = vld [vmem:[%s1420 + $0x338] sm:$0xf]
        %v1681 = vld [vmem:[%s1420 + $0x33c] sm:$0xf]
        %v1682 = vld [vmem:[%s1420 + $0x340] sm:$0xf]
        %v1683 = vld [vmem:[%s1420 + $0x344] sm:$0xf]
        %v1684 = vld [vmem:[%s1420 + $0x348] sm:$0xf]
        %v1685 = vld [vmem:[%s1420 + $0x34c] sm:$0xf]
        %v1686 = vld [vmem:[%s1420 + $0x350] sm:$0xf]
        %v1687 = vld [vmem:[%s1420 + $0x354] sm:$0xf]
        %v1688 = vld [vmem:[%s1420 + $0x358] sm:$0xf]
        %v1689 = vld [vmem:[%s1420 + $0x35c] sm:$0xf]
        %v1690 = vld [vmem:[%s1420 + $0x360] sm:$0xf]
        %v1691 = vld [vmem:[%s1420 + $0x364] sm:$0xf]
        %v1692 = vld [vmem:[%s1420 + $0x368] sm:$0xf]
        %v1693 = vld [vmem:[%s1420 + $0x36c] sm:$0xf]
        %v1694 = vld [vmem:[%s1420 + $0x370] sm:$0xf]
        %v1695 = vld [vmem:[%s1420 + $0x374] sm:$0xf]
        %v1696 = vld [vmem:[%s1420 + $0x378] sm:$0xf]
        %v1697 = vld [vmem:[%s1420 + $0x37c] sm:$0xf]
        %v1698 = vld [vmem:[%s1420 + $0x380] sm:$0xf]
        %v1699 = vld [vmem:[%s1420 + $0x384] sm:$0xf]
        %v1700 = vld [vmem:[%s1420 + $0x388] sm:$0xf]
        %v1701 = vld [vmem:[%s1420 + $0x38c] sm:$0xf]
        %v1702 = vld [vmem:[%s1420 + $0x390] sm:$0xf]
        %v1703 = vld [vmem:[%s1420 + $0x394] sm:$0xf]
        %v1704 = vld [vmem:[%s1420 + $0x398] sm:$0xf]
        %v1705 = vld [vmem:[%s1420 + $0x39c] sm:$0xf]
        %v1706 = vld [vmem:[%s1420 + $0x3a0] sm:$0xf]
        %v1707 = vld [vmem:[%s1420 + $0x3a4] sm:$0xf]
        %v1708 = vld [vmem:[%s1420 + $0x3a8] sm:$0xf]
        %v1709 = vld [vmem:[%s1420 + $0x3ac] sm:$0xf]
        %v1710 = vld [vmem:[%s1420 + $0x3b0] sm:$0xf]
        %v1711 = vld [vmem:[%s1420 + $0x3b4] sm:$0xf]
        %v1712 = vld [vmem:[%s1420 + $0x3b8] sm:$0xf]
        %v1713 = vld [vmem:[%s1420 + $0x3bc] sm:$0xf]
        %v1714 = vld [vmem:[%s1420 + $0x3c0] sm:$0xf]
        %v1715 = vld [vmem:[%s1420 + $0x3c4] sm:$0xf]
        %v1716 = vld [vmem:[%s1420 + $0x3c8] sm:$0xf]
        %v1717 = vld [vmem:[%s1420 + $0x3cc] sm:$0xf]
        %v1718 = vld [vmem:[%s1420 + $0x3d0] sm:$0xf]
        %v1719 = vld [vmem:[%s1420 + $0x3d4] sm:$0xf]
        %v1720 = vld [vmem:[%s1420 + $0x3d8] sm:$0xf]
        %v1721 = vld [vmem:[%s1420 + $0x3dc] sm:$0xf]
        %v1722 = vld [vmem:[%s1420 + $0x3e0] sm:$0xf]
        %v1723 = vld [vmem:[%s1420 + $0x3e4] sm:$0xf]
        %v1724 = vld [vmem:[%s1420 + $0x3e8] sm:$0xf]
        %v1725 = vld [vmem:[%s1420 + $0x3ec] sm:$0xf]
        %v1726 = vld [vmem:[%s1420 + $0x3f0] sm:$0xf]
        %v1727 = vld [vmem:[%s1420 + $0x3f4] sm:$0xf]
        %v1728 = vld [vmem:[%s1420 + $0x3f8] sm:$0xf]
        %v1729 = vld [vmem:[%s1420 + $0x3fc] sm:$0xf]
        %v1730 = vld [vmem:[%s1420 + $0x400] sm:$0xf]
        %v1731 = vld [vmem:[%s1420 + $0x404] sm:$0xf]
        %v1732 = vld [vmem:[%s1420 + $0x408] sm:$0xf]
        %v1733 = vld [vmem:[%s1420 + $0x40c] sm:$0xf]
        %v1734 = vld [vmem:[%s1420 + $0x410] sm:$0xf]
        %v1735 = vld [vmem:[%s1420 + $0x414] sm:$0xf]
        %v1736 = vld [vmem:[%s1420 + $0x418] sm:$0xf]
        %v1737 = vld [vmem:[%s1420 + $0x41c] sm:$0xf]
        %v1738 = vld [vmem:[%s1420 + $0x420] sm:$0xf]
        %v1739 = vld [vmem:[%s1420 + $0x424] sm:$0xf]
        %v1740 = vld [vmem:[%s1420 + $0x428] sm:$0xf]
        %v1741 = vld [vmem:[%s1420 + $0x42c] sm:$0xf]
        %v1742 = vld [vmem:[%s1420 + $0x430] sm:$0xf]
        %v1743 = vld [vmem:[%s1420 + $0x434] sm:$0xf]
        %v1744 = vld [vmem:[%s1420 + $0x438] sm:$0xf]
        %v1745 = vld [vmem:[%s1420 + $0x43c] sm:$0xf]
        %v1746 = vld [vmem:[%s1420 + $0x440] sm:$0xf]
        %v1747 = vld [vmem:[%s1420 + $0x444] sm:$0xf]
        %v1748 = vld [vmem:[%s1420 + $0x448] sm:$0xf]
        %v1749 = vld [vmem:[%s1420 + $0x44c] sm:$0xf]
        %v1750 = vld [vmem:[%s1420 + $0x450] sm:$0xf]
        %v1751 = vld [vmem:[%s1420 + $0x454] sm:$0xf]
        %v1752 = vld [vmem:[%s1420 + $0x458] sm:$0xf]
        %v1753 = vld [vmem:[%s1420 + $0x45c] sm:$0xf]
        %v1754 = vld [vmem:[%s1420 + $0x460] sm:$0xf]
        %v1755 = vld [vmem:[%s1420 + $0x464] sm:$0xf]
        %v1756 = vld [vmem:[%s1420 + $0x468] sm:$0xf]
        %v1757 = vld [vmem:[%s1420 + $0x46c] sm:$0xf]
        %v1758 = vld [vmem:[%s1420 + $0x470] sm:$0xf]
        %v1759 = vld [vmem:[%s1420 + $0x474] sm:$0xf]
        %v1760 = vld [vmem:[%s1420 + $0x478] sm:$0xf]
        %v1761 = vld [vmem:[%s1420 + $0x47c] sm:$0xf]
        %v1762 = vld [vmem:[%s1427] sm:$0xf]
        %v1763 = vld [vmem:[%s1427 + $0x4] sm:$0x1]
        %v1767 = vunpack.c.l.s4 1966171168
        %v1768 = vunpack.c.0.s8 %v1767
        %v1769 = vlaneseq
        %v1770 = vshrl.u32 %v1769, 7
        %v1771 = vsub.s32 %v1768, %v1770
        %v1772 = vrot.slane %v1762, %v1771
        %v1773 = vcombine.high %v1772, %v1772
        %v1775 = vunpack.c.l.s4 1966171168
        %v1776 = vunpack.c.0.s8 %v1775
        %v1777 = vlaneseq
        %v1778 = vshrl.u32 %v1777, 7
        %v1779 = vsub.s32 %v1776, %v1778
        %v1780 = vrot.slane %v1772, %v1779
        %v1782 = vunpack.c.l.s4 1966171168
        %v1783 = vunpack.c.0.s8 %v1782
        %v1784 = vlaneseq
        %v1785 = vshrl.u32 %v1784, 7
        %v1786 = vsub.s32 %v1783, %v1785
        %v1787 = vrot.slane %v1773, %v1786
        %v1788 = vcombine.high %v1780, %v1780
        %v1789 = vcombine.high %v1787, %v1787
        %v1791 = vunpack.c.l.s4 1966171168
        %v1792 = vunpack.c.0.s8 %v1791
        %v1793 = vlaneseq
        %v1794 = vshrl.u32 %v1793, 7
        %v1795 = vsub.s32 %v1792, %v1794
        %v1796 = vrot.slane %v1763, %v1795
        %v1798 = vunpack.c.l.s4 1966171168
        %v1799 = vunpack.c.0.s8 %v1798
        %v1800 = vlaneseq
        %v1801 = vshrl.u32 %v1800, 7
        %v1802 = vsub.s32 %v1799, %v1801
        %v1803 = vrot.slane %v1796, %v1802
        %v1804 = vunpack.i.l.s16 %v1780
        %v1805 = vunpack.i.h.s16 %v1780
        %v1806 = vunpack.i.l.s16 %v1787
        %v1807 = vunpack.i.h.s16 %v1787
        %v1808 = vunpack.i.l.s16 %v1788
        %v1809 = vunpack.i.h.s16 %v1788
        %v1810 = vunpack.i.l.s16 %v1789
        %v1811 = vunpack.i.h.s16 %v1789
        %v1812 = vunpack.i.l.s16 %v1803
        %v1813 = vpack.i.b16 %v1804, %v1804
        %v1814 = vpack.i.b16 %v1805, %v1805
        %v1815 = vpack.i.b16 %v1806, %v1806
        %v1816 = vpack.i.b16 %v1807, %v1807
        %v1817 = vpack.i.b16 %v1808, %v1808
        %v1818 = vpack.i.b16 %v1809, %v1809
        %v1819 = vpack.i.b16 %v1810, %v1810
        %v1820 = vpack.i.b16 %v1811, %v1811
        %v1821 = vpack.i.b16 %v1812, %v1812
        %v1822 = vlaneseq
        %v1823 = vshrl.u32 %v1822, 7
        %v1824 = vsub.s32 0, %v1823
        %v1825 = vrot.slane %v1813, %v1824
        %v1826 = vlaneseq
        %v1827 = vshrl.u32 %v1826, 7
        %v1828 = vsub.s32 0, %v1827
        %v1829 = vrot.slane %v1814, %v1828
        %v1830 = vlaneseq
        %v1831 = vshrl.u32 %v1830, 7
        %v1832 = vsub.s32 0, %v1831
        %v1833 = vrot.slane %v1815, %v1832
        %v1834 = vlaneseq
        %v1835 = vshrl.u32 %v1834, 7
        %v1836 = vsub.s32 0, %v1835
        %v1837 = vrot.slane %v1816, %v1836
        %v1838 = vlaneseq
        %v1839 = vshrl.u32 %v1838, 7
        %v1840 = vsub.s32 0, %v1839
        %v1841 = vrot.slane %v1817, %v1840
        %v1842 = vlaneseq
        %v1843 = vshrl.u32 %v1842, 7
        %v1844 = vsub.s32 0, %v1843
        %v1845 = vrot.slane %v1818, %v1844
        %v1846 = vlaneseq
        %v1847 = vshrl.u32 %v1846, 7
        %v1848 = vsub.s32 0, %v1847
        %v1849 = vrot.slane %v1819, %v1848
        %v1850 = vlaneseq
        %v1851 = vshrl.u32 %v1850, 7
        %v1852 = vsub.s32 0, %v1851
        %v1853 = vrot.slane %v1820, %v1852
        %v1854 = vlaneseq
        %v1855 = vshrl.u32 %v1854, 7
        %v1856 = vsub.s32 0, %v1855
        %v1857 = vrot.slane %v1821, %v1856
        %v1859 = vpack.i.b16 %v1825, %v1825
        %v1861 = vlaneseq
        %v1862 = vshrl.u32 %v1861, 7
        %v1863 = vsub.s32 0, %v1862
        %v1864 = vrot.slane %v1859, %v1863
        %v1866 = vpack.i.b16 %v1829, %v1829
        %v1868 = vlaneseq
        %v1869 = vshrl.u32 %v1868, 7
        %v1870 = vsub.s32 0, %v1869
        %v1871 = vrot.slane %v1866, %v1870
        %v1873 = vpack.i.b16 %v1833, %v1833
        %v1875 = vlaneseq
        %v1876 = vshrl.u32 %v1875, 7
        %v1877 = vsub.s32 0, %v1876
        %v1878 = vrot.slane %v1873, %v1877
        %v1880 = vpack.i.b16 %v1837, %v1837
        %v1882 = vlaneseq
        %v1883 = vshrl.u32 %v1882, 7
        %v1884 = vsub.s32 0, %v1883
        %v1885 = vrot.slane %v1880, %v1884
        %v1887 = vpack.i.b16 %v1841, %v1841
        %v1889 = vlaneseq
        %v1890 = vshrl.u32 %v1889, 7
        %v1891 = vsub.s32 0, %v1890
        %v1892 = vrot.slane %v1887, %v1891
        %v1894 = vpack.i.b16 %v1845, %v1845
        %v1896 = vlaneseq
        %v1897 = vshrl.u32 %v1896, 7
        %v1898 = vsub.s32 0, %v1897
        %v1899 = vrot.slane %v1894, %v1898
        %v1901 = vpack.i.b16 %v1849, %v1849
        %v1903 = vlaneseq
        %v1904 = vshrl.u32 %v1903, 7
        %v1905 = vsub.s32 0, %v1904
        %v1906 = vrot.slane %v1901, %v1905
        %v1908 = vpack.i.b16 %v1853, %v1853
        %v1910 = vlaneseq
        %v1911 = vshrl.u32 %v1910, 7
        %v1912 = vsub.s32 0, %v1911
        %v1913 = vrot.slane %v1908, %v1912
        %v1915 = vpack.i.b16 %v1857, %v1857
        %v1917 = vlaneseq
        %v1918 = vshrl.u32 %v1917, 7
        %v1919 = vsub.s32 0, %v1918
        %v1920 = vrot.slane %v1915, %v1919
        %v1930 = vunpack.c.l.b16 %v1864
        %v1931 = vunpack.c.l.b16 %v1871
        %v1932 = vunpack.c.l.b16 %v1878
        %v1933 = vunpack.c.l.b16 %v1885
        %v1934 = vunpack.c.l.b16 %v1892
        %v1935 = vunpack.c.l.b16 %v1899
        %v1936 = vunpack.c.l.b16 %v1906
        %v1937 = vunpack.c.l.b16 %v1913
        %v1938 = vunpack.c.l.b16 %v1920
        %v1939 = vpack.c.b16 %v1930, %v1930
        %v1940 = vpack.c.b16 %v1931, %v1931
        %v1941 = vpack.c.b16 %v1932, %v1932
        %v1942 = vpack.c.b16 %v1933, %v1933
        %v1943 = vpack.c.b16 %v1934, %v1934
        %v1944 = vpack.c.b16 %v1935, %v1935
        %v1945 = vpack.c.b16 %v1936, %v1936
        %v1946 = vpack.c.b16 %v1937, %v1937
        %v1947 = vpack.c.b16 %v1938, %v1938
        %v1957 = vmul.bf16 %v1474, %v1939
        %v1958 = vmul.bf16 %v1475, %v1939
        %v1959 = vmul.bf16 %v1476, %v1939
        %v1960 = vmul.bf16 %v1477, %v1939
        %v1961 = vmul.bf16 %v1478, %v1939
        %v1962 = vmul.bf16 %v1479, %v1939
        %v1963 = vmul.bf16 %v1480, %v1939
        %v1964 = vmul.bf16 %v1481, %v1939
        %v1965 = vmul.bf16 %v1482, %v1939
        %v1966 = vmul.bf16 %v1483, %v1939
        %v1967 = vmul.bf16 %v1484, %v1939
        %v1968 = vmul.bf16 %v1485, %v1939
        %v1969 = vmul.bf16 %v1486, %v1939
        %v1970 = vmul.bf16 %v1487, %v1939
        %v1971 = vmul.bf16 %v1488, %v1939
        %v1972 = vmul.bf16 %v1489, %v1939
        %v1973 = vmul.bf16 %v1490, %v1939
        %v1974 = vmul.bf16 %v1491, %v1939
        %v1975 = vmul.bf16 %v1492, %v1939
        %v1976 = vmul.bf16 %v1493, %v1939
        %v1977 = vmul.bf16 %v1494, %v1939
        %v1978 = vmul.bf16 %v1495, %v1939
        %v1979 = vmul.bf16 %v1496, %v1939
        %v1980 = vmul.bf16 %v1497, %v1939
        %v1981 = vmul.bf16 %v1498, %v1939
        %v1982 = vmul.bf16 %v1499, %v1939
        %v1983 = vmul.bf16 %v1500, %v1939
        %v1984 = vmul.bf16 %v1501, %v1939
        %v1985 = vmul.bf16 %v1502, %v1939
        %v1986 = vmul.bf16 %v1503, %v1939
        %v1987 = vmul.bf16 %v1504, %v1939
        %v1988 = vmul.bf16 %v1505, %v1939
        %v1989 = vmul.bf16 %v1506, %v1940
        %v1990 = vmul.bf16 %v1507, %v1940
        %v1991 = vmul.bf16 %v1508, %v1940
        %v1992 = vmul.bf16 %v1509, %v1940
        %v1993 = vmul.bf16 %v1510, %v1940
        %v1994 = vmul.bf16 %v1511, %v1940
        %v1995 = vmul.bf16 %v1512, %v1940
        %v1996 = vmul.bf16 %v1513, %v1940
        %v1997 = vmul.bf16 %v1514, %v1940
        %v1998 = vmul.bf16 %v1515, %v1940
        %v1999 = vmul.bf16 %v1516, %v1940
        %v2000 = vmul.bf16 %v1517, %v1940
        %v2001 = vmul.bf16 %v1518, %v1940
        %v2002 = vmul.bf16 %v1519, %v1940
        %v2003 = vmul.bf16 %v1520, %v1940
        %v2004 = vmul.bf16 %v1521, %v1940
        %v2005 = vmul.bf16 %v1522, %v1940
        %v2006 = vmul.bf16 %v1523, %v1940
        %v2007 = vmul.bf16 %v1524, %v1940
        %v2008 = vmul.bf16 %v1525, %v1940
        %v2009 = vmul.bf16 %v1526, %v1940
        %v2010 = vmul.bf16 %v1527, %v1940
        %v2011 = vmul.bf16 %v1528, %v1940
        %v2012 = vmul.bf16 %v1529, %v1940
        %v2013 = vmul.bf16 %v1530, %v1940
        %v2014 = vmul.bf16 %v1531, %v1940
        %v2015 = vmul.bf16 %v1532, %v1940
        %v2016 = vmul.bf16 %v1533, %v1940
        %v2017 = vmul.bf16 %v1534, %v1940
        %v2018 = vmul.bf16 %v1535, %v1940
        %v2019 = vmul.bf16 %v1536, %v1940
        %v2020 = vmul.bf16 %v1537, %v1940
        %v2021 = vmul.bf16 %v1538, %v1941
        %v2022 = vmul.bf16 %v1539, %v1941
        %v2023 = vmul.bf16 %v1540, %v1941
        %v2024 = vmul.bf16 %v1541, %v1941
        %v2025 = vmul.bf16 %v1542, %v1941
        %v2026 = vmul.bf16 %v1543, %v1941
        %v2027 = vmul.bf16 %v1544, %v1941
        %v2028 = vmul.bf16 %v1545, %v1941
        %v2029 = vmul.bf16 %v1546, %v1941
        %v2030 = vmul.bf16 %v1547, %v1941
        %v2031 = vmul.bf16 %v1548, %v1941
        %v2032 = vmul.bf16 %v1549, %v1941
        %v2033 = vmul.bf16 %v1550, %v1941
        %v2034 = vmul.bf16 %v1551, %v1941
        %v2035 = vmul.bf16 %v1552, %v1941
        %v2036 = vmul.bf16 %v1553, %v1941
        %v2037 = vmul.bf16 %v1554, %v1941
        %v2038 = vmul.bf16 %v1555, %v1941
        %v2039 = vmul.bf16 %v1556, %v1941
        %v2040 = vmul.bf16 %v1557, %v1941
        %v2041 = vmul.bf16 %v1558, %v1941
        %v2042 = vmul.bf16 %v1559, %v1941
        %v2043 = vmul.bf16 %v1560, %v1941
        %v2044 = vmul.bf16 %v1561, %v1941
        %v2045 = vmul.bf16 %v1562, %v1941
        %v2046 = vmul.bf16 %v1563, %v1941
        %v2047 = vmul.bf16 %v1564, %v1941
        %v2048 = vmul.bf16 %v1565, %v1941
        %v2049 = vmul.bf16 %v1566, %v1941
        %v2050 = vmul.bf16 %v1567, %v1941
        %v2051 = vmul.bf16 %v1568, %v1941
        %v2052 = vmul.bf16 %v1569, %v1941
        %v2053 = vmul.bf16 %v1570, %v1942
        %v2054 = vmul.bf16 %v1571, %v1942
        %v2055 = vmul.bf16 %v1572, %v1942
        %v2056 = vmul.bf16 %v1573, %v1942
        %v2057 = vmul.bf16 %v1574, %v1942
        %v2058 = vmul.bf16 %v1575, %v1942
        %v2059 = vmul.bf16 %v1576, %v1942
        %v2060 = vmul.bf16 %v1577, %v1942
        %v2061 = vmul.bf16 %v1578, %v1942
        %v2062 = vmul.bf16 %v1579, %v1942
        %v2063 = vmul.bf16 %v1580, %v1942
        %v2064 = vmul.bf16 %v1581, %v1942
        %v2065 = vmul.bf16 %v1582, %v1942
        %v2066 = vmul.bf16 %v1583, %v1942
        %v2067 = vmul.bf16 %v1584, %v1942
        %v2068 = vmul.bf16 %v1585, %v1942
        %v2069 = vmul.bf16 %v1586, %v1942
        %v2070 = vmul.bf16 %v1587, %v1942
        %v2071 = vmul.bf16 %v1588, %v1942
        %v2072 = vmul.bf16 %v1589, %v1942
        %v2073 = vmul.bf16 %v1590, %v1942
        %v2074 = vmul.bf16 %v1591, %v1942
        %v2075 = vmul.bf16 %v1592, %v1942
        %v2076 = vmul.bf16 %v1593, %v1942
        %v2077 = vmul.bf16 %v1594, %v1942
        %v2078 = vmul.bf16 %v1595, %v1942
        %v2079 = vmul.bf16 %v1596, %v1942
        %v2080 = vmul.bf16 %v1597, %v1942
        %v2081 = vmul.bf16 %v1598, %v1942
        %v2082 = vmul.bf16 %v1599, %v1942
        %v2083 = vmul.bf16 %v1600, %v1942
        %v2084 = vmul.bf16 %v1601, %v1942
        %v2085 = vmul.bf16 %v1602, %v1943
        %v2086 = vmul.bf16 %v1603, %v1943
        %v2087 = vmul.bf16 %v1604, %v1943
        %v2088 = vmul.bf16 %v1605, %v1943
        %v2089 = vmul.bf16 %v1606, %v1943
        %v2090 = vmul.bf16 %v1607, %v1943
        %v2091 = vmul.bf16 %v1608, %v1943
        %v2092 = vmul.bf16 %v1609, %v1943
        %v2093 = vmul.bf16 %v1610, %v1943
        %v2094 = vmul.bf16 %v1611, %v1943
        %v2095 = vmul.bf16 %v1612, %v1943
        %v2096 = vmul.bf16 %v1613, %v1943
        %v2097 = vmul.bf16 %v1614, %v1943
        %v2098 = vmul.bf16 %v1615, %v1943
        %v2099 = vmul.bf16 %v1616, %v1943
        %v2100 = vmul.bf16 %v1617, %v1943
        %v2101 = vmul.bf16 %v1618, %v1943
        %v2102 = vmul.bf16 %v1619, %v1943
        %v2103 = vmul.bf16 %v1620, %v1943
        %v2104 = vmul.bf16 %v1621, %v1943
        %v2105 = vmul.bf16 %v1622, %v1943
        %v2106 = vmul.bf16 %v1623, %v1943
        %v2107 = vmul.bf16 %v1624, %v1943
        %v2108 = vmul.bf16 %v1625, %v1943
        %v2109 = vmul.bf16 %v1626, %v1943
        %v2110 = vmul.bf16 %v1627, %v1943
        %v2111 = vmul.bf16 %v1628, %v1943
        %v2112 = vmul.bf16 %v1629, %v1943
        %v2113 = vmul.bf16 %v1630, %v1943
        %v2114 = vmul.bf16 %v1631, %v1943
        %v2115 = vmul.bf16 %v1632, %v1943
        %v2116 = vmul.bf16 %v1633, %v1943
        %v2117 = vmul.bf16 %v1634, %v1944
        %v2118 = vmul.bf16 %v1635, %v1944
        %v2119 = vmul.bf16 %v1636, %v1944
        %v2120 = vmul.bf16 %v1637, %v1944
        %v2121 = vmul.bf16 %v1638, %v1944
        %v2122 = vmul.bf16 %v1639, %v1944
        %v2123 = vmul.bf16 %v1640, %v1944
        %v2124 = vmul.bf16 %v1641, %v1944
        %v2125 = vmul.bf16 %v1642, %v1944
        %v2126 = vmul.bf16 %v1643, %v1944
        %v2127 = vmul.bf16 %v1644, %v1944
        %v2128 = vmul.bf16 %v1645, %v1944
        %v2129 = vmul.bf16 %v1646, %v1944
        %v2130 = vmul.bf16 %v1647, %v1944
        %v2131 = vmul.bf16 %v1648, %v1944
        %v2132 = vmul.bf16 %v1649, %v1944
        %v2133 = vmul.bf16 %v1650, %v1944
        %v2134 = vmul.bf16 %v1651, %v1944
        %v2135 = vmul.bf16 %v1652, %v1944
        %v2136 = vmul.bf16 %v1653, %v1944
        %v2137 = vmul.bf16 %v1654, %v1944
        %v2138 = vmul.bf16 %v1655, %v1944
        %v2139 = vmul.bf16 %v1656, %v1944
        %v2140 = vmul.bf16 %v1657, %v1944
        %v2141 = vmul.bf16 %v1658, %v1944
        %v2142 = vmul.bf16 %v1659, %v1944
        %v2143 = vmul.bf16 %v1660, %v1944
        %v2144 = vmul.bf16 %v1661, %v1944
        %v2145 = vmul.bf16 %v1662, %v1944
        %v2146 = vmul.bf16 %v1663, %v1944
        %v2147 = vmul.bf16 %v1664, %v1944
        %v2148 = vmul.bf16 %v1665, %v1944
        %v2149 = vmul.bf16 %v1666, %v1945
        %v2150 = vmul.bf16 %v1667, %v1945
        %v2151 = vmul.bf16 %v1668, %v1945
        %v2152 = vmul.bf16 %v1669, %v1945
        %v2153 = vmul.bf16 %v1670, %v1945
        %v2154 = vmul.bf16 %v1671, %v1945
        %v2155 = vmul.bf16 %v1672, %v1945
        %v2156 = vmul.bf16 %v1673, %v1945
        %v2157 = vmul.bf16 %v1674, %v1945
        %v2158 = vmul.bf16 %v1675, %v1945
        %v2159 = vmul.bf16 %v1676, %v1945
        %v2160 = vmul.bf16 %v1677, %v1945
        %v2161 = vmul.bf16 %v1678, %v1945
        %v2162 = vmul.bf16 %v1679, %v1945
        %v2163 = vmul.bf16 %v1680, %v1945
        %v2164 = vmul.bf16 %v1681, %v1945
        %v2165 = vmul.bf16 %v1682, %v1945
        %v2166 = vmul.bf16 %v1683, %v1945
        %v2167 = vmul.bf16 %v1684, %v1945
        %v2168 = vmul.bf16 %v1685, %v1945
        %v2169 = vmul.bf16 %v1686, %v1945
        %v2170 = vmul.bf16 %v1687, %v1945
        %v2171 = vmul.bf16 %v1688, %v1945
        %v2172 = vmul.bf16 %v1689, %v1945
        %v2173 = vmul.bf16 %v1690, %v1945
        %v2174 = vmul.bf16 %v1691, %v1945
        %v2175 = vmul.bf16 %v1692, %v1945
        %v2176 = vmul.bf16 %v1693, %v1945
        %v2177 = vmul.bf16 %v1694, %v1945
        %v2178 = vmul.bf16 %v1695, %v1945
        %v2179 = vmul.bf16 %v1696, %v1945
        %v2180 = vmul.bf16 %v1697, %v1945
        %v2181 = vmul.bf16 %v1698, %v1946
        %v2182 = vmul.bf16 %v1699, %v1946
        %v2183 = vmul.bf16 %v1700, %v1946
        %v2184 = vmul.bf16 %v1701, %v1946
        %v2185 = vmul.bf16 %v1702, %v1946
        %v2186 = vmul.bf16 %v1703, %v1946
        %v2187 = vmul.bf16 %v1704, %v1946
        %v2188 = vmul.bf16 %v1705, %v1946
        %v2189 = vmul.bf16 %v1706, %v1946
        %v2190 = vmul.bf16 %v1707, %v1946
        %v2191 = vmul.bf16 %v1708, %v1946
        %v2192 = vmul.bf16 %v1709, %v1946
        %v2193 = vmul.bf16 %v1710, %v1946
        %v2194 = vmul.bf16 %v1711, %v1946
        %v2195 = vmul.bf16 %v1712, %v1946
        %v2196 = vmul.bf16 %v1713, %v1946
        %v2197 = vmul.bf16 %v1714, %v1946
        %v2198 = vmul.bf16 %v1715, %v1946
        %v2199 = vmul.bf16 %v1716, %v1946
        %v2200 = vmul.bf16 %v1717, %v1946
        %v2201 = vmul.bf16 %v1718, %v1946
        %v2202 = vmul.bf16 %v1719, %v1946
        %v2203 = vmul.bf16 %v1720, %v1946
        %v2204 = vmul.bf16 %v1721, %v1946
        %v2205 = vmul.bf16 %v1722, %v1946
        %v2206 = vmul.bf16 %v1723, %v1946
        %v2207 = vmul.bf16 %v1724, %v1946
        %v2208 = vmul.bf16 %v1725, %v1946
        %v2209 = vmul.bf16 %v1726, %v1946
        %v2210 = vmul.bf16 %v1727, %v1946
        %v2211 = vmul.bf16 %v1728, %v1946
        %v2212 = vmul.bf16 %v1729, %v1946
        %v2213 = vmul.bf16 %v1730, %v1947
        %v2214 = vmul.bf16 %v1731, %v1947
        %v2215 = vmul.bf16 %v1732, %v1947
        %v2216 = vmul.bf16 %v1733, %v1947
        %v2217 = vmul.bf16 %v1734, %v1947
        %v2218 = vmul.bf16 %v1735, %v1947
        %v2219 = vmul.bf16 %v1736, %v1947
        %v2220 = vmul.bf16 %v1737, %v1947
        %v2221 = vmul.bf16 %v1738, %v1947
        %v2222 = vmul.bf16 %v1739, %v1947
        %v2223 = vmul.bf16 %v1740, %v1947
        %v2224 = vmul.bf16 %v1741, %v1947
        %v2225 = vmul.bf16 %v1742, %v1947
        %v2226 = vmul.bf16 %v1743, %v1947
        %v2227 = vmul.bf16 %v1744, %v1947
        %v2228 = vmul.bf16 %v1745, %v1947
        %v2229 = vmul.bf16 %v1746, %v1947
        %v2230 = vmul.bf16 %v1747, %v1947
        %v2231 = vmul.bf16 %v1748, %v1947
        %v2232 = vmul.bf16 %v1749, %v1947
        %v2233 = vmul.bf16 %v1750, %v1947
        %v2234 = vmul.bf16 %v1751, %v1947
        %v2235 = vmul.bf16 %v1752, %v1947
        %v2236 = vmul.bf16 %v1753, %v1947
        %v2237 = vmul.bf16 %v1754, %v1947
        %v2238 = vmul.bf16 %v1755, %v1947
        %v2239 = vmul.bf16 %v1756, %v1947
        %v2240 = vmul.bf16 %v1757, %v1947
        %v2241 = vmul.bf16 %v1758, %v1947
        %v2242 = vmul.bf16 %v1759, %v1947
        %v2243 = vmul.bf16 %v1760, %v1947
        %v2244 = vmul.bf16 %v1761, %v1947
        %v2245 = vld [vmem:[%s1464] sm:$0xff]
        %v2246 = vld [vmem:[%s1464 + $0x8] sm:$0xff]
        %v2247 = vld [vmem:[%s1464 + $0x10] sm:$0xff]
        %v2248 = vld [vmem:[%s1464 + $0x18] sm:$0xff]
        %v2249 = vld [vmem:[%s1464 + $0x20] sm:$0xff]
        %v2250 = vld [vmem:[%s1464 + $0x28] sm:$0xff]
        %v2251 = vld [vmem:[%s1464 + $0x30] sm:$0xff]
        %v2252 = vld [vmem:[%s1464 + $0x38] sm:$0xff]
        %v2253 = vld [vmem:[%s1464 + $0x40] sm:$0xff]
        %v2263 = vunpack.c.l.b16 %v2245
        %v2264 = vunpack.c.h.b16 %v2245
        %v2265 = vunpack.c.l.b16 %v2246
        %v2266 = vunpack.c.h.b16 %v2246
        %v2267 = vunpack.c.l.b16 %v2247
        %v2268 = vunpack.c.h.b16 %v2247
        %v2269 = vunpack.c.l.b16 %v2248
        %v2270 = vunpack.c.h.b16 %v2248
        %v2271 = vunpack.c.l.b16 %v2249
        %v2272 = vunpack.c.h.b16 %v2249
        %v2273 = vunpack.c.l.b16 %v2250
        %v2274 = vunpack.c.h.b16 %v2250
        %v2275 = vunpack.c.l.b16 %v2251
        %v2276 = vunpack.c.h.b16 %v2251
        %v2277 = vunpack.c.l.b16 %v2252
        %v2278 = vunpack.c.h.b16 %v2252
        %v2279 = vunpack.c.l.b16 %v2253
        %v2280 = vunpack.c.h.b16 %v2253
        %v2281 = vpack.c.b16 %v2263, %v2263
        %v2282 = vpack.c.b16 %v2264, %v2264
        %v2283 = vpack.c.b16 %v2265, %v2265
        %v2284 = vpack.c.b16 %v2266, %v2266
        %v2285 = vpack.c.b16 %v2267, %v2267
        %v2286 = vpack.c.b16 %v2268, %v2268
        %v2287 = vpack.c.b16 %v2269, %v2269
        %v2288 = vpack.c.b16 %v2270, %v2270
        %v2289 = vpack.c.b16 %v2271, %v2271
        %v2290 = vpack.c.b16 %v2272, %v2272
        %v2291 = vpack.c.b16 %v2273, %v2273
        %v2292 = vpack.c.b16 %v2274, %v2274
        %v2293 = vpack.c.b16 %v2275, %v2275
        %v2294 = vpack.c.b16 %v2276, %v2276
        %v2295 = vpack.c.b16 %v2277, %v2277
        %v2296 = vpack.c.b16 %v2278, %v2278
        %v2297 = vpack.c.b16 %v2279, %v2279
        %v2298 = vpack.c.b16 %v2280, %v2280
        %v2605 = vunpack.c.l.b16 %v1957
        %v2606 = vunpack.c.l.b16 %v1958
        %v2607 = vunpack.c.l.b16 %v1959
        %v2608 = vunpack.c.l.b16 %v1960
        %v2609 = vunpack.c.l.b16 %v1961
        %v2610 = vunpack.c.l.b16 %v1962
        %v2611 = vunpack.c.l.b16 %v1963
        %v2612 = vunpack.c.l.b16 %v1964
        %v2613 = vunpack.c.l.b16 %v1965
        %v2614 = vunpack.c.l.b16 %v1966
        %v2615 = vunpack.c.l.b16 %v1967
        %v2616 = vunpack.c.l.b16 %v1968
        %v2617 = vunpack.c.l.b16 %v1969
        %v2618 = vunpack.c.l.b16 %v1970
        %v2619 = vunpack.c.l.b16 %v1971
        %v2620 = vunpack.c.l.b16 %v1972
        %v2621 = vunpack.c.l.b16 %v1973
        %v2622 = vunpack.c.l.b16 %v1974
        %v2623 = vunpack.c.l.b16 %v1975
        %v2624 = vunpack.c.l.b16 %v1976
        %v2625 = vunpack.c.l.b16 %v1977
        %v2626 = vunpack.c.l.b16 %v1978
        %v2627 = vunpack.c.l.b16 %v1979
        %v2628 = vunpack.c.l.b16 %v1980
        %v2629 = vunpack.c.l.b16 %v1981
        %v2630 = vunpack.c.l.b16 %v1982
        %v2631 = vunpack.c.l.b16 %v1983
        %v2632 = vunpack.c.l.b16 %v1984
        %v2633 = vunpack.c.l.b16 %v1985
        %v2634 = vunpack.c.l.b16 %v1986
        %v2635 = vunpack.c.l.b16 %v1987
        %v2636 = vunpack.c.l.b16 %v1988
        %v2637 = vunpack.c.l.b16 %v1989
        %v2638 = vunpack.c.l.b16 %v1990
        %v2639 = vunpack.c.l.b16 %v1991
        %v2640 = vunpack.c.l.b16 %v1992
        %v2641 = vunpack.c.l.b16 %v1993
        %v2642 = vunpack.c.l.b16 %v1994
        %v2643 = vunpack.c.l.b16 %v1995
        %v2644 = vunpack.c.l.b16 %v1996
        %v2645 = vunpack.c.l.b16 %v1997
        %v2646 = vunpack.c.l.b16 %v1998
        %v2647 = vunpack.c.l.b16 %v1999
        %v2648 = vunpack.c.l.b16 %v2000
        %v2649 = vunpack.c.l.b16 %v2001
        %v2650 = vunpack.c.l.b16 %v2002
        %v2651 = vunpack.c.l.b16 %v2003
        %v2652 = vunpack.c.l.b16 %v2004
        %v2653 = vunpack.c.l.b16 %v2005
        %v2654 = vunpack.c.l.b16 %v2006
        %v2655 = vunpack.c.l.b16 %v2007
        %v2656 = vunpack.c.l.b16 %v2008
        %v2657 = vunpack.c.l.b16 %v2009
        %v2658 = vunpack.c.l.b16 %v2010
        %v2659 = vunpack.c.l.b16 %v2011
        %v2660 = vunpack.c.l.b16 %v2012
        %v2661 = vunpack.c.l.b16 %v2013
        %v2662 = vunpack.c.l.b16 %v2014
        %v2663 = vunpack.c.l.b16 %v2015
        %v2664 = vunpack.c.l.b16 %v2016
        %v2665 = vunpack.c.l.b16 %v2017
        %v2666 = vunpack.c.l.b16 %v2018
        %v2667 = vunpack.c.l.b16 %v2019
        %v2668 = vunpack.c.l.b16 %v2020
        %v2669 = vunpack.c.l.b16 %v2021
        %v2670 = vunpack.c.l.b16 %v2022
        %v2671 = vunpack.c.l.b16 %v2023
        %v2672 = vunpack.c.l.b16 %v2024
        %v2673 = vunpack.c.l.b16 %v2025
        %v2674 = vunpack.c.l.b16 %v2026
        %v2675 = vunpack.c.l.b16 %v2027
        %v2676 = vunpack.c.l.b16 %v2028
        %v2677 = vunpack.c.l.b16 %v2029
        %v2678 = vunpack.c.l.b16 %v2030
        %v2679 = vunpack.c.l.b16 %v2031
        %v2680 = vunpack.c.l.b16 %v2032
        %v2681 = vunpack.c.l.b16 %v2033
        %v2682 = vunpack.c.l.b16 %v2034
        %v2683 = vunpack.c.l.b16 %v2035
        %v2684 = vunpack.c.l.b16 %v2036
        %v2685 = vunpack.c.l.b16 %v2037
        %v2686 = vunpack.c.l.b16 %v2038
        %v2687 = vunpack.c.l.b16 %v2039
        %v2688 = vunpack.c.l.b16 %v2040
        %v2689 = vunpack.c.l.b16 %v2041
        %v2690 = vunpack.c.l.b16 %v2042
        %v2691 = vunpack.c.l.b16 %v2043
        %v2692 = vunpack.c.l.b16 %v2044
        %v2693 = vunpack.c.l.b16 %v2045
        %v2694 = vunpack.c.l.b16 %v2046
        %v2695 = vunpack.c.l.b16 %v2047
        %v2696 = vunpack.c.l.b16 %v2048
        %v2697 = vunpack.c.l.b16 %v2049
        %v2698 = vunpack.c.l.b16 %v2050
        %v2699 = vunpack.c.l.b16 %v2051
        %v2700 = vunpack.c.l.b16 %v2052
        %v2701 = vunpack.c.l.b16 %v2053
        %v2702 = vunpack.c.l.b16 %v2054
        %v2703 = vunpack.c.l.b16 %v2055
        %v2704 = vunpack.c.l.b16 %v2056
        %v2705 = vunpack.c.l.b16 %v2057
        %v2706 = vunpack.c.l.b16 %v2058
        %v2707 = vunpack.c.l.b16 %v2059
        %v2708 = vunpack.c.l.b16 %v2060
        %v2709 = vunpack.c.l.b16 %v2061
        %v2710 = vunpack.c.l.b16 %v2062
        %v2711 = vunpack.c.l.b16 %v2063
        %v2712 = vunpack.c.l.b16 %v2064
        %v2713 = vunpack.c.l.b16 %v2065
        %v2714 = vunpack.c.l.b16 %v2066
        %v2715 = vunpack.c.l.b16 %v2067
        %v2716 = vunpack.c.l.b16 %v2068
        %v2717 = vunpack.c.l.b16 %v2069
        %v2718 = vunpack.c.l.b16 %v2070
        %v2719 = vunpack.c.l.b16 %v2071
        %v2720 = vunpack.c.l.b16 %v2072
        %v2721 = vunpack.c.l.b16 %v2073
        %v2722 = vunpack.c.l.b16 %v2074
        %v2723 = vunpack.c.l.b16 %v2075
        %v2724 = vunpack.c.l.b16 %v2076
        %v2725 = vunpack.c.l.b16 %v2077
        %v2726 = vunpack.c.l.b16 %v2078
        %v2727 = vunpack.c.l.b16 %v2079
        %v2728 = vunpack.c.l.b16 %v2080
        %v2729 = vunpack.c.l.b16 %v2081
        %v2730 = vunpack.c.l.b16 %v2082
        %v2731 = vunpack.c.l.b16 %v2083
        %v2732 = vunpack.c.l.b16 %v2084
        %v2733 = vunpack.c.l.b16 %v2085
        %v2734 = vunpack.c.l.b16 %v2086
        %v2735 = vunpack.c.l.b16 %v2087
        %v2736 = vunpack.c.l.b16 %v2088
        %v2737 = vunpack.c.l.b16 %v2089
        %v2738 = vunpack.c.l.b16 %v2090
        %v2739 = vunpack.c.l.b16 %v2091
        %v2740 = vunpack.c.l.b16 %v2092
        %v2741 = vunpack.c.l.b16 %v2093
        %v2742 = vunpack.c.l.b16 %v2094
        %v2743 = vunpack.c.l.b16 %v2095
        %v2744 = vunpack.c.l.b16 %v2096
        %v2745 = vunpack.c.l.b16 %v2097
        %v2746 = vunpack.c.l.b16 %v2098
        %v2747 = vunpack.c.l.b16 %v2099
        %v2748 = vunpack.c.l.b16 %v2100
        %v2749 = vunpack.c.l.b16 %v2101
        %v2750 = vunpack.c.l.b16 %v2102
        %v2751 = vunpack.c.l.b16 %v2103
        %v2752 = vunpack.c.l.b16 %v2104
        %v2753 = vunpack.c.l.b16 %v2105
        %v2754 = vunpack.c.l.b16 %v2106
        %v2755 = vunpack.c.l.b16 %v2107
        %v2756 = vunpack.c.l.b16 %v2108
        %v2757 = vunpack.c.l.b16 %v2109
        %v2758 = vunpack.c.l.b16 %v2110
        %v2759 = vunpack.c.l.b16 %v2111
        %v2760 = vunpack.c.l.b16 %v2112
        %v2761 = vunpack.c.l.b16 %v2113
        %v2762 = vunpack.c.l.b16 %v2114
        %v2763 = vunpack.c.l.b16 %v2115
        %v2764 = vunpack.c.l.b16 %v2116
        %v2765 = vunpack.c.l.b16 %v2117
        %v2766 = vunpack.c.l.b16 %v2118
        %v2767 = vunpack.c.l.b16 %v2119
        %v2768 = vunpack.c.l.b16 %v2120
        %v2769 = vunpack.c.l.b16 %v2121
        %v2770 = vunpack.c.l.b16 %v2122
        %v2771 = vunpack.c.l.b16 %v2123
        %v2772 = vunpack.c.l.b16 %v2124
        %v2773 = vunpack.c.l.b16 %v2125
        %v2774 = vunpack.c.l.b16 %v2126
        %v2775 = vunpack.c.l.b16 %v2127
        %v2776 = vunpack.c.l.b16 %v2128
        %v2777 = vunpack.c.l.b16 %v2129
        %v2778 = vunpack.c.l.b16 %v2130
        %v2779 = vunpack.c.l.b16 %v2131
        %v2780 = vunpack.c.l.b16 %v2132
        %v2781 = vunpack.c.l.b16 %v2133
        %v2782 = vunpack.c.l.b16 %v2134
        %v2783 = vunpack.c.l.b16 %v2135
        %v2784 = vunpack.c.l.b16 %v2136
        %v2785 = vunpack.c.l.b16 %v2137
        %v2786 = vunpack.c.l.b16 %v2138
        %v2787 = vunpack.c.l.b16 %v2139
        %v2788 = vunpack.c.l.b16 %v2140
        %v2789 = vunpack.c.l.b16 %v2141
        %v2790 = vunpack.c.l.b16 %v2142
        %v2791 = vunpack.c.l.b16 %v2143
        %v2792 = vunpack.c.l.b16 %v2144
        %v2793 = vunpack.c.l.b16 %v2145
        %v2794 = vunpack.c.l.b16 %v2146
        %v2795 = vunpack.c.l.b16 %v2147
        %v2796 = vunpack.c.l.b16 %v2148
        %v2797 = vunpack.c.l.b16 %v2149
        %v2798 = vunpack.c.l.b16 %v2150
        %v2799 = vunpack.c.l.b16 %v2151
        %v2800 = vunpack.c.l.b16 %v2152
        %v2801 = vunpack.c.l.b16 %v2153
        %v2802 = vunpack.c.l.b16 %v2154
        %v2803 = vunpack.c.l.b16 %v2155
        %v2804 = vunpack.c.l.b16 %v2156
        %v2805 = vunpack.c.l.b16 %v2157
        %v2806 = vunpack.c.l.b16 %v2158
        %v2807 = vunpack.c.l.b16 %v2159
        %v2808 = vunpack.c.l.b16 %v2160
        %v2809 = vunpack.c.l.b16 %v2161
        %v2810 = vunpack.c.l.b16 %v2162
        %v2811 = vunpack.c.l.b16 %v2163
        %v2812 = vunpack.c.l.b16 %v2164
        %v2813 = vunpack.c.l.b16 %v2165
        %v2814 = vunpack.c.l.b16 %v2166
        %v2815 = vunpack.c.l.b16 %v2167
        %v2816 = vunpack.c.l.b16 %v2168
        %v2817 = vunpack.c.l.b16 %v2169
        %v2818 = vunpack.c.l.b16 %v2170
        %v2819 = vunpack.c.l.b16 %v2171
        %v2820 = vunpack.c.l.b16 %v2172
        %v2821 = vunpack.c.l.b16 %v2173
        %v2822 = vunpack.c.l.b16 %v2174
        %v2823 = vunpack.c.l.b16 %v2175
        %v2824 = vunpack.c.l.b16 %v2176
        %v2825 = vunpack.c.l.b16 %v2177
        %v2826 = vunpack.c.l.b16 %v2178
        %v2827 = vunpack.c.l.b16 %v2179
        %v2828 = vunpack.c.l.b16 %v2180
        %v2829 = vunpack.c.l.b16 %v2181
        %v2830 = vunpack.c.l.b16 %v2182
        %v2831 = vunpack.c.l.b16 %v2183
        %v2832 = vunpack.c.l.b16 %v2184
        %v2833 = vunpack.c.l.b16 %v2185
        %v2834 = vunpack.c.l.b16 %v2186
        %v2835 = vunpack.c.l.b16 %v2187
        %v2836 = vunpack.c.l.b16 %v2188
        %v2837 = vunpack.c.l.b16 %v2189
        %v2838 = vunpack.c.l.b16 %v2190
        %v2839 = vunpack.c.l.b16 %v2191
        %v2840 = vunpack.c.l.b16 %v2192
        %v2841 = vunpack.c.l.b16 %v2193
        %v2842 = vunpack.c.l.b16 %v2194
        %v2843 = vunpack.c.l.b16 %v2195
        %v2844 = vunpack.c.l.b16 %v2196
        %v2845 = vunpack.c.l.b16 %v2197
        %v2846 = vunpack.c.l.b16 %v2198
        %v2847 = vunpack.c.l.b16 %v2199
        %v2848 = vunpack.c.l.b16 %v2200
        %v2849 = vunpack.c.l.b16 %v2201
        %v2850 = vunpack.c.l.b16 %v2202
        %v2851 = vunpack.c.l.b16 %v2203
        %v2852 = vunpack.c.l.b16 %v2204
        %v2853 = vunpack.c.l.b16 %v2205
        %v2854 = vunpack.c.l.b16 %v2206
        %v2855 = vunpack.c.l.b16 %v2207
        %v2856 = vunpack.c.l.b16 %v2208
        %v2857 = vunpack.c.l.b16 %v2209
        %v2858 = vunpack.c.l.b16 %v2210
        %v2859 = vunpack.c.l.b16 %v2211
        %v2860 = vunpack.c.l.b16 %v2212
        %v2861 = vunpack.c.l.b16 %v2213
        %v2862 = vunpack.c.l.b16 %v2214
        %v2863 = vunpack.c.l.b16 %v2215
        %v2864 = vunpack.c.l.b16 %v2216
        %v2865 = vunpack.c.l.b16 %v2217
        %v2866 = vunpack.c.l.b16 %v2218
        %v2867 = vunpack.c.l.b16 %v2219
        %v2868 = vunpack.c.l.b16 %v2220
        %v2869 = vunpack.c.l.b16 %v2221
        %v2870 = vunpack.c.l.b16 %v2222
        %v2871 = vunpack.c.l.b16 %v2223
        %v2872 = vunpack.c.l.b16 %v2224
        %v2873 = vunpack.c.l.b16 %v2225
        %v2874 = vunpack.c.l.b16 %v2226
        %v2875 = vunpack.c.l.b16 %v2227
        %v2876 = vunpack.c.l.b16 %v2228
        %v2877 = vunpack.c.l.b16 %v2229
        %v2878 = vunpack.c.l.b16 %v2230
        %v2879 = vunpack.c.l.b16 %v2231
        %v2880 = vunpack.c.l.b16 %v2232
        %v2881 = vunpack.c.l.b16 %v2233
        %v2882 = vunpack.c.l.b16 %v2234
        %v2883 = vunpack.c.l.b16 %v2235
        %v2884 = vunpack.c.l.b16 %v2236
        %v2885 = vunpack.c.l.b16 %v2237
        %v2886 = vunpack.c.l.b16 %v2238
        %v2887 = vunpack.c.l.b16 %v2239
        %v2888 = vunpack.c.l.b16 %v2240
        %v2889 = vunpack.c.l.b16 %v2241
        %v2890 = vunpack.c.l.b16 %v2242
        %v2891 = vunpack.c.l.b16 %v2243
        %v2892 = vunpack.c.l.b16 %v2244
        %v2893 = vpack.c.b16 %v2606, %v2605
        %v2894 = vpack.c.b16 %v2608, %v2607
        %v2895 = vpack.c.b16 %v2610, %v2609
        %v2896 = vpack.c.b16 %v2612, %v2611
        %v2897 = vpack.c.b16 %v2614, %v2613
        %v2898 = vpack.c.b16 %v2616, %v2615
        %v2899 = vpack.c.b16 %v2618, %v2617
        %v2900 = vpack.c.b16 %v2620, %v2619
        %v2901 = vpack.c.b16 %v2622, %v2621
        %v2902 = vpack.c.b16 %v2624, %v2623
        %v2903 = vpack.c.b16 %v2626, %v2625
        %v2904 = vpack.c.b16 %v2628, %v2627
        %v2905 = vpack.c.b16 %v2630, %v2629
        %v2906 = vpack.c.b16 %v2632, %v2631
        %v2907 = vpack.c.b16 %v2634, %v2633
        %v2908 = vpack.c.b16 %v2636, %v2635
        %v2909 = vpack.c.b16 %v2638, %v2637
        %v2910 = vpack.c.b16 %v2640, %v2639
        %v2911 = vpack.c.b16 %v2642, %v2641
        %v2912 = vpack.c.b16 %v2644, %v2643
        %v2913 = vpack.c.b16 %v2646, %v2645
        %v2914 = vpack.c.b16 %v2648, %v2647
        %v2915 = vpack.c.b16 %v2650, %v2649
        %v2916 = vpack.c.b16 %v2652, %v2651
        %v2917 = vpack.c.b16 %v2654, %v2653
        %v2918 = vpack.c.b16 %v2656, %v2655
        %v2919 = vpack.c.b16 %v2658, %v2657
        %v2920 = vpack.c.b16 %v2660, %v2659
        %v2921 = vpack.c.b16 %v2662, %v2661
        %v2922 = vpack.c.b16 %v2664, %v2663
        %v2923 = vpack.c.b16 %v2666, %v2665
        %v2924 = vpack.c.b16 %v2668, %v2667
        %v2925 = vpack.c.b16 %v2670, %v2669
        %v2926 = vpack.c.b16 %v2672, %v2671
        %v2927 = vpack.c.b16 %v2674, %v2673
        %v2928 = vpack.c.b16 %v2676, %v2675
        %v2929 = vpack.c.b16 %v2678, %v2677
        %v2930 = vpack.c.b16 %v2680, %v2679
        %v2931 = vpack.c.b16 %v2682, %v2681
        %v2932 = vpack.c.b16 %v2684, %v2683
        %v2933 = vpack.c.b16 %v2686, %v2685
        %v2934 = vpack.c.b16 %v2688, %v2687
        %v2935 = vpack.c.b16 %v2690, %v2689
        %v2936 = vpack.c.b16 %v2692, %v2691
        %v2937 = vpack.c.b16 %v2694, %v2693
        %v2938 = vpack.c.b16 %v2696, %v2695
        %v2939 = vpack.c.b16 %v2698, %v2697
        %v2940 = vpack.c.b16 %v2700, %v2699
        %v2941 = vpack.c.b16 %v2702, %v2701
        %v2942 = vpack.c.b16 %v2704, %v2703
        %v2943 = vpack.c.b16 %v2706, %v2705
        %v2944 = vpack.c.b16 %v2708, %v2707
        %v2945 = vpack.c.b16 %v2710, %v2709
        %v2946 = vpack.c.b16 %v2712, %v2711
        %v2947 = vpack.c.b16 %v2714, %v2713
        %v2948 = vpack.c.b16 %v2716, %v2715
        %v2949 = vpack.c.b16 %v2718, %v2717
        %v2950 = vpack.c.b16 %v2720, %v2719
        %v2951 = vpack.c.b16 %v2722, %v2721
        %v2952 = vpack.c.b16 %v2724, %v2723
        %v2953 = vpack.c.b16 %v2726, %v2725
        %v2954 = vpack.c.b16 %v2728, %v2727
        %v2955 = vpack.c.b16 %v2730, %v2729
        %v2956 = vpack.c.b16 %v2732, %v2731
        %v2957 = vpack.c.b16 %v2734, %v2733
        %v2958 = vpack.c.b16 %v2736, %v2735
        %v2959 = vpack.c.b16 %v2738, %v2737
        %v2960 = vpack.c.b16 %v2740, %v2739
        %v2961 = vpack.c.b16 %v2742, %v2741
        %v2962 = vpack.c.b16 %v2744, %v2743
        %v2963 = vpack.c.b16 %v2746, %v2745
        %v2964 = vpack.c.b16 %v2748, %v2747
        %v2965 = vpack.c.b16 %v2750, %v2749
        %v2966 = vpack.c.b16 %v2752, %v2751
        %v2967 = vpack.c.b16 %v2754, %v2753
        %v2968 = vpack.c.b16 %v2756, %v2755
        %v2969 = vpack.c.b16 %v2758, %v2757
        %v2970 = vpack.c.b16 %v2760, %v2759
        %v2971 = vpack.c.b16 %v2762, %v2761
        %v2972 = vpack.c.b16 %v2764, %v2763
        %v2973 = vpack.c.b16 %v2766, %v2765
        %v2974 = vpack.c.b16 %v2768, %v2767
        %v2975 = vpack.c.b16 %v2770, %v2769
        %v2976 = vpack.c.b16 %v2772, %v2771
        %v2977 = vpack.c.b16 %v2774, %v2773
        %v2978 = vpack.c.b16 %v2776, %v2775
        %v2979 = vpack.c.b16 %v2778, %v2777
        %v2980 = vpack.c.b16 %v2780, %v2779
        %v2981 = vpack.c.b16 %v2782, %v2781
        %v2982 = vpack.c.b16 %v2784, %v2783
        %v2983 = vpack.c.b16 %v2786, %v2785
        %v2984 = vpack.c.b16 %v2788, %v2787
        %v2985 = vpack.c.b16 %v2790, %v2789
        %v2986 = vpack.c.b16 %v2792, %v2791
        %v2987 = vpack.c.b16 %v2794, %v2793
        %v2988 = vpack.c.b16 %v2796, %v2795
        %v2989 = vpack.c.b16 %v2798, %v2797
        %v2990 = vpack.c.b16 %v2800, %v2799
        %v2991 = vpack.c.b16 %v2802, %v2801
        %v2992 = vpack.c.b16 %v2804, %v2803
        %v2993 = vpack.c.b16 %v2806, %v2805
        %v2994 = vpack.c.b16 %v2808, %v2807
        %v2995 = vpack.c.b16 %v2810, %v2809
        %v2996 = vpack.c.b16 %v2812, %v2811
        %v2997 = vpack.c.b16 %v2814, %v2813
        %v2998 = vpack.c.b16 %v2816, %v2815
        %v2999 = vpack.c.b16 %v2818, %v2817
        %v3000 = vpack.c.b16 %v2820, %v2819
        %v3001 = vpack.c.b16 %v2822, %v2821
        %v3002 = vpack.c.b16 %v2824, %v2823
        %v3003 = vpack.c.b16 %v2826, %v2825
        %v3004 = vpack.c.b16 %v2828, %v2827
        %v3005 = vpack.c.b16 %v2830, %v2829
        %v3006 = vpack.c.b16 %v2832, %v2831
        %v3007 = vpack.c.b16 %v2834, %v2833
        %v3008 = vpack.c.b16 %v2836, %v2835
        %v3009 = vpack.c.b16 %v2838, %v2837
        %v3010 = vpack.c.b16 %v2840, %v2839
        %v3011 = vpack.c.b16 %v2842, %v2841
        %v3012 = vpack.c.b16 %v2844, %v2843
        %v3013 = vpack.c.b16 %v2846, %v2845
        %v3014 = vpack.c.b16 %v2848, %v2847
        %v3015 = vpack.c.b16 %v2850, %v2849
        %v3016 = vpack.c.b16 %v2852, %v2851
        %v3017 = vpack.c.b16 %v2854, %v2853
        %v3018 = vpack.c.b16 %v2856, %v2855
        %v3019 = vpack.c.b16 %v2858, %v2857
        %v3020 = vpack.c.b16 %v2860, %v2859
        %v3021 = vpack.c.b16 %v2862, %v2861
        %v3022 = vpack.c.b16 %v2864, %v2863
        %v3023 = vpack.c.b16 %v2866, %v2865
        %v3024 = vpack.c.b16 %v2868, %v2867
        %v3025 = vpack.c.b16 %v2870, %v2869
        %v3026 = vpack.c.b16 %v2872, %v2871
        %v3027 = vpack.c.b16 %v2874, %v2873
        %v3028 = vpack.c.b16 %v2876, %v2875
        %v3029 = vpack.c.b16 %v2878, %v2877
        %v3030 = vpack.c.b16 %v2880, %v2879
        %v3031 = vpack.c.b16 %v2882, %v2881
        %v3032 = vpack.c.b16 %v2884, %v2883
        %v3033 = vpack.c.b16 %v2886, %v2885
        %v3034 = vpack.c.b16 %v2888, %v2887
        %v3035 = vpack.c.b16 %v2890, %v2889
        %v3036 = vpack.c.b16 %v2892, %v2891
        %3181 = vmatprep.subr.bf16.mxu0 0
        %3182 = vmatpush1.bf16.msra.mxu0 %v2893
        %3183 = vmatprep.subr.bf16.mxu0 0
        %3184 = vmatpush1.bf16.msra.mxu0 %v2894
        %3185 = vmatprep.subr.bf16.mxu0 0
        %3186 = vmatpush1.bf16.msra.mxu0 %v2895
        %3187 = vmatprep.subr.bf16.mxu0 0
        %3188 = vmatpush1.bf16.msra.mxu0 %v2896
        %3189 = vmatprep.subr.bf16.mxu0 0
        %3190 = vmatpush1.bf16.msra.mxu0 %v2897
        %3191 = vmatprep.subr.bf16.mxu0 0
        %3192 = vmatpush1.bf16.msra.mxu0 %v2898
        %3193 = vmatprep.subr.bf16.mxu0 0
        %3194 = vmatpush1.bf16.msra.mxu0 %v2899
        %3195 = vmatprep.subr.bf16.mxu0 0
        %3196 = vmatpush1.bf16.msra.mxu0 %v2900
        %3197 = vmatprep.subr.bf16.mxu0 0
        %3198 = vmatpush1.bf16.msra.mxu0 %v2901
        %3199 = vmatprep.subr.bf16.mxu0 0
        %3200 = vmatpush1.bf16.msra.mxu0 %v2902
        %3201 = vmatprep.subr.bf16.mxu0 0
        %3202 = vmatpush1.bf16.msra.mxu0 %v2903
        %3203 = vmatprep.subr.bf16.mxu0 0
        %3204 = vmatpush1.bf16.msra.mxu0 %v2904
        %3205 = vmatprep.subr.bf16.mxu0 0
        %3206 = vmatpush1.bf16.msra.mxu0 %v2905
        %3207 = vmatprep.subr.bf16.mxu0 0
        %3208 = vmatpush1.bf16.msra.mxu0 %v2906
        %3209 = vmatprep.subr.bf16.mxu0 0
        %3210 = vmatpush1.bf16.msra.mxu0 %v2907
        %3211 = vmatprep.subr.bf16.mxu0 0
        %3212 = vmatpush1.bf16.msra.mxu0 %v2908
        %3213 = vmatprep.mubr.bf16.mxu0 %v2282
        %3214 = vmatmul.mubr.bf16.gmra.mrb[0].mxu0 %v2281
        %v3215 = vpop.f32.mrb[0].mxu0
        %v3216 = vadd.f32 0.0, %v3215
        %v3217 = vpop.f32.mrb[0].mxu0
        %v3218 = vpop.f32.mrb[0].mxu0
        %v3219 = vpop.f32.mrb[0].mxu0
        %3220 = vdwg.mxu0
        %3221 = vmatprep.subr.bf16.mxu0 0
        %3222 = vmatpush1.bf16.msra.mxu0 %v2909
        %3223 = vmatprep.subr.bf16.mxu0 0
        %3224 = vmatpush1.bf16.msra.mxu0 %v2910
        %3225 = vmatprep.subr.bf16.mxu0 0
        %3226 = vmatpush1.bf16.msra.mxu0 %v2911
        %3227 = vmatprep.subr.bf16.mxu0 0
        %3228 = vmatpush1.bf16.msra.mxu0 %v2912
        %3229 = vmatprep.subr.bf16.mxu0 0
        %3230 = vmatpush1.bf16.msra.mxu0 %v2913
        %3231 = vmatprep.subr.bf16.mxu0 0
        %3232 = vmatpush1.bf16.msra.mxu0 %v2914
        %3233 = vmatprep.subr.bf16.mxu0 0
        %3234 = vmatpush1.bf16.msra.mxu0 %v2915
        %3235 = vmatprep.subr.bf16.mxu0 0
        %3236 = vmatpush1.bf16.msra.mxu0 %v2916
        %3237 = vmatprep.subr.bf16.mxu0 0
        %3238 = vmatpush1.bf16.msra.mxu0 %v2917
        %3239 = vmatprep.subr.bf16.mxu0 0
        %3240 = vmatpush1.bf16.msra.mxu0 %v2918
        %3241 = vmatprep.subr.bf16.mxu0 0
        %3242 = vmatpush1.bf16.msra.mxu0 %v2919
        %3243 = vmatprep.subr.bf16.mxu0 0
        %3244 = vmatpush1.bf16.msra.mxu0 %v2920
        %3245 = vmatprep.subr.bf16.mxu0 0
        %3246 = vmatpush1.bf16.msra.mxu0 %v2921
        %3247 = vmatprep.subr.bf16.mxu0 0
        %3248 = vmatpush1.bf16.msra.mxu0 %v2922
        %3249 = vmatprep.subr.bf16.mxu0 0
        %3250 = vmatpush1.bf16.msra.mxu0 %v2923
        %3251 = vmatprep.subr.bf16.mxu0 0
        %3252 = vmatpush1.bf16.msra.mxu0 %v2924
        %3253 = vmatprep.mubr.bf16.mxu0 %v2284
        %3254 = vmatmul.mubr.bf16.gmra.mrb[0].mxu0 %v2283
        %v3255 = vpop.f32.mrb[0].mxu0
        %v3256 = vadd.f32 %v3216, %v3255
        %v3257 = vpop.f32.mrb[0].mxu0
        %v3258 = vpop.f32.mrb[0].mxu0
        %v3259 = vpop.f32.mrb[0].mxu0
        %3260 = vdwg.mxu0
        %3261 = vmatprep.subr.bf16.mxu0 0
        %3262 = vmatpush1.bf16.msra.mxu0 %v2925
        %3263 = vmatprep.subr.bf16.mxu0 0
        %3264 = vmatpush1.bf16.msra.mxu0 %v2926
        %3265 = vmatprep.subr.bf16.mxu0 0
        %3266 = vmatpush1.bf16.msra.mxu0 %v2927
        %3267 = vmatprep.subr.bf16.mxu0 0
        %3268 = vmatpush1.bf16.msra.mxu0 %v2928
        %3269 = vmatprep.subr.bf16.mxu0 0
        %3270 = vmatpush1.bf16.msra.mxu0 %v2929
        %3271 = vmatprep.subr.bf16.mxu0 0
        %3272 = vmatpush1.bf16.msra.mxu0 %v2930
        %3273 = vmatprep.subr.bf16.mxu0 0
        %3274 = vmatpush1.bf16.msra.mxu0 %v2931
        %3275 = vmatprep.subr.bf16.mxu0 0
        %3276 = vmatpush1.bf16.msra.mxu0 %v2932
        %3277 = vmatprep.subr.bf16.mxu0 0
        %3278 = vmatpush1.bf16.msra.mxu0 %v2933
        %3279 = vmatprep.subr.bf16.mxu0 0
        %3280 = vmatpush1.bf16.msra.mxu0 %v2934
        %3281 = vmatprep.subr.bf16.mxu0 0
        %3282 = vmatpush1.bf16.msra.mxu0 %v2935
        %3283 = vmatprep.subr.bf16.mxu0 0
        %3284 = vmatpush1.bf16.msra.mxu0 %v2936
        %3285 = vmatprep.subr.bf16.mxu0 0
        %3286 = vmatpush1.bf16.msra.mxu0 %v2937
        %3287 = vmatprep.subr.bf16.mxu0 0
        %3288 = vmatpush1.bf16.msra.mxu0 %v2938
        %3289 = vmatprep.subr.bf16.mxu0 0
        %3290 = vmatpush1.bf16.msra.mxu0 %v2939
        %3291 = vmatprep.subr.bf16.mxu0 0
        %3292 = vmatpush1.bf16.msra.mxu0 %v2940
        %3293 = vmatprep.mubr.bf16.mxu0 %v2286
        %3294 = vmatmul.mubr.bf16.gmra.mrb[0].mxu0 %v2285
        %v3295 = vpop.f32.mrb[0].mxu0
        %v3296 = vadd.f32 %v3256, %v3295
        %v3297 = vpop.f32.mrb[0].mxu0
        %v3298 = vpop.f32.mrb[0].mxu0
        %v3299 = vpop.f32.mrb[0].mxu0
        %3300 = vdwg.mxu0
        %3301 = vmatprep.subr.bf16.mxu0 0
        %3302 = vmatpush1.bf16.msra.mxu0 %v2941
        %3303 = vmatprep.subr.bf16.mxu0 0
        %3304 = vmatpush1.bf16.msra.mxu0 %v2942
        %3305 = vmatprep.subr.bf16.mxu0 0
        %3306 = vmatpush1.bf16.msra.mxu0 %v2943
        %3307 = vmatprep.subr.bf16.mxu0 0
        %3308 = vmatpush1.bf16.msra.mxu0 %v2944
        %3309 = vmatprep.subr.bf16.mxu0 0
        %3310 = vmatpush1.bf16.msra.mxu0 %v2945
        %3311 = vmatprep.subr.bf16.mxu0 0
        %3312 = vmatpush1.bf16.msra.mxu0 %v2946
        %3313 = vmatprep.subr.bf16.mxu0 0
        %3314 = vmatpush1.bf16.msra.mxu0 %v2947
        %3315 = vmatprep.subr.bf16.mxu0 0
        %3316 = vmatpush1.bf16.msra.mxu0 %v2948
        %3317 = vmatprep.subr.bf16.mxu0 0
        %3318 = vmatpush1.bf16.msra.mxu0 %v2949
        %3319 = vmatprep.subr.bf16.mxu0 0
        %3320 = vmatpush1.bf16.msra.mxu0 %v2950
        %3321 = vmatprep.subr.bf16.mxu0 0
        %3322 = vmatpush1.bf16.msra.mxu0 %v2951
        %3323 = vmatprep.subr.bf16.mxu0 0
        %3324 = vmatpush1.bf16.msra.mxu0 %v2952
        %3325 = vmatprep.subr.bf16.mxu0 0
        %3326 = vmatpush1.bf16.msra.mxu0 %v2953
        %3327 = vmatprep.subr.bf16.mxu0 0
        %3328 = vmatpush1.bf16.msra.mxu0 %v2954
        %3329 = vmatprep.subr.bf16.mxu0 0
        %3330 = vmatpush1.bf16.msra.mxu0 %v2955
        %3331 = vmatprep.subr.bf16.mxu0 0
        %3332 = vmatpush1.bf16.msra.mxu0 %v2956
        %3333 = vmatprep.mubr.bf16.mxu0 %v2288
        %3334 = vmatmul.mubr.bf16.gmra.mrb[0].mxu0 %v2287
        %v3335 = vpop.f32.mrb[0].mxu0
        %v3336 = vadd.f32 %v3296, %v3335
        %v3337 = vpop.f32.mrb[0].mxu0
        %v3338 = vpop.f32.mrb[0].mxu0
        %v3339 = vpop.f32.mrb[0].mxu0
        %3340 = vdwg.mxu0
        %3341 = vmatprep.subr.bf16.mxu0 0
        %3342 = vmatpush1.bf16.msra.mxu0 %v2957
        %3343 = vmatprep.subr.bf16.mxu0 0
        %3344 = vmatpush1.bf16.msra.mxu0 %v2958
        %3345 = vmatprep.subr.bf16.mxu0 0
        %3346 = vmatpush1.bf16.msra.mxu0 %v2959
        %3347 = vmatprep.subr.bf16.mxu0 0
        %3348 = vmatpush1.bf16.msra.mxu0 %v2960
        %3349 = vmatprep.subr.bf16.mxu0 0
        %3350 = vmatpush1.bf16.msra.mxu0 %v2961
        %3351 = vmatprep.subr.bf16.mxu0 0
        %3352 = vmatpush1.bf16.msra.mxu0 %v2962
        %3353 = vmatprep.subr.bf16.mxu0 0
        %3354 = vmatpush1.bf16.msra.mxu0 %v2963
        %3355 = vmatprep.subr.bf16.mxu0 0
        %3356 = vmatpush1.bf16.msra.mxu0 %v2964
        %3357 = vmatprep.subr.bf16.mxu0 0
        %3358 = vmatpush1.bf16.msra.mxu0 %v2965
        %3359 = vmatprep.subr.bf16.mxu0 0
        %3360 = vmatpush1.bf16.msra.mxu0 %v2966
        %3361 = vmatprep.subr.bf16.mxu0 0
        %3362 = vmatpush1.bf16.msra.mxu0 %v2967
        %3363 = vmatprep.subr.bf16.mxu0 0
        %3364 = vmatpush1.bf16.msra.mxu0 %v2968
        %3365 = vmatprep.subr.bf16.mxu0 0
        %3366 = vmatpush1.bf16.msra.mxu0 %v2969
        %3367 = vmatprep.subr.bf16.mxu0 0
        %3368 = vmatpush1.bf16.msra.mxu0 %v2970
        %3369 = vmatprep.subr.bf16.mxu0 0
        %3370 = vmatpush1.bf16.msra.mxu0 %v2971
        %3371 = vmatprep.subr.bf16.mxu0 0
        %3372 = vmatpush1.bf16.msra.mxu0 %v2972
        %3373 = vmatprep.mubr.bf16.mxu0 %v2290
        %3374 = vmatmul.mubr.bf16.gmra.mrb[0].mxu0 %v2289
        %v3375 = vpop.f32.mrb[0].mxu0
        %v3376 = vadd.f32 %v3336, %v3375
        %v3377 = vpop.f32.mrb[0].mxu0
        %v3378 = vpop.f32.mrb[0].mxu0
        %v3379 = vpop.f32.mrb[0].mxu0
        %3380 = vdwg.mxu0
        %3381 = vmatprep.subr.bf16.mxu0 0
        %3382 = vmatpush1.bf16.msra.mxu0 %v2973
        %3383 = vmatprep.subr.bf16.mxu0 0
        %3384 = vmatpush1.bf16.msra.mxu0 %v2974
        %3385 = vmatprep.subr.bf16.mxu0 0
        %3386 = vmatpush1.bf16.msra.mxu0 %v2975
        %3387 = vmatprep.subr.bf16.mxu0 0
        %3388 = vmatpush1.bf16.msra.mxu0 %v2976
        %3389 = vmatprep.subr.bf16.mxu0 0
        %3390 = vmatpush1.bf16.msra.mxu0 %v2977
        %3391 = vmatprep.subr.bf16.mxu0 0
        %3392 = vmatpush1.bf16.msra.mxu0 %v2978
        %3393 = vmatprep.subr.bf16.mxu0 0
        %3394 = vmatpush1.bf16.msra.mxu0 %v2979
        %3395 = vmatprep.subr.bf16.mxu0 0
        %3396 = vmatpush1.bf16.msra.mxu0 %v2980
        %3397 = vmatprep.subr.bf16.mxu0 0
        %3398 = vmatpush1.bf16.msra.mxu0 %v2981
        %3399 = vmatprep.subr.bf16.mxu0 0
        %3400 = vmatpush1.bf16.msra.mxu0 %v2982
        %3401 = vmatprep.subr.bf16.mxu0 0
        %3402 = vmatpush1.bf16.msra.mxu0 %v2983
        %3403 = vmatprep.subr.bf16.mxu0 0
        %3404 = vmatpush1.bf16.msra.mxu0 %v2984
        %3405 = vmatprep.subr.bf16.mxu0 0
        %3406 = vmatpush1.bf16.msra.mxu0 %v2985
        %3407 = vmatprep.subr.bf16.mxu0 0
        %3408 = vmatpush1.bf16.msra.mxu0 %v2986
        %3409 = vmatprep.subr.bf16.mxu0 0
        %3410 = vmatpush1.bf16.msra.mxu0 %v2987
        %3411 = vmatprep.subr.bf16.mxu0 0
        %3412 = vmatpush1.bf16.msra.mxu0 %v2988
        %3413 = vmatprep.mubr.bf16.mxu0 %v2292
        %3414 = vmatmul.mubr.bf16.gmra.mrb[0].mxu0 %v2291
        %v3415 = vpop.f32.mrb[0].mxu0
        %v3416 = vadd.f32 %v3376, %v3415
        %v3417 = vpop.f32.mrb[0].mxu0
        %v3418 = vpop.f32.mrb[0].mxu0
        %v3419 = vpop.f32.mrb[0].mxu0
        %3420 = vdwg.mxu0
        %3421 = vmatprep.subr.bf16.mxu0 0
        %3422 = vmatpush1.bf16.msra.mxu0 %v2989
        %3423 = vmatprep.subr.bf16.mxu0 0
        %3424 = vmatpush1.bf16.msra.mxu0 %v2990
        %3425 = vmatprep.subr.bf16.mxu0 0
        %3426 = vmatpush1.bf16.msra.mxu0 %v2991
        %3427 = vmatprep.subr.bf16.mxu0 0
        %3428 = vmatpush1.bf16.msra.mxu0 %v2992
        %3429 = vmatprep.subr.bf16.mxu0 0
        %3430 = vmatpush1.bf16.msra.mxu0 %v2993
        %3431 = vmatprep.subr.bf16.mxu0 0
        %3432 = vmatpush1.bf16.msra.mxu0 %v2994
        %3433 = vmatprep.subr.bf16.mxu0 0
        %3434 = vmatpush1.bf16.msra.mxu0 %v2995
        %3435 = vmatprep.subr.bf16.mxu0 0
        %3436 = vmatpush1.bf16.msra.mxu0 %v2996
        %3437 = vmatprep.subr.bf16.mxu0 0
        %3438 = vmatpush1.bf16.msra.mxu0 %v2997
        %3439 = vmatprep.subr.bf16.mxu0 0
        %3440 = vmatpush1.bf16.msra.mxu0 %v2998
        %3441 = vmatprep.subr.bf16.mxu0 0
        %3442 = vmatpush1.bf16.msra.mxu0 %v2999
        %3443 = vmatprep.subr.bf16.mxu0 0
        %3444 = vmatpush1.bf16.msra.mxu0 %v3000
        %3445 = vmatprep.subr.bf16.mxu0 0
        %3446 = vmatpush1.bf16.msra.mxu0 %v3001
        %3447 = vmatprep.subr.bf16.mxu0 0
        %3448 = vmatpush1.bf16.msra.mxu0 %v3002
        %3449 = vmatprep.subr.bf16.mxu0 0
        %3450 = vmatpush1.bf16.msra.mxu0 %v3003
        %3451 = vmatprep.subr.bf16.mxu0 0
        %3452 = vmatpush1.bf16.msra.mxu0 %v3004
        %3453 = vmatprep.mubr.bf16.mxu0 %v2294
        %3454 = vmatmul.mubr.bf16.gmra.mrb[0].mxu0 %v2293
        %v3455 = vpop.f32.mrb[0].mxu0
        %v3456 = vadd.f32 %v3416, %v3455
        %v3457 = vpop.f32.mrb[0].mxu0
        %v3458 = vpop.f32.mrb[0].mxu0
        %v3459 = vpop.f32.mrb[0].mxu0
        %3460 = vdwg.mxu0
        %3461 = vmatprep.subr.bf16.mxu0 0
        %3462 = vmatpush1.bf16.msra.mxu0 %v3005
        %3463 = vmatprep.subr.bf16.mxu0 0
        %3464 = vmatpush1.bf16.msra.mxu0 %v3006
        %3465 = vmatprep.subr.bf16.mxu0 0
        %3466 = vmatpush1.bf16.msra.mxu0 %v3007
        %3467 = vmatprep.subr.bf16.mxu0 0
        %3468 = vmatpush1.bf16.msra.mxu0 %v3008
        %3469 = vmatprep.subr.bf16.mxu0 0
        %3470 = vmatpush1.bf16.msra.mxu0 %v3009
        %3471 = vmatprep.subr.bf16.mxu0 0
        %3472 = vmatpush1.bf16.msra.mxu0 %v3010
        %3473 = vmatprep.subr.bf16.mxu0 0
        %3474 = vmatpush1.bf16.msra.mxu0 %v3011
        %3475 = vmatprep.subr.bf16.mxu0 0
        %3476 = vmatpush1.bf16.msra.mxu0 %v3012
        %3477 = vmatprep.subr.bf16.mxu0 0
        %3478 = vmatpush1.bf16.msra.mxu0 %v3013
        %3479 = vmatprep.subr.bf16.mxu0 0
        %3480 = vmatpush1.bf16.msra.mxu0 %v3014
        %3481 = vmatprep.subr.bf16.mxu0 0
        %3482 = vmatpush1.bf16.msra.mxu0 %v3015
        %3483 = vmatprep.subr.bf16.mxu0 0
        %3484 = vmatpush1.bf16.msra.mxu0 %v3016
        %3485 = vmatprep.subr.bf16.mxu0 0
        %3486 = vmatpush1.bf16.msra.mxu0 %v3017
        %3487 = vmatprep.subr.bf16.mxu0 0
        %3488 = vmatpush1.bf16.msra.mxu0 %v3018
        %3489 = vmatprep.subr.bf16.mxu0 0
        %3490 = vmatpush1.bf16.msra.mxu0 %v3019
        %3491 = vmatprep.subr.bf16.mxu0 0
        %3492 = vmatpush1.bf16.msra.mxu0 %v3020
        %3493 = vmatprep.mubr.bf16.mxu0 %v2296
        %3494 = vmatmul.mubr.bf16.gmra.mrb[0].mxu0 %v2295
        %v3495 = vpop.f32.mrb[0].mxu0
        %v3496 = vadd.f32 %v3456, %v3495
        %v3497 = vpop.f32.mrb[0].mxu0
        %v3498 = vpop.f32.mrb[0].mxu0
        %v3499 = vpop.f32.mrb[0].mxu0
        %3500 = vdwg.mxu0
        %3501 = vmatprep.subr.bf16.mxu0 0
        %3502 = vmatpush1.bf16.msra.mxu0 %v3021
        %3503 = vmatprep.subr.bf16.mxu0 0
        %3504 = vmatpush1.bf16.msra.mxu0 %v3022
        %3505 = vmatprep.subr.bf16.mxu0 0
        %3506 = vmatpush1.bf16.msra.mxu0 %v3023
        %3507 = vmatprep.subr.bf16.mxu0 0
        %3508 = vmatpush1.bf16.msra.mxu0 %v3024
        %3509 = vmatprep.subr.bf16.mxu0 0
        %3510 = vmatpush1.bf16.msra.mxu0 %v3025
        %3511 = vmatprep.subr.bf16.mxu0 0
        %3512 = vmatpush1.bf16.msra.mxu0 %v3026
        %3513 = vmatprep.subr.bf16.mxu0 0
        %3514 = vmatpush1.bf16.msra.mxu0 %v3027
        %3515 = vmatprep.subr.bf16.mxu0 0
        %3516 = vmatpush1.bf16.msra.mxu0 %v3028
        %3517 = vmatprep.subr.bf16.mxu0 0
        %3518 = vmatpush1.bf16.msra.mxu0 %v3029
        %3519 = vmatprep.subr.bf16.mxu0 0
        %3520 = vmatpush1.bf16.msra.mxu0 %v3030
        %3521 = vmatprep.subr.bf16.mxu0 0
        %3522 = vmatpush1.bf16.msra.mxu0 %v3031
        %3523 = vmatprep.subr.bf16.mxu0 0
        %3524 = vmatpush1.bf16.msra.mxu0 %v3032
        %3525 = vmatprep.subr.bf16.mxu0 0
        %3526 = vmatpush1.bf16.msra.mxu0 %v3033
        %3527 = vmatprep.subr.bf16.mxu0 0
        %3528 = vmatpush1.bf16.msra.mxu0 %v3034
        %3529 = vmatprep.subr.bf16.mxu0 0
        %3530 = vmatpush1.bf16.msra.mxu0 %v3035
        %3531 = vmatprep.subr.bf16.mxu0 0
        %3532 = vmatpush1.bf16.msra.mxu0 %v3036
        %3533 = vmatprep.mubr.bf16.mxu0 %v2298
        %3534 = vmatmul.mubr.bf16.gmra.mrb[0].mxu0 %v2297
        %v3535 = vpop.f32.mrb[0].mxu0
        %v3536 = vadd.f32 %v3496, %v3535
        %v3537 = vpop.f32.mrb[0].mxu0
        %v3538 = vpop.f32.mrb[0].mxu0
        %v3539 = vpop.f32.mrb[0].mxu0
        %3540 = vdwg.mxu0
        %3541 = vst [vmem:[%s1472] sm:$0xff] %v3536
        %p3542 = scmp.lt.s32.totalorder %s18, 1
        %s3543 = scalar_select %p3542, %s18, 1
        %p3544 = scmp.lt.s32.totalorder %s19, 1
        %s3545 = scalar_select %p3544, %s19, 1
        %s3546 = smul.addr %s3543, 2
        %s3547 = sadd.s32 %s3545, %s3546
        %s3548 = smul.addr %s3547, 8
        %s3549 = scalar_lea.vmem %s3, %s3548
        // Predicated region
        $region115: #{deformable_conv_block_forward.1} parent=105 // pred_check
          %p3550 = pneg %p128
        $region116: #{deformable_conv_block_forward.1} parent=105 // pred_check_branch
          %3552 = sbr.rel (%p3550) target = $region118
        $region117: #{deformable_conv_block_forward.1} parent=105 // pred_region
          _
        $region118: #{deformable_conv_block_forward.1} parent=105 // pred_fallthru
          _
      $region106: #{deformable_conv_block_forward.1} parent=5 // pred_fallthru
        _
      %p3553 = scmp.le.s32.totalorder 2, %s9
      // Predicated region
      $region119: #{deformable_conv_block_forward.1} parent=5 // pred_check
        %p3554 = pneg %p3553
      $region120: #{deformable_conv_block_forward.1} parent=5 // pred_check_branch
        %3556 = sbr.rel (%p3554) target = $region122
      $region121: #{deformable_conv_block_forward.1} parent=5 // pred_region
        %s3557 = ssub.s32 %s9, 2
        // Predicated region
        $region123: #{deformable_conv_block_forward.1} parent=121 // pred_check
          %p3558 = pneg %p134
        $region124: #{deformable_conv_block_forward.1} parent=121 // pred_check_branch
          %3560 = sbr.rel (%p3558) target = $region126
        $region125: #{deformable_conv_block_forward.1} parent=121 // pred_region
          %p3561 = scmp.lt.s32.totalorder %s20, 1
          %s3562 = scalar_select %p3561, %s20, 1
          %p3563 = scmp.lt.s32.totalorder %s21, 1
          %s3564 = scalar_select %p3563, %s21, 1
          %s3565 = smul.addr %s3562, 2
          %s3566 = sadd.s32 %s3564, %s3565
          %s3567 = smul.addr %s3566, 8
          %s3568 = scalar_lea.vmem %s3, %s3567
        $region126: #{deformable_conv_block_forward.1} parent=121 // pred_fallthru
          _
      $region122: #{deformable_conv_block_forward.1} parent=5 // pred_fallthru
        _
    $region6: #{deformable_conv_block_forward.1} parent=1 // loop_footer
      %s13 = sadd.s32 1, %s9
    $region7: #{deformable_conv_block_forward.1} parent=1 // loop_footer_branch
      %8 = sbr.rel target = $region3
    $region8: #{deformable_conv_block_forward.1} parent=1 // loop_exit
      _

</llo_original>
